<compile_context>
chip_gen: v6e
topology: v6e:2x2x1
jax: 0.10.0
libtpu: 0.0.40
codegen_flags: <defaults>
</compile_context>

<pallas_src>
import math

import jax
import jax.numpy as jnp
from jax import lax
from jax.experimental import pallas as pl
from jax.experimental.pallas import tpu as pltpu

# ----------------------------- deterministic "parameters" -------------------

# piqa ColorConv('RGB', 'YIQ') matrix.
_RGB_TO_YIQ = jnp.array([[0.299, 0.587, 0.114],
                         [0.5969, -0.2746, -0.3213],
                         [0.2115, -0.5227, 0.3112]], dtype=jnp.float32)

# Storage dtype of the (2N,S1,S2,H,W) eo real/imag tensors streamed by kernel
# 1.  bfloat16 halves kernel-1 HBM traffic (~2x on v5e, ~1.5-1.8x on v6e) at
# ~0.4% relative error; kept float32 by default pending numerical validation
# against the torch reference (perf-review correctness concern).  The kernel
# casts to f32 right after load, so flipping this constant is all it takes.
_EO_STORAGE_DTYPE = jnp.float32


# ----------------------------- generation-aware VMEM budgeting --------------

def _vmem_capacity_bytes():
    try:
        cap = int(pltpu.get_tpu_info().vmem_capacity_bytes)
        if cap > 0:
            return cap
    except Exception:
        pass
    return 64 * 1024 * 1024          # conservative fallback (v7x-sized)


def _max_block_elems(cap_bytes):
    # (TH*W) spatial-plane budget per block.  Kernel 1 streams 2 x S1*S2 = 32
    # f32 planes per block, so 65536 elems ~= 16 MiB of double-buffered eo
    # working set (fits v7x's 64 MiB VMEM/TC); 128-MiB chips (v5e/v6e) get 2x.
    return 65536 if cap_bytes <= (64 << 20) else 131072


def _vmem_limit_bytes(single_copy_block_bytes, cap_bytes):
    # 2x for double buffering + headroom for in-kernel temporaries; clamp to
    # 3/4 of physical VMEM so we never exceed the chip (v5e/v6e 128 MiB,
    # v7x 64 MiB).  Default scoped limit (16 MiB on v5e) is far too small for
    # the enlarged tiles, hence the explicit limit.
    want = 3 * single_copy_block_bytes + (16 << 20)
    return int(min(max(want, 32 << 20), (cap_bytes * 3) // 4))


def _pick_row_tile(h, w, max_block_elems, align=8):
    """Rows per block: full H when it fits the budget, otherwise the largest
    multiple of `align` with TH*W <= budget.  H need NOT be divisible by the
    tile -- the ragged last block is handled by pl.cdiv grids plus Pallas
    input padding / output-write clipping (and explicit masks in kernel 2)."""
    if h * w <= max_block_elems or h <= align:
        return h
    th = (max_block_elems // max(w, 1)) // align * align
    th = max(align, th)
    return min(th, (h // align) * align)


# ----------------------------- pc_filters (plain-JAX setup) -----------------

def _filter_grid(h, w, dtype=jnp.float32):
    u = (jnp.arange(h, dtype=dtype) - h // 2) / (h - h % 2)
    v = (jnp.arange(w, dtype=dtype) - w // 2) / (w - w % 2)
    u, v = jnp.meshgrid(u, v, indexing="ij")
    u = jnp.fft.ifftshift(u)
    v = jnp.fft.ifftshift(v)
    r = jnp.sqrt(u ** 2 + v ** 2)
    theta = jnp.arctan2(-v, u)
    return r, theta


def _log_gabor(f, f_0, sigma_f):
    return jnp.exp(-jnp.log(f / f_0) ** 2 / (2.0 * sigma_f ** 2))


def pc_filters(h, w, scales=4, orientations=4, wavelength=6.0, factor=2.0,
               sigma_f=0.5978, sigma_theta=0.6545):
    r, theta = _filter_grid(h, w)
    lowpass = 1.0 / (1.0 + (r / 0.45) ** (2 * 15))
    radial = jnp.stack(
        [_log_gabor(r, 1.0 / (wavelength * factor ** i), sigma_f)
         for i in range(scales)])                                   # (S1,H,W)
    cos_t, sin_t = jnp.cos(theta), jnp.sin(theta)
    theta_j = (math.pi * jnp.arange(orientations, dtype=jnp.float32)
               / orientations)[:, None, None]                       # (S2,1,1)
    delta_sin = sin_t * jnp.cos(theta_j) - cos_t * jnp.sin(theta_j)
    delta_cos = cos_t * jnp.cos(theta_j) + sin_t * jnp.sin(theta_j)
    delta_theta = jnp.arctan2(delta_sin, delta_cos)
    angular = jnp.exp(-delta_theta ** 2 / (2.0 * sigma_theta ** 2)) # (S2,H,W)
    return lowpass * radial[:, None] * angular[None, :]             # (S1,S2,H,W)


# ----------------------------- Pallas kernel 1: phase congruency ------------

def _make_pc_kernel(eps, s1, s2):
    def pc_kernel(t_ref, eo_re_ref, eo_im_ref, pc_ref):
        # t_ref: (2N, S2) f32 in SMEM (scalar prefetch); indexed as scalars.
        i = pl.program_id(0)
        a_sum = None
        pc_num = None
        for j in range(s2):
            # fused pass over the S1 planes: FH accumulation + amplitude sum
            fh_re = None
            fh_im = None
            for s in range(s1):
                er = eo_re_ref[0, s, j].astype(jnp.float32)
                ei = eo_im_ref[0, s, j].astype(jnp.float32)
                amp = jnp.sqrt(er * er + ei * ei)
                a_sum = amp if a_sum is None else a_sum + amp
                fh_re = er if fh_re is None else fh_re + er
                fh_im = ei if fh_im is None else fh_im + ei
            fh_mod2 = fh_re * fh_re + fh_im * fh_im
            fh_mod = jnp.sqrt(fh_mod2)
            inv_mod = pl.reciprocal(fh_mod + eps, approx=True)   # EUP slot
            phi_re = fh_re * inv_mod
            phi_im = fh_im * inv_mod
            # second pass (VMEM re-read only) for |cx.dot(eo, turn(phi))|
            d2_sum = None
            for s in range(s1):
                er = eo_re_ref[0, s, j].astype(jnp.float32)
                ei = eo_im_ref[0, s, j].astype(jnp.float32)
                d2 = jnp.abs(ei * phi_re - er * phi_im)
                d2_sum = d2 if d2_sum is None else d2_sum + d2
            # algebraic identity: sum_s cx.dot(eo, phi) == |FH|^2 / (|FH|+eps)
            e_j = fh_mod2 * inv_mod - d2_sum
            rel = jnp.maximum(e_j - t_ref[i, j], 0.0)
            pc_num = rel if pc_num is None else pc_num + rel
        pc_ref[0] = pc_num * pl.reciprocal(a_sum + eps, approx=True)
    return pc_kernel


def phase_congruency(x, filters, value_range=1.0, k=2.0, rescale=1.7, eps=1e-8):
    """x: (N, 1, H, W) -> PC map (N, H, W)."""
    n = x.shape[0]
    s1, s2, h, w = filters.shape

    x = x * (255.0 / value_range)
    m_hat = filters
    m = jnp.real(jnp.fft.ifft2(m_hat))                  # (S1,S2,H,W)

    # TODO(synk): FFT/IFFT have no Pallas primitive on TPU; kept in plain JAX.
    eo = jnp.fft.ifft2(jnp.fft.fft2(x[:, None]) * m_hat)   # (N,S1,S2,H,W) cplx

    # --- noise threshold T (tiny glue; median via sort, torch lower median) ---
    # TODO(synk): the O(HW*logHW) sort-based median is plain-JAX glue; replace
    # with a histogram/approx-quantile kernel if a trace shows it dominating.
    a2 = jnp.real(eo[:, 0]) ** 2 + jnp.imag(eo[:, 0]) ** 2      # (N,S2,H,W)
    a2 = a2.reshape(n, s2, h * w)
    median_a2 = jnp.sort(a2, axis=-1)[..., (h * w - 1) // 2]
    expect_a2 = median_a2 / math.log(2.0)                       # (N,S2)
    expect_m2_hat = jnp.mean(m_hat[0] ** 2, axis=(-1, -2))      # (S2,)
    # sum_{i,j,h,w} M_i M_j == sum_{h,w} (sum_i M_i)^2  -> no (S1,S1,S2,H,W) temp
    expect_mimj = jnp.sum(jnp.sum(m, axis=0) ** 2, axis=(-1, -2))  # (S2,)
    expect_e2 = expect_a2 * expect_mimj / expect_m2_hat
    sigma_g = jnp.sqrt(expect_e2)
    mu_r = sigma_g * (math.pi / 2.0) ** 0.5
    sigma_r = sigma_g * (2.0 - math.pi / 2.0) ** 0.5
    t = ((mu_r + k * sigma_r) / rescale).astype(jnp.float32)    # (N,S2) -> SMEM

    # TODO(synk): complex64 is not supported inside Pallas TPU kernels, so the
    # real/imag split still materializes two HBM copies feeding kernel 1.
    eo_re = jnp.real(eo).astype(_EO_STORAGE_DTYPE)
    eo_im = jnp.imag(eo).astype(_EO_STORAGE_DTYPE)

    cap = _vmem_capacity_bytes()
    align = 16 if jnp.dtype(_EO_STORAGE_DTYPE) == jnp.dtype(jnp.bfloat16) else 8
    th = _pick_row_tile(h, w, _max_block_elems(cap), align=align)
    grid = (n, pl.cdiv(h, th))

    itemsize = jnp.dtype(_EO_STORAGE_DTYPE).itemsize
    block_bytes = 2 * s1 * s2 * th * w * itemsize + th * w * 4
    vmem_limit = _vmem_limit_bytes(block_bytes, cap)

    # NOTE: if an xprof trace on v6e still shows exposed DMA after the larger
    # tiles, pipeline_mode=pl.Buffered(3) on the two eo BlockSpecs is the next
    # lever (do NOT on v7x: only 64 MiB VMEM).
    kernel = _make_pc_kernel(float(eps), s1, s2)
    pc = pl.pallas_call(
        kernel,
        out_shape=jax.ShapeDtypeStruct((n, h, w), jnp.float32),
        grid_spec=pltpu.PrefetchScalarGridSpec(
            num_scalar_prefetch=1,                  # T -> SMEM, no VMEM stream
            grid=grid,
            in_specs=[
                pl.BlockSpec((1, s1, s2, th, w), lambda i, r, t: (i, 0, 0, r, 0)),
                pl.BlockSpec((1, s1, s2, th, w), lambda i, r, t: (i, 0, 0, r, 0)),
            ],
            out_specs=pl.BlockSpec((1, th, w), lambda i, r, t: (i, r, 0)),
        ),
        compiler_params=pltpu.CompilerParams(
            dimension_semantics=("parallel", "parallel"),
            vmem_limit_bytes=vmem_limit),
    )(t, eo_re, eo_im)
    return pc


# ----------------------------- Pallas kernel 2: FSIM ------------------------

def _col_smooth(v):
    """[3,10,3]/16 smoothing along the last axis with zero boundary."""
    zero = jnp.zeros_like(v[..., :1])
    v_l = jnp.concatenate([v[..., 1:], zero], axis=-1)    # v(., j+1)
    v_r = jnp.concatenate([zero, v[..., :-1]], axis=-1)   # v(., j-1)
    return (3.0 / 16.0) * (v_l + v_r) + (10.0 / 16.0) * v


def _make_fsim_kernel(h, w, th, t1, t2, t3, t4, lmbda, chromatic):
    cos_lpi = float(math.cos(lmbda * math.pi))   # cos(lambda*atan2(0, s<0))

    def fsim_kernel(x_ref, y_ref, halo_ref, pcx_ref, pcy_ref, num_ref, den_ref):
        r = pl.program_id(1)
        local_row = lax.broadcasted_iota(jnp.int32, (th, w), 0)
        col = lax.broadcasted_iota(jnp.int32, (th, w), 1)
        grow = local_row + r * th                 # global row index
        valid = grow < h                          # masks ragged last block
        not_first_row = grow > 0
        not_last_row = grow < (h - 1)
        not_first_col = col > 0
        not_last_col = col < (w - 1)

        halo = halo_ref[0, 0]                     # (8, W): raw + col-smoothed

        # shifted views with zero boundary (== conv2d zero padding); in-block
        # rows via pltpu.roll (XLU slot), the +-1-row halo from the tiny
        # precomputed side input, boundary masks on the VPU.
        def sh_up(z, below):      # z(i+1, j)
            zz = pltpu.roll(z, shift=th - 1, axis=0)
            zz = jnp.where(local_row == th - 1, below, zz)
            return jnp.where(not_last_row, zz, 0.0)

        def sh_down(z, above):    # z(i-1, j)
            zz = pltpu.roll(z, shift=1, axis=0)
            zz = jnp.where(local_row == 0, above, zz)
            return jnp.where(not_first_row, zz, 0.0)

        def sh_left(z):           # z(i, j+1)
            return jnp.where(not_last_col, pltpu.roll(z, shift=w - 1, axis=1), 0.0)

        def sh_right(z):          # z(i, j-1)
            return jnp.where(not_first_col, pltpu.roll(z, shift=1, axis=1), 0.0)

        def grad_mag(yc, above, below, above_sm, below_sm):
            # separable Scharr/16: smooth [3,10,3]/16, then diff [-1,0,1]
            tmp_v = (3.0 / 16.0) * (sh_down(yc, above) + sh_up(yc, below)) \
                + (10.0 / 16.0) * yc
            g_h = sh_left(tmp_v) - sh_right(tmp_v)
            tmp_h = (3.0 / 16.0) * (sh_right(yc) + sh_left(yc)) \
                + (10.0 / 16.0) * yc
            g_v = sh_up(tmp_h, below_sm) - sh_down(tmp_h, above_sm)
            return jnp.sqrt(g_h * g_h + g_v * g_v)

        g_x = grad_mag(x_ref[0, 0], halo[0:1, :], halo[1:2, :],
                       halo[4:5, :], halo[5:6, :])
        g_y = grad_mag(y_ref[0, 0], halo[2:3, :], halo[3:4, :],
                       halo[6:7, :], halo[7:8, :])

        pcx = pcx_ref[0]
        pcy = pcy_ref[0]
        pc_m = jnp.maximum(pcx, pcy)
        # combined s_pc * s_g ratio: one divide instead of two
        num_l = (2.0 * pcx * pcy + t1) * (2.0 * g_x * g_y + t2)
        den_l = (pcx * pcx + pcy * pcy + t1) * (g_x * g_x + g_y * g_y + t2)
        s_l = num_l / den_l

        if chromatic:
            i_x, q_x = x_ref[0, 1], x_ref[0, 2]
            i_y, q_y = y_ref[0, 1], y_ref[0, 2]
            num_iq = (2.0 * i_x * i_y + t3) * (2.0 * q_x * q_y + t4)
            den_iq = (i_x * i_x + i_y * i_y + t3) * (q_x * q_x + q_y * q_y + t4)
            s_iq = num_iq / den_iq
            # real(cx.pow(s_iq + 0j, l)) = |s_iq|^l * cos(l*pi*[s_iq < 0]);
            # s_iq == 0 is unreachable because t3, t4 > 0.
            mag = jnp.exp(lmbda * jnp.log(jnp.maximum(jnp.abs(s_iq), 1e-30)))
            s_l = s_l * mag * jnp.where(s_iq < 0.0, cos_lpi, 1.0)

        # per-row-block partial sums; use select (not multiply) so garbage in
        # ragged-block padding rows can never contaminate the reduction.
        num = jnp.sum(jnp.where(valid, s_l * pc_m, 0.0))
        den = jnp.sum(jnp.where(valid, pc_m, 0.0))
        # scalar broadcast into lane-dense (8,128) tiles; wrapper reduces them.
        num_ref[...] = jnp.broadcast_to(num, num_ref.shape)
        den_ref[...] = jnp.broadcast_to(den, den_ref.shape)

    return fsim_kernel


def fsim(x, y, pc_x, pc_y, value_range=1.0, t1=0.85,
         t2=160.0 / 255.0 ** 2, t3=200.0 / 255.0 ** 2, t4=200.0 / 255.0 ** 2,
         lmbda=0.03):
    """x, y: YIQ (or Y) images (N, 3 or 1, H, W); pc_*: (N, H, W) -> (N,)."""
    n, c, h, w = x.shape
    t2 = t2 * value_range ** 2
    t3 = t3 * value_range ** 2
    t4 = t4 * value_range ** 2
    chromatic = (c == 3)

    cap = _vmem_capacity_bytes()
    th = _pick_row_tile(h, w, _max_block_elems(cap))
    nr = pl.cdiv(h, th)

    # +-1-row halo rows for the Scharr gradient, precomputed as a tiny side
    # input (raw rows + their column-smoothed versions), so row blocks stay
    # fully independent -> both grid axes "parallel" (feeds v7x's 2nd core).
    row_ids = jnp.arange(nr) * th
    ia = jnp.clip(row_ids - 1, 0, h - 1)         # row above each block
    ib = jnp.clip(row_ids + th, 0, h - 1)        # row below each block
    xc, yc = x[:, 0], y[:, 0]
    xa, xb = xc[:, ia, :], xc[:, ib, :]          # (N, nr, W)
    ya, yb = yc[:, ia, :], yc[:, ib, :]
    halo = jnp.stack([xa, xb, ya, yb,
                      _col_smooth(xa), _col_smooth(xb),
                      _col_smooth(ya), _col_smooth(yb)], axis=2)   # (N,nr,8,W)

    block_bytes = (2 * c + 2) * th * w * 4 + 8 * w * 4 + 2 * 8 * 128 * 4
    vmem_limit = _vmem_limit_bytes(block_bytes, cap)

    kernel = _make_fsim_kernel(h, w, th, float(t1), float(t2), float(t3),
                               float(t4), float(lmbda), chromatic)
    num_t, den_t = pl.pallas_call(
        kernel,
        out_shape=(jax.ShapeDtypeStruct((n, nr, 8, 128), jnp.float32),
                   jax.ShapeDtypeStruct((n, nr, 8, 128), jnp.float32)),
        grid=(n, nr),
        in_specs=[
            pl.BlockSpec((1, c, th, w), lambda i, r: (i, 0, r, 0)),
            pl.BlockSpec((1, c, th, w), lambda i, r: (i, 0, r, 0)),
            pl.BlockSpec((1, 1, 8, w), lambda i, r: (i, r, 0, 0)),
            pl.BlockSpec((1, th, w), lambda i, r: (i, r, 0)),
            pl.BlockSpec((1, th, w), lambda i, r: (i, r, 0)),
        ],
        out_specs=[
            pl.BlockSpec((1, 1, 8, 128), lambda i, r: (i, r, 0, 0)),
            pl.BlockSpec((1, 1, 8, 128), lambda i, r: (i, r, 0, 0)),
        ],
        compiler_params=pltpu.CompilerParams(
            dimension_semantics=("parallel", "parallel"),
            vmem_limit_bytes=vmem_limit),
    )(x, y, halo, pc_x, pc_y)

    num = jnp.sum(num_t[:, :, 0, 0], axis=1)                 # (N,)
    den = jnp.sum(den_t[:, :, 0, 0], axis=1)
    return num / den


# ----------------------------- FSIM module forward ---------------------------

def fsim_forward(x, y, chromatic=True, downsample=True, value_range=1.0,
                 reduction="mean"):
    """Equivalent of FSIM(chromatic, downsample, reduction).forward(x, y)."""
    n, c, h, w = x.shape
    assert c == 3

    if downsample:
        m = round(min(h, w) / 256)
        if m > 1:
            # TODO(synk): ceil_mode avg_pool2d not re-implemented (never hit at
            # these shapes); exact only when H, W are divisible by m.
            x = x[:, :, :h // m * m, :w // m * m].reshape(
                n, c, h // m, m, w // m, m).mean(axis=(3, 5))
            y = y[:, :, :h // m * m, :w // m * m].reshape(
                n, c, h // m, m, w // m, m).mean(axis=(3, 5))

    mat = _RGB_TO_YIQ if chromatic else _RGB_TO_YIQ[:1]
    x = jnp.einsum("ij,njhw->nihw", mat, x, precision="highest")
    y = jnp.einsum("ij,njhw->nihw", mat, y, precision="highest")

    hc, wc = x.shape[-2:]
    filters = pc_filters(hc, wc)
    # single pallas_call for both images' phase congruency (grid batch = 2N)
    pc_xy = phase_congruency(jnp.concatenate([x[:, :1], y[:, :1]], axis=0),
                             filters, value_range)
    pc_x, pc_y = pc_xy[:n], pc_xy[n:]

    l = fsim(x, y, pc_x, pc_y, value_range=value_range)
    if reduction == "mean":
        return jnp.mean(l)
    if reduction == "sum":
        return jnp.sum(l)
    return l


# ----------------------------- demo ------------------------------------------

if __name__ == "__main__":
    key = jax.random.PRNGKey(0)
    kx, ky = jax.random.split(key)
    x = jax.random.uniform(kx, (2, 3, 16, 16), dtype=jnp.float32)
    y = jax.random.uniform(ky, (2, 3, 16, 16), dtype=jnp.float32)

    out = jax.jit(fsim_forward)(x, y)
    out = jax.block_until_ready(out)

    assert out.shape == ()
    assert bool(jnp.isfinite(out))
    print("KERNEL_OK")
</pallas_src>

<mosaic_0001>
module attributes {stable_mosaic.version = 11 : i64} {
  func.func @pc_kernel(%arg0: i32, %arg1: i32, %arg2: memref<4x4xf32, #tpu.memory_space<smem>>, %arg3: memref<1x4x4x16x16xf32, #tpu.memory_space<vmem>>, %arg4: memref<1x4x4x16x16xf32, #tpu.memory_space<vmem>>, %arg5: memref<1x16x16xf32, #tpu.memory_space<vmem>>) attributes {dimension_semantics = [#tpu.dimension_semantics<parallel>, #tpu.dimension_semantics<parallel>], iteration_bounds = array<i64: 4, 1>, scalar_prefetch = 1 : i64, scratch_operands = 0 : i64, tpu.core_type = #tpu.core_type<tc>, window_params = [{transform_indices = @transform_0, window_bounds = array<i64: 1, 4, 4, 16, 16>}, {transform_indices = @transform_1, window_bounds = array<i64: 1, 4, 4, 16, 16>}, {transform_indices = @transform_2, window_bounds = array<i64: 1, 16, 16>}]} {
    %c0 = arith.constant 0 : index
    %c0_0 = arith.constant 0 : index
    %c0_1 = arith.constant 0 : index
    %c0_2 = arith.constant 0 : index
    %c0_3 = arith.constant 0 : index
    %0 = vector.load %arg3[%c0, %c0_0, %c0_1, %c0_2, %c0_3] : memref<1x4x4x16x16xf32, #tpu.memory_space<vmem>>, vector<1x1x1x16x16xf32>
    %1 = vector.shape_cast %0 : vector<1x1x1x16x16xf32> to vector<16x16xf32>
    %c0_4 = arith.constant 0 : index
    %c0_5 = arith.constant 0 : index
    %c0_6 = arith.constant 0 : index
    %c0_7 = arith.constant 0 : index
    %c0_8 = arith.constant 0 : index
    %2 = vector.load %arg4[%c0_4, %c0_5, %c0_6, %c0_7, %c0_8] : memref<1x4x4x16x16xf32, #tpu.memory_space<vmem>>, vector<1x1x1x16x16xf32>
    %3 = vector.shape_cast %2 : vector<1x1x1x16x16xf32> to vector<16x16xf32>
    %4 = arith.mulf %1, %1 : vector<16x16xf32>
    %5 = arith.mulf %3, %3 : vector<16x16xf32>
    %6 = arith.addf %4, %5 : vector<16x16xf32>
    %7 = math.sqrt %6 : vector<16x16xf32>
    %c0_9 = arith.constant 0 : index
    %c1 = arith.constant 1 : index
    %c0_10 = arith.constant 0 : index
    %c0_11 = arith.constant 0 : index
    %c0_12 = arith.constant 0 : index
    %8 = vector.load %arg3[%c0_9, %c1, %c0_10, %c0_11, %c0_12] : memref<1x4x4x16x16xf32, #tpu.memory_space<vmem>>, vector<1x1x1x16x16xf32>
    %9 = vector.shape_cast %8 : vector<1x1x1x16x16xf32> to vector<16x16xf32>
    %c0_13 = arith.constant 0 : index
    %c1_14 = arith.constant 1 : index
    %c0_15 = arith.constant 0 : index
    %c0_16 = arith.constant 0 : index
    %c0_17 = arith.constant 0 : index
    %10 = vector.load %arg4[%c0_13, %c1_14, %c0_15, %c0_16, %c0_17] : memref<1x4x4x16x16xf32, #tpu.memory_space<vmem>>, vector<1x1x1x16x16xf32>
    %11 = vector.shape_cast %10 : vector<1x1x1x16x16xf32> to vector<16x16xf32>
    %12 = arith.mulf %9, %9 : vector<16x16xf32>
    %13 = arith.mulf %11, %11 : vector<16x16xf32>
    %14 = arith.addf %12, %13 : vector<16x16xf32>
    %15 = math.sqrt %14 : vector<16x16xf32>
    %16 = arith.addf %7, %15 : vector<16x16xf32>
    %17 = arith.addf %1, %9 : vector<16x16xf32>
    %18 = arith.addf %3, %11 : vector<16x16xf32>
    %c0_18 = arith.constant 0 : index
    %c2 = arith.constant 2 : index
    %c0_19 = arith.constant 0 : index
    %c0_20 = arith.constant 0 : index
    %c0_21 = arith.constant 0 : index
    %19 = vector.load %arg3[%c0_18, %c2, %c0_19, %c0_20, %c0_21] : memref<1x4x4x16x16xf32, #tpu.memory_space<vmem>>, vector<1x1x1x16x16xf32>
    %20 = vector.shape_cast %19 : vector<1x1x1x16x16xf32> to vector<16x16xf32>
    %c0_22 = arith.constant 0 : index
    %c2_23 = arith.constant 2 : index
    %c0_24 = arith.constant 0 : index
    %c0_25 = arith.constant 0 : index
    %c0_26 = arith.constant 0 : index
    %21 = vector.load %arg4[%c0_22, %c2_23, %c0_24, %c0_25, %c0_26] : memref<1x4x4x16x16xf32, #tpu.memory_space<vmem>>, vector<1x1x1x16x16xf32>
    %22 = vector.shape_cast %21 : vector<1x1x1x16x16xf32> to vector<16x16xf32>
    %23 = arith.mulf %20, %20 : vector<16x16xf32>
    %24 = arith.mulf %22, %22 : vector<16x16xf32>
    %25 = arith.addf %23, %24 : vector<16x16xf32>
    %26 = math.sqrt %25 : vector<16x16xf32>
    %27 = arith.addf %16, %26 : vector<16x16xf32>
    %28 = arith.addf %17, %20 : vector<16x16xf32>
    %29 = arith.addf %18, %22 : vector<16x16xf32>
    %c0_27 = arith.constant 0 : index
    %c3 = arith.constant 3 : index
    %c0_28 = arith.constant 0 : index
    %c0_29 = arith.constant 0 : index
    %c0_30 = arith.constant 0 : index
    %30 = vector.load %arg3[%c0_27, %c3, %c0_28, %c0_29, %c0_30] : memref<1x4x4x16x16xf32, #tpu.memory_space<vmem>>, vector<1x1x1x16x16xf32>
    %31 = vector.shape_cast %30 : vector<1x1x1x16x16xf32> to vector<16x16xf32>
    %c0_31 = arith.constant 0 : index
    %c3_32 = arith.constant 3 : index
    %c0_33 = arith.constant 0 : index
    %c0_34 = arith.constant 0 : index
    %c0_35 = arith.constant 0 : index
    %32 = vector.load %arg4[%c0_31, %c3_32, %c0_33, %c0_34, %c0_35] : memref<1x4x4x16x16xf32, #tpu.memory_space<vmem>>, vector<1x1x1x16x16xf32>
    %33 = vector.shape_cast %32 : vector<1x1x1x16x16xf32> to vector<16x16xf32>
    %34 = arith.mulf %31, %31 : vector<16x16xf32>
    %35 = arith.mulf %33, %33 : vector<16x16xf32>
    %36 = arith.addf %34, %35 : vector<16x16xf32>
    %37 = math.sqrt %36 : vector<16x16xf32>
    %38 = arith.addf %27, %37 : vector<16x16xf32>
    %39 = arith.addf %28, %31 : vector<16x16xf32>
    %40 = arith.addf %29, %33 : vector<16x16xf32>
    %41 = arith.mulf %39, %39 : vector<16x16xf32>
    %42 = arith.mulf %40, %40 : vector<16x16xf32>
    %43 = arith.addf %41, %42 : vector<16x16xf32>
    %44 = math.sqrt %43 : vector<16x16xf32>
    %cst = arith.constant 9.99999993E-9 : f32
    %45 = vector.broadcast %cst : f32 to vector<16x16xf32>
    %46 = arith.addf %44, %45 : vector<16x16xf32>
    %47 = tpu.reciprocal %46 {approx = true} : vector<16x16xf32> -> vector<16x16xf32>
    %48 = arith.mulf %39, %47 : vector<16x16xf32>
    %49 = arith.mulf %40, %47 : vector<16x16xf32>
    %c0_36 = arith.constant 0 : index
    %c0_37 = arith.constant 0 : index
    %c0_38 = arith.constant 0 : index
    %c0_39 = arith.constant 0 : index
    %c0_40 = arith.constant 0 : index
    %50 = vector.load %arg3[%c0_36, %c0_37, %c0_38, %c0_39, %c0_40] : memref<1x4x4x16x16xf32, #tpu.memory_space<vmem>>, vector<1x1x1x16x16xf32>
    %51 = vector.shape_cast %50 : vector<1x1x1x16x16xf32> to vector<16x16xf32>
    %c0_41 = arith.constant 0 : index
    %c0_42 = arith.constant 0 : index
    %c0_43 = arith.constant 0 : index
    %c0_44 = arith.constant 0 : index
    %c0_45 = arith.constant 0 : index
    %52 = vector.load %arg4[%c0_41, %c0_42, %c0_43, %c0_44, %c0_45] : memref<1x4x4x16x16xf32, #tpu.memory_space<vmem>>, vector<1x1x1x16x16xf32>
    %53 = vector.shape_cast %52 : vector<1x1x1x16x16xf32> to vector<16x16xf32>
    %54 = arith.mulf %53, %48 : vector<16x16xf32>
    %55 = arith.mulf %51, %49 : vector<16x16xf32>
    %56 = arith.subf %54, %55 : vector<16x16xf32>
    %57 = math.absf %56 : vector<16x16xf32>
    %c0_46 = arith.constant 0 : index
    %c1_47 = arith.constant 1 : index
    %c0_48 = arith.constant 0 : index
    %c0_49 = arith.constant 0 : index
    %c0_50 = arith.constant 0 : index
    %58 = vector.load %arg3[%c0_46, %c1_47, %c0_48, %c0_49, %c0_50] : memref<1x4x4x16x16xf32, #tpu.memory_space<vmem>>, vector<1x1x1x16x16xf32>
    %59 = vector.shape_cast %58 : vector<1x1x1x16x16xf32> to vector<16x16xf32>
    %c0_51 = arith.constant 0 : index
    %c1_52 = arith.constant 1 : index
    %c0_53 = arith.constant 0 : index
    %c0_54 = arith.constant 0 : index
    %c0_55 = arith.constant 0 : index
    %60 = vector.load %arg4[%c0_51, %c1_52, %c0_53, %c0_54, %c0_55] : memref<1x4x4x16x16xf32, #tpu.memory_space<vmem>>, vector<1x1x1x16x16xf32>
    %61 = vector.shape_cast %60 : vector<1x1x1x16x16xf32> to vector<16x16xf32>
    %62 = arith.mulf %61, %48 : vector<16x16xf32>
    %63 = arith.mulf %59, %49 : vector<16x16xf32>
    %64 = arith.subf %62, %63 : vector<16x16xf32>
    %65 = math.absf %64 : vector<16x16xf32>
    %66 = arith.addf %57, %65 : vector<16x16xf32>
    %c0_56 = arith.constant 0 : index
    %c2_57 = arith.constant 2 : index
    %c0_58 = arith.constant 0 : index
    %c0_59 = arith.constant 0 : index
    %c0_60 = arith.constant 0 : index
    %67 = vector.load %arg3[%c0_56, %c2_57, %c0_58, %c0_59, %c0_60] : memref<1x4x4x16x16xf32, #tpu.memory_space<vmem>>, vector<1x1x1x16x16xf32>
    %68 = vector.shape_cast %67 : vector<1x1x1x16x16xf32> to vector<16x16xf32>
    %c0_61 = arith.constant 0 : index
    %c2_62 = arith.constant 2 : index
    %c0_63 = arith.constant 0 : index
    %c0_64 = arith.constant 0 : index
    %c0_65 = arith.constant 0 : index
    %69 = vector.load %arg4[%c0_61, %c2_62, %c0_63, %c0_64, %c0_65] : memref<1x4x4x16x16xf32, #tpu.memory_space<vmem>>, vector<1x1x1x16x16xf32>
    %70 = vector.shape_cast %69 : vector<1x1x1x16x16xf32> to vector<16x16xf32>
    %71 = arith.mulf %70, %48 : vector<16x16xf32>
    %72 = arith.mulf %68, %49 : vector<16x16xf32>
    %73 = arith.subf %71, %72 : vector<16x16xf32>
    %74 = math.absf %73 : vector<16x16xf32>
    %75 = arith.addf %66, %74 : vector<16x16xf32>
    %c0_66 = arith.constant 0 : index
    %c3_67 = arith.constant 3 : index
    %c0_68 = arith.constant 0 : index
    %c0_69 = arith.constant 0 : index
    %c0_70 = arith.constant 0 : index
    %76 = vector.load %arg3[%c0_66, %c3_67, %c0_68, %c0_69, %c0_70] : memref<1x4x4x16x16xf32, #tpu.memory_space<vmem>>, vector<1x1x1x16x16xf32>
    %77 = vector.shape_cast %76 : vector<1x1x1x16x16xf32> to vector<16x16xf32>
    %c0_71 = arith.constant 0 : index
    %c3_72 = arith.constant 3 : index
    %c0_73 = arith.constant 0 : index
    %c0_74 = arith.constant 0 : index
    %c0_75 = arith.constant 0 : index
    %78 = vector.load %arg4[%c0_71, %c3_72, %c0_73, %c0_74, %c0_75] : memref<1x4x4x16x16xf32, #tpu.memory_space<vmem>>, vector<1x1x1x16x16xf32>
    %79 = vector.shape_cast %78 : vector<1x1x1x16x16xf32> to vector<16x16xf32>
    %80 = arith.mulf %79, %48 : vector<16x16xf32>
    %81 = arith.mulf %77, %49 : vector<16x16xf32>
    %82 = arith.subf %80, %81 : vector<16x16xf32>
    %83 = math.absf %82 : vector<16x16xf32>
    %84 = arith.addf %75, %83 : vector<16x16xf32>
    %85 = arith.mulf %43, %47 : vector<16x16xf32>
    %86 = arith.subf %85, %84 : vector<16x16xf32>
    %87 = arith.index_cast %arg0 : i32 to index
    %c0_76 = arith.constant 0 : index
    %88 = memref.load %arg2[%87, %c0_76] : memref<4x4xf32, #tpu.memory_space<smem>>
    %89 = vector.broadcast %88 : f32 to vector<16x16xf32>
    %90 = arith.subf %86, %89 : vector<16x16xf32>
    %cst_77 = arith.constant 0.000000e+00 : f32
    %91 = vector.broadcast %cst_77 : f32 to vector<16x16xf32>
    %92 = arith.maximumf %90, %91 : vector<16x16xf32>
    %c0_78 = arith.constant 0 : index
    %c0_79 = arith.constant 0 : index
    %c1_80 = arith.constant 1 : index
    %c0_81 = arith.constant 0 : index
    %c0_82 = arith.constant 0 : index
    %93 = vector.load %arg3[%c0_78, %c0_79, %c1_80, %c0_81, %c0_82] : memref<1x4x4x16x16xf32, #tpu.memory_space<vmem>>, vector<1x1x1x16x16xf32>
    %94 = vector.shape_cast %93 : vector<1x1x1x16x16xf32> to vector<16x16xf32>
    %c0_83 = arith.constant 0 : index
    %c0_84 = arith.constant 0 : index
    %c1_85 = arith.constant 1 : index
    %c0_86 = arith.constant 0 : index
    %c0_87 = arith.constant 0 : index
    %95 = vector.load %arg4[%c0_83, %c0_84, %c1_85, %c0_86, %c0_87] : memref<1x4x4x16x16xf32, #tpu.memory_space<vmem>>, vector<1x1x1x16x16xf32>
    %96 = vector.shape_cast %95 : vector<1x1x1x16x16xf32> to vector<16x16xf32>
    %97 = arith.mulf %94, %94 : vector<16x16xf32>
    %98 = arith.mulf %96, %96 : vector<16x16xf32>
    %99 = arith.addf %97, %98 : vector<16x16xf32>
    %100 = math.sqrt %99 : vector<16x16xf32>
    %101 = arith.addf %38, %100 : vector<16x16xf32>
    %c0_88 = arith.constant 0 : index
    %c1_89 = arith.constant 1 : index
    %c1_90 = arith.constant 1 : index
    %c0_91 = arith.constant 0 : index
    %c0_92 = arith.constant 0 : index
    %102 = vector.load %arg3[%c0_88, %c1_89, %c1_90, %c0_91, %c0_92] : memref<1x4x4x16x16xf32, #tpu.memory_space<vmem>>, vector<1x1x1x16x16xf32>
    %103 = vector.shape_cast %102 : vector<1x1x1x16x16xf32> to vector<16x16xf32>
    %c0_93 = arith.constant 0 : index
    %c1_94 = arith.constant 1 : index
    %c1_95 = arith.constant 1 : index
    %c0_96 = arith.constant 0 : index
    %c0_97 = arith.constant 0 : index
    %104 = vector.load %arg4[%c0_93, %c1_94, %c1_95, %c0_96, %c0_97] : memref<1x4x4x16x16xf32, #tpu.memory_space<vmem>>, vector<1x1x1x16x16xf32>
    %105 = vector.shape_cast %104 : vector<1x1x1x16x16xf32> to vector<16x16xf32>
    %106 = arith.mulf %103, %103 : vector<16x16xf32>
    %107 = arith.mulf %105, %105 : vector<16x16xf32>
    %108 = arith.addf %106, %107 : vector<16x16xf32>
    %109 = math.sqrt %108 : vector<16x16xf32>
    %110 = arith.addf %101, %109 : vector<16x16xf32>
    %111 = arith.addf %94, %103 : vector<16x16xf32>
    %112 = arith.addf %96, %105 : vector<16x16xf32>
    %c0_98 = arith.constant 0 : index
    %c2_99 = arith.constant 2 : index
    %c1_100 = arith.constant 1 : index
    %c0_101 = arith.constant 0 : index
    %c0_102 = arith.constant 0 : index
    %113 = vector.load %arg3[%c0_98, %c2_99, %c1_100, %c0_101, %c0_102] : memref<1x4x4x16x16xf32, #tpu.memory_space<vmem>>, vector<1x1x1x16x16xf32>
    %114 = vector.shape_cast %113 : vector<1x1x1x16x16xf32> to vector<16x16xf32>
    %c0_103 = arith.constant 0 : index
    %c2_104 = arith.constant 2 : index
    %c1_105 = arith.constant 1 : index
    %c0_106 = arith.constant 0 : index
    %c0_107 = arith.constant 0 : index
    %115 = vector.load %arg4[%c0_103, %c2_104, %c1_105, %c0_106, %c0_107] : memref<1x4x4x16x16xf32, #tpu.memory_space<vmem>>, vector<1x1x1x16x16xf32>
    %116 = vector.shape_cast %115 : vector<1x1x1x16x16xf32> to vector<16x16xf32>
    %117 = arith.mulf %114, %114 : vector<16x16xf32>
    %118 = arith.mulf %116, %116 : vector<16x16xf32>
    %119 = arith.addf %117, %118 : vector<16x16xf32>
    %120 = math.sqrt %119 : vector<16x16xf32>
    %121 = arith.addf %110, %120 : vector<16x16xf32>
    %122 = arith.addf %111, %114 : vector<16x16xf32>
    %123 = arith.addf %112, %116 : vector<16x16xf32>
    %c0_108 = arith.constant 0 : index
    %c3_109 = arith.constant 3 : index
    %c1_110 = arith.constant 1 : index
    %c0_111 = arith.constant 0 : index
    %c0_112 = arith.constant 0 : index
    %124 = vector.load %arg3[%c0_108, %c3_109, %c1_110, %c0_111, %c0_112] : memref<1x4x4x16x16xf32, #tpu.memory_space<vmem>>, vector<1x1x1x16x16xf32>
    %125 = vector.shape_cast %124 : vector<1x1x1x16x16xf32> to vector<16x16xf32>
    %c0_113 = arith.constant 0 : index
    %c3_114 = arith.constant 3 : index
    %c1_115 = arith.constant 1 : index
    %c0_116 = arith.constant 0 : index
    %c0_117 = arith.constant 0 : index
    %126 = vector.load %arg4[%c0_113, %c3_114, %c1_115, %c0_116, %c0_117] : memref<1x4x4x16x16xf32, #tpu.memory_space<vmem>>, vector<1x1x1x16x16xf32>
    %127 = vector.shape_cast %126 : vector<1x1x1x16x16xf32> to vector<16x16xf32>
    %128 = arith.mulf %125, %125 : vector<16x16xf32>
    %129 = arith.mulf %127, %127 : vector<16x16xf32>
    %130 = arith.addf %128, %129 : vector<16x16xf32>
    %131 = math.sqrt %130 : vector<16x16xf32>
    %132 = arith.addf %121, %131 : vector<16x16xf32>
    %133 = arith.addf %122, %125 : vector<16x16xf32>
    %134 = arith.addf %123, %127 : vector<16x16xf32>
    %135 = arith.mulf %133, %133 : vector<16x16xf32>
    %136 = arith.mulf %134, %134 : vector<16x16xf32>
    %137 = arith.addf %135, %136 : vector<16x16xf32>
    %138 = math.sqrt %137 : vector<16x16xf32>
    %cst_118 = arith.constant 9.99999993E-9 : f32
    %139 = vector.broadcast %cst_118 : f32 to vector<16x16xf32>
    %140 = arith.addf %138, %139 : vector<16x16xf32>
    %141 = tpu.reciprocal %140 {approx = true} : vector<16x16xf32> -> vector<16x16xf32>
    %142 = arith.mulf %133, %141 : vector<16x16xf32>
    %143 = arith.mulf %134, %141 : vector<16x16xf32>
    %c0_119 = arith.constant 0 : index
    %c0_120 = arith.constant 0 : index
    %c1_121 = arith.constant 1 : index
    %c0_122 = arith.constant 0 : index
    %c0_123 = arith.constant 0 : index
    %144 = vector.load %arg3[%c0_119, %c0_120, %c1_121, %c0_122, %c0_123] : memref<1x4x4x16x16xf32, #tpu.memory_space<vmem>>, vector<1x1x1x16x16xf32>
    %145 = vector.shape_cast %144 : vector<1x1x1x16x16xf32> to vector<16x16xf32>
    %c0_124 = arith.constant 0 : index
    %c0_125 = arith.constant 0 : index
    %c1_126 = arith.constant 1 : index
    %c0_127 = arith.constant 0 : index
    %c0_128 = arith.constant 0 : index
    %146 = vector.load %arg4[%c0_124, %c0_125, %c1_126, %c0_127, %c0_128] : memref<1x4x4x16x16xf32, #tpu.memory_space<vmem>>, vector<1x1x1x16x16xf32>
    %147 = vector.shape_cast %146 : vector<1x1x1x16x16xf32> to vector<16x16xf32>
    %148 = arith.mulf %147, %142 : vector<16x16xf32>
    %149 = arith.mulf %145, %143 : vector<16x16xf32>
    %150 = arith.subf %148, %149 : vector<16x16xf32>
    %151 = math.absf %150 : vector<16x16xf32>
    %c0_129 = arith.constant 0 : index
    %c1_130 = arith.constant 1 : index
    %c1_131 = arith.constant 1 : index
    %c0_132 = arith.constant 0 : index
    %c0_133 = arith.constant 0 : index
    %152 = vector.load %arg3[%c0_129, %c1_130, %c1_131, %c0_132, %c0_133] : memref<1x4x4x16x16xf32, #tpu.memory_space<vmem>>, vector<1x1x1x16x16xf32>
    %153 = vector.shape_cast %152 : vector<1x1x1x16x16xf32> to vector<16x16xf32>
    %c0_134 = arith.constant 0 : index
    %c1_135 = arith.constant 1 : index
    %c1_136 = arith.constant 1 : index
    %c0_137 = arith.constant 0 : index
    %c0_138 = arith.constant 0 : index
    %154 = vector.load %arg4[%c0_134, %c1_135, %c1_136, %c0_137, %c0_138] : memref<1x4x4x16x16xf32, #tpu.memory_space<vmem>>, vector<1x1x1x16x16xf32>
    %155 = vector.shape_cast %154 : vector<1x1x1x16x16xf32> to vector<16x16xf32>
    %156 = arith.mulf %155, %142 : vector<16x16xf32>
    %157 = arith.mulf %153, %143 : vector<16x16xf32>
    %158 = arith.subf %156, %157 : vector<16x16xf32>
    %159 = math.absf %158 : vector<16x16xf32>
    %160 = arith.addf %151, %159 : vector<16x16xf32>
    %c0_139 = arith.constant 0 : index
    %c2_140 = arith.constant 2 : index
    %c1_141 = arith.constant 1 : index
    %c0_142 = arith.constant 0 : index
    %c0_143 = arith.constant 0 : index
    %161 = vector.load %arg3[%c0_139, %c2_140, %c1_141, %c0_142, %c0_143] : memref<1x4x4x16x16xf32, #tpu.memory_space<vmem>>, vector<1x1x1x16x16xf32>
    %162 = vector.shape_cast %161 : vector<1x1x1x16x16xf32> to vector<16x16xf32>
    %c0_144 = arith.constant 0 : index
    %c2_145 = arith.constant 2 : index
    %c1_146 = arith.constant 1 : index
    %c0_147 = arith.constant 0 : index
    %c0_148 = arith.constant 0 : index
    %163 = vector.load %arg4[%c0_144, %c2_145, %c1_146, %c0_147, %c0_148] : memref<1x4x4x16x16xf32, #tpu.memory_space<vmem>>, vector<1x1x1x16x16xf32>
    %164 = vector.shape_cast %163 : vector<1x1x1x16x16xf32> to vector<16x16xf32>
    %165 = arith.mulf %164, %142 : vector<16x16xf32>
    %166 = arith.mulf %162, %143 : vector<16x16xf32>
    %167 = arith.subf %165, %166 : vector<16x16xf32>
    %168 = math.absf %167 : vector<16x16xf32>
    %169 = arith.addf %160, %168 : vector<16x16xf32>
    %c0_149 = arith.constant 0 : index
    %c3_150 = arith.constant 3 : index
    %c1_151 = arith.constant 1 : index
    %c0_152 = arith.constant 0 : index
    %c0_153 = arith.constant 0 : index
    %170 = vector.load %arg3[%c0_149, %c3_150, %c1_151, %c0_152, %c0_153] : memref<1x4x4x16x16xf32, #tpu.memory_space<vmem>>, vector<1x1x1x16x16xf32>
    %171 = vector.shape_cast %170 : vector<1x1x1x16x16xf32> to vector<16x16xf32>
    %c0_154 = arith.constant 0 : index
    %c3_155 = arith.constant 3 : index
    %c1_156 = arith.constant 1 : index
    %c0_157 = arith.constant 0 : index
    %c0_158 = arith.constant 0 : index
    %172 = vector.load %arg4[%c0_154, %c3_155, %c1_156, %c0_157, %c0_158] : memref<1x4x4x16x16xf32, #tpu.memory_space<vmem>>, vector<1x1x1x16x16xf32>
    %173 = vector.shape_cast %172 : vector<1x1x1x16x16xf32> to vector<16x16xf32>
    %174 = arith.mulf %173, %142 : vector<16x16xf32>
    %175 = arith.mulf %171, %143 : vector<16x16xf32>
    %176 = arith.subf %174, %175 : vector<16x16xf32>
    %177 = math.absf %176 : vector<16x16xf32>
    %178 = arith.addf %169, %177 : vector<16x16xf32>
    %179 = arith.mulf %137, %141 : vector<16x16xf32>
    %180 = arith.subf %179, %178 : vector<16x16xf32>
    %181 = arith.index_cast %arg0 : i32 to index
    %c1_159 = arith.constant 1 : index
    %182 = memref.load %arg2[%181, %c1_159] : memref<4x4xf32, #tpu.memory_space<smem>>
    %183 = vector.broadcast %182 : f32 to vector<16x16xf32>
    %184 = arith.subf %180, %183 : vector<16x16xf32>
    %cst_160 = arith.constant 0.000000e+00 : f32
    %185 = vector.broadcast %cst_160 : f32 to vector<16x16xf32>
    %186 = arith.maximumf %184, %185 : vector<16x16xf32>
    %187 = arith.addf %92, %186 : vector<16x16xf32>
    %c0_161 = arith.constant 0 : index
    %c0_162 = arith.constant 0 : index
    %c2_163 = arith.constant 2 : index
    %c0_164 = arith.constant 0 : index
    %c0_165 = arith.constant 0 : index
    %188 = vector.load %arg3[%c0_161, %c0_162, %c2_163, %c0_164, %c0_165] : memref<1x4x4x16x16xf32, #tpu.memory_space<vmem>>, vector<1x1x1x16x16xf32>
    %189 = vector.shape_cast %188 : vector<1x1x1x16x16xf32> to vector<16x16xf32>
    %c0_166 = arith.constant 0 : index
    %c0_167 = arith.constant 0 : index
    %c2_168 = arith.constant 2 : index
    %c0_169 = arith.constant 0 : index
    %c0_170 = arith.constant 0 : index
    %190 = vector.load %arg4[%c0_166, %c0_167, %c2_168, %c0_169, %c0_170] : memref<1x4x4x16x16xf32, #tpu.memory_space<vmem>>, vector<1x1x1x16x16xf32>
    %191 = vector.shape_cast %190 : vector<1x1x1x16x16xf32> to vector<16x16xf32>
    %192 = arith.mulf %189, %189 : vector<16x16xf32>
    %193 = arith.mulf %191, %191 : vector<16x16xf32>
    %194 = arith.addf %192, %193 : vector<16x16xf32>
    %195 = math.sqrt %194 : vector<16x16xf32>
    %196 = arith.addf %132, %195 : vector<16x16xf32>
    %c0_171 = arith.constant 0 : index
    %c1_172 = arith.constant 1 : index
    %c2_173 = arith.constant 2 : index
    %c0_174 = arith.constant 0 : index
    %c0_175 = arith.constant 0 : index
    %197 = vector.load %arg3[%c0_171, %c1_172, %c2_173, %c0_174, %c0_175] : memref<1x4x4x16x16xf32, #tpu.memory_space<vmem>>, vector<1x1x1x16x16xf32>
    %198 = vector.shape_cast %197 : vector<1x1x1x16x16xf32> to vector<16x16xf32>
    %c0_176 = arith.constant 0 : index
    %c1_177 = arith.constant 1 : index
    %c2_178 = arith.constant 2 : index
    %c0_179 = arith.constant 0 : index
    %c0_180 = arith.constant 0 : index
    %199 = vector.load %arg4[%c0_176, %c1_177, %c2_178, %c0_179, %c0_180] : memref<1x4x4x16x16xf32, #tpu.memory_space<vmem>>, vector<1x1x1x16x16xf32>
    %200 = vector.shape_cast %199 : vector<1x1x1x16x16xf32> to vector<16x16xf32>
    %201 = arith.mulf %198, %198 : vector<16x16xf32>
    %202 = arith.mulf %200, %200 : vector<16x16xf32>
    %203 = arith.addf %201, %202 : vector<16x16xf32>
    %204 = math.sqrt %203 : vector<16x16xf32>
    %205 = arith.addf %196, %204 : vector<16x16xf32>
    %206 = arith.addf %189, %198 : vector<16x16xf32>
    %207 = arith.addf %191, %200 : vector<16x16xf32>
    %c0_181 = arith.constant 0 : index
    %c2_182 = arith.constant 2 : index
    %c2_183 = arith.constant 2 : index
    %c0_184 = arith.constant 0 : index
    %c0_185 = arith.constant 0 : index
    %208 = vector.load %arg3[%c0_181, %c2_182, %c2_183, %c0_184, %c0_185] : memref<1x4x4x16x16xf32, #tpu.memory_space<vmem>>, vector<1x1x1x16x16xf32>
    %209 = vector.shape_cast %208 : vector<1x1x1x16x16xf32> to vector<16x16xf32>
    %c0_186 = arith.constant 0 : index
    %c2_187 = arith.constant 2 : index
    %c2_188 = arith.constant 2 : index
    %c0_189 = arith.constant 0 : index
    %c0_190 = arith.constant 0 : index
    %210 = vector.load %arg4[%c0_186, %c2_187, %c2_188, %c0_189, %c0_190] : memref<1x4x4x16x16xf32, #tpu.memory_space<vmem>>, vector<1x1x1x16x16xf32>
    %211 = vector.shape_cast %210 : vector<1x1x1x16x16xf32> to vector<16x16xf32>
    %212 = arith.mulf %209, %209 : vector<16x16xf32>
    %213 = arith.mulf %211, %211 : vector<16x16xf32>
    %214 = arith.addf %212, %213 : vector<16x16xf32>
    %215 = math.sqrt %214 : vector<16x16xf32>
    %216 = arith.addf %205, %215 : vector<16x16xf32>
    %217 = arith.addf %206, %209 : vector<16x16xf32>
    %218 = arith.addf %207, %211 : vector<16x16xf32>
    %c0_191 = arith.constant 0 : index
    %c3_192 = arith.constant 3 : index
    %c2_193 = arith.constant 2 : index
    %c0_194 = arith.constant 0 : index
    %c0_195 = arith.constant 0 : index
    %219 = vector.load %arg3[%c0_191, %c3_192, %c2_193, %c0_194, %c0_195] : memref<1x4x4x16x16xf32, #tpu.memory_space<vmem>>, vector<1x1x1x16x16xf32>
    %220 = vector.shape_cast %219 : vector<1x1x1x16x16xf32> to vector<16x16xf32>
    %c0_196 = arith.constant 0 : index
    %c3_197 = arith.constant 3 : index
    %c2_198 = arith.constant 2 : index
    %c0_199 = arith.constant 0 : index
    %c0_200 = arith.constant 0 : index
    %221 = vector.load %arg4[%c0_196, %c3_197, %c2_198, %c0_199, %c0_200] : memref<1x4x4x16x16xf32, #tpu.memory_space<vmem>>, vector<1x1x1x16x16xf32>
    %222 = vector.shape_cast %221 : vector<1x1x1x16x16xf32> to vector<16x16xf32>
    %223 = arith.mulf %220, %220 : vector<16x16xf32>
    %224 = arith.mulf %222, %222 : vector<16x16xf32>
    %225 = arith.addf %223, %224 : vector<16x16xf32>
    %226 = math.sqrt %225 : vector<16x16xf32>
    %227 = arith.addf %216, %226 : vector<16x16xf32>
    %228 = arith.addf %217, %220 : vector<16x16xf32>
    %229 = arith.addf %218, %222 : vector<16x16xf32>
    %230 = arith.mulf %228, %228 : vector<16x16xf32>
    %231 = arith.mulf %229, %229 : vector<16x16xf32>
    %232 = arith.addf %230, %231 : vector<16x16xf32>
    %233 = math.sqrt %232 : vector<16x16xf32>
    %cst_201 = arith.constant 9.99999993E-9 : f32
    %234 = vector.broadcast %cst_201 : f32 to vector<16x16xf32>
    %235 = arith.addf %233, %234 : vector<16x16xf32>
    %236 = tpu.reciprocal %235 {approx = true} : vector<16x16xf32> -> vector<16x16xf32>
    %237 = arith.mulf %228, %236 : vector<16x16xf32>
    %238 = arith.mulf %229, %236 : vector<16x16xf32>
    %c0_202 = arith.constant 0 : index
    %c0_203 = arith.constant 0 : index
    %c2_204 = arith.constant 2 : index
    %c0_205 = arith.constant 0 : index
    %c0_206 = arith.constant 0 : index
    %239 = vector.load %arg3[%c0_202, %c0_203, %c2_204, %c0_205, %c0_206] : memref<1x4x4x16x16xf32, #tpu.memory_space<vmem>>, vector<1x1x1x16x16xf32>
    %240 = vector.shape_cast %239 : vector<1x1x1x16x16xf32> to vector<16x16xf32>
    %c0_207 = arith.constant 0 : index
    %c0_208 = arith.constant 0 : index
    %c2_209 = arith.constant 2 : index
    %c0_210 = arith.constant 0 : index
    %c0_211 = arith.constant 0 : index
    %241 = vector.load %arg4[%c0_207, %c0_208, %c2_209, %c0_210, %c0_211] : memref<1x4x4x16x16xf32, #tpu.memory_space<vmem>>, vector<1x1x1x16x16xf32>
    %242 = vector.shape_cast %241 : vector<1x1x1x16x16xf32> to vector<16x16xf32>
    %243 = arith.mulf %242, %237 : vector<16x16xf32>
    %244 = arith.mulf %240, %238 : vector<16x16xf32>
    %245 = arith.subf %243, %244 : vector<16x16xf32>
    %246 = math.absf %245 : vector<16x16xf32>
    %c0_212 = arith.constant 0 : index
    %c1_213 = arith.constant 1 : index
    %c2_214 = arith.constant 2 : index
    %c0_215 = arith.constant 0 : index
    %c0_216 = arith.constant 0 : index
    %247 = vector.load %arg3[%c0_212, %c1_213, %c2_214, %c0_215, %c0_216] : memref<1x4x4x16x16xf32, #tpu.memory_space<vmem>>, vector<1x1x1x16x16xf32>
    %248 = vector.shape_cast %247 : vector<1x1x1x16x16xf32> to vector<16x16xf32>
    %c0_217 = arith.constant 0 : index
    %c1_218 = arith.constant 1 : index
    %c2_219 = arith.constant 2 : index
    %c0_220 = arith.constant 0 : index
    %c0_221 = arith.constant 0 : index
    %249 = vector.load %arg4[%c0_217, %c1_218, %c2_219, %c0_220, %c0_221] : memref<1x4x4x16x16xf32, #tpu.memory_space<vmem>>, vector<1x1x1x16x16xf32>
    %250 = vector.shape_cast %249 : vector<1x1x1x16x16xf32> to vector<16x16xf32>
    %251 = arith.mulf %250, %237 : vector<16x16xf32>
    %252 = arith.mulf %248, %238 : vector<16x16xf32>
    %253 = arith.subf %251, %252 : vector<16x16xf32>
    %254 = math.absf %253 : vector<16x16xf32>
    %255 = arith.addf %246, %254 : vector<16x16xf32>
    %c0_222 = arith.constant 0 : index
    %c2_223 = arith.constant 2 : index
    %c2_224 = arith.constant 2 : index
    %c0_225 = arith.constant 0 : index
    %c0_226 = arith.constant 0 : index
    %256 = vector.load %arg3[%c0_222, %c2_223, %c2_224, %c0_225, %c0_226] : memref<1x4x4x16x16xf32, #tpu.memory_space<vmem>>, vector<1x1x1x16x16xf32>
    %257 = vector.shape_cast %256 : vector<1x1x1x16x16xf32> to vector<16x16xf32>
    %c0_227 = arith.constant 0 : index
    %c2_228 = arith.constant 2 : index
    %c2_229 = arith.constant 2 : index
    %c0_230 = arith.constant 0 : index
    %c0_231 = arith.constant 0 : index
    %258 = vector.load %arg4[%c0_227, %c2_228, %c2_229, %c0_230, %c0_231] : memref<1x4x4x16x16xf32, #tpu.memory_space<vmem>>, vector<1x1x1x16x16xf32>
    %259 = vector.shape_cast %258 : vector<1x1x1x16x16xf32> to vector<16x16xf32>
    %260 = arith.mulf %259, %237 : vector<16x16xf32>
    %261 = arith.mulf %257, %238 : vector<16x16xf32>
    %262 = arith.subf %260, %261 : vector<16x16xf32>
    %263 = math.absf %262 : vector<16x16xf32>
    %264 = arith.addf %255, %263 : vector<16x16xf32>
    %c0_232 = arith.constant 0 : index
    %c3_233 = arith.constant 3 : index
    %c2_234 = arith.constant 2 : index
    %c0_235 = arith.constant 0 : index
    %c0_236 = arith.constant 0 : index
    %265 = vector.load %arg3[%c0_232, %c3_233, %c2_234, %c0_235, %c0_236] : memref<1x4x4x16x16xf32, #tpu.memory_space<vmem>>, vector<1x1x1x16x16xf32>
    %266 = vector.shape_cast %265 : vector<1x1x1x16x16xf32> to vector<16x16xf32>
    %c0_237 = arith.constant 0 : index
    %c3_238 = arith.constant 3 : index
    %c2_239 = arith.constant 2 : index
    %c0_240 = arith.constant 0 : index
    %c0_241 = arith.constant 0 : index
    %267 = vector.load %arg4[%c0_237, %c3_238, %c2_239, %c0_240, %c0_241] : memref<1x4x4x16x16xf32, #tpu.memory_space<vmem>>, vector<1x1x1x16x16xf32>
    %268 = vector.shape_cast %267 : vector<1x1x1x16x16xf32> to vector<16x16xf32>
    %269 = arith.mulf %268, %237 : vector<16x16xf32>
    %270 = arith.mulf %266, %238 : vector<16x16xf32>
    %271 = arith.subf %269, %270 : vector<16x16xf32>
    %272 = math.absf %271 : vector<16x16xf32>
    %273 = arith.addf %264, %272 : vector<16x16xf32>
    %274 = arith.mulf %232, %236 : vector<16x16xf32>
    %275 = arith.subf %274, %273 : vector<16x16xf32>
    %276 = arith.index_cast %arg0 : i32 to index
    %c2_242 = arith.constant 2 : index
    %277 = memref.load %arg2[%276, %c2_242] : memref<4x4xf32, #tpu.memory_space<smem>>
    %278 = vector.broadcast %277 : f32 to vector<16x16xf32>
    %279 = arith.subf %275, %278 : vector<16x16xf32>
    %cst_243 = arith.constant 0.000000e+00 : f32
    %280 = vector.broadcast %cst_243 : f32 to vector<16x16xf32>
    %281 = arith.maximumf %279, %280 : vector<16x16xf32>
    %282 = arith.addf %187, %281 : vector<16x16xf32>
    %c0_244 = arith.constant 0 : index
    %c0_245 = arith.constant 0 : index
    %c3_246 = arith.constant 3 : index
    %c0_247 = arith.constant 0 : index
    %c0_248 = arith.constant 0 : index
    %283 = vector.load %arg3[%c0_244, %c0_245, %c3_246, %c0_247, %c0_248] : memref<1x4x4x16x16xf32, #tpu.memory_space<vmem>>, vector<1x1x1x16x16xf32>
    %284 = vector.shape_cast %283 : vector<1x1x1x16x16xf32> to vector<16x16xf32>
    %c0_249 = arith.constant 0 : index
    %c0_250 = arith.constant 0 : index
    %c3_251 = arith.constant 3 : index
    %c0_252 = arith.constant 0 : index
    %c0_253 = arith.constant 0 : index
    %285 = vector.load %arg4[%c0_249, %c0_250, %c3_251, %c0_252, %c0_253] : memref<1x4x4x16x16xf32, #tpu.memory_space<vmem>>, vector<1x1x1x16x16xf32>
    %286 = vector.shape_cast %285 : vector<1x1x1x16x16xf32> to vector<16x16xf32>
    %287 = arith.mulf %284, %284 : vector<16x16xf32>
    %288 = arith.mulf %286, %286 : vector<16x16xf32>
    %289 = arith.addf %287, %288 : vector<16x16xf32>
    %290 = math.sqrt %289 : vector<16x16xf32>
    %291 = arith.addf %227, %290 : vector<16x16xf32>
    %c0_254 = arith.constant 0 : index
    %c1_255 = arith.constant 1 : index
    %c3_256 = arith.constant 3 : index
    %c0_257 = arith.constant 0 : index
    %c0_258 = arith.constant 0 : index
    %292 = vector.load %arg3[%c0_254, %c1_255, %c3_256, %c0_257, %c0_258] : memref<1x4x4x16x16xf32, #tpu.memory_space<vmem>>, vector<1x1x1x16x16xf32>
    %293 = vector.shape_cast %292 : vector<1x1x1x16x16xf32> to vector<16x16xf32>
    %c0_259 = arith.constant 0 : index
    %c1_260 = arith.constant 1 : index
    %c3_261 = arith.constant 3 : index
    %c0_262 = arith.constant 0 : index
    %c0_263 = arith.constant 0 : index
    %294 = vector.load %arg4[%c0_259, %c1_260, %c3_261, %c0_262, %c0_263] : memref<1x4x4x16x16xf32, #tpu.memory_space<vmem>>, vector<1x1x1x16x16xf32>
    %295 = vector.shape_cast %294 : vector<1x1x1x16x16xf32> to vector<16x16xf32>
    %296 = arith.mulf %293, %293 : vector<16x16xf32>
    %297 = arith.mulf %295, %295 : vector<16x16xf32>
    %298 = arith.addf %296, %297 : vector<16x16xf32>
    %299 = math.sqrt %298 : vector<16x16xf32>
    %300 = arith.addf %291, %299 : vector<16x16xf32>
    %301 = arith.addf %284, %293 : vector<16x16xf32>
    %302 = arith.addf %286, %295 : vector<16x16xf32>
    %c0_264 = arith.constant 0 : index
    %c2_265 = arith.constant 2 : index
    %c3_266 = arith.constant 3 : index
    %c0_267 = arith.constant 0 : index
    %c0_268 = arith.constant 0 : index
    %303 = vector.load %arg3[%c0_264, %c2_265, %c3_266, %c0_267, %c0_268] : memref<1x4x4x16x16xf32, #tpu.memory_space<vmem>>, vector<1x1x1x16x16xf32>
    %304 = vector.shape_cast %303 : vector<1x1x1x16x16xf32> to vector<16x16xf32>
    %c0_269 = arith.constant 0 : index
    %c2_270 = arith.constant 2 : index
    %c3_271 = arith.constant 3 : index
    %c0_272 = arith.constant 0 : index
    %c0_273 = arith.constant 0 : index
    %305 = vector.load %arg4[%c0_269, %c2_270, %c3_271, %c0_272, %c0_273] : memref<1x4x4x16x16xf32, #tpu.memory_space<vmem>>, vector<1x1x1x16x16xf32>
    %306 = vector.shape_cast %305 : vector<1x1x1x16x16xf32> to vector<16x16xf32>
    %307 = arith.mulf %304, %304 : vector<16x16xf32>
    %308 = arith.mulf %306, %306 : vector<16x16xf32>
    %309 = arith.addf %307, %308 : vector<16x16xf32>
    %310 = math.sqrt %309 : vector<16x16xf32>
    %311 = arith.addf %300, %310 : vector<16x16xf32>
    %312 = arith.addf %301, %304 : vector<16x16xf32>
    %313 = arith.addf %302, %306 : vector<16x16xf32>
    %c0_274 = arith.constant 0 : index
    %c3_275 = arith.constant 3 : index
    %c3_276 = arith.constant 3 : index
    %c0_277 = arith.constant 0 : index
    %c0_278 = arith.constant 0 : index
    %314 = vector.load %arg3[%c0_274, %c3_275, %c3_276, %c0_277, %c0_278] : memref<1x4x4x16x16xf32, #tpu.memory_space<vmem>>, vector<1x1x1x16x16xf32>
    %315 = vector.shape_cast %314 : vector<1x1x1x16x16xf32> to vector<16x16xf32>
    %c0_279 = arith.constant 0 : index
    %c3_280 = arith.constant 3 : index
    %c3_281 = arith.constant 3 : index
    %c0_282 = arith.constant 0 : index
    %c0_283 = arith.constant 0 : index
    %316 = vector.load %arg4[%c0_279, %c3_280, %c3_281, %c0_282, %c0_283] : memref<1x4x4x16x16xf32, #tpu.memory_space<vmem>>, vector<1x1x1x16x16xf32>
    %317 = vector.shape_cast %316 : vector<1x1x1x16x16xf32> to vector<16x16xf32>
    %318 = arith.mulf %315, %315 : vector<16x16xf32>
    %319 = arith.mulf %317, %317 : vector<16x16xf32>
    %320 = arith.addf %318, %319 : vector<16x16xf32>
    %321 = math.sqrt %320 : vector<16x16xf32>
    %322 = arith.addf %311, %321 : vector<16x16xf32>
    %323 = arith.addf %312, %315 : vector<16x16xf32>
    %324 = arith.addf %313, %317 : vector<16x16xf32>
    %325 = arith.mulf %323, %323 : vector<16x16xf32>
    %326 = arith.mulf %324, %324 : vector<16x16xf32>
    %327 = arith.addf %325, %326 : vector<16x16xf32>
    %328 = math.sqrt %327 : vector<16x16xf32>
    %cst_284 = arith.constant 9.99999993E-9 : f32
    %329 = vector.broadcast %cst_284 : f32 to vector<16x16xf32>
    %330 = arith.addf %328, %329 : vector<16x16xf32>
    %331 = tpu.reciprocal %330 {approx = true} : vector<16x16xf32> -> vector<16x16xf32>
    %332 = arith.mulf %323, %331 : vector<16x16xf32>
    %333 = arith.mulf %324, %331 : vector<16x16xf32>
    %c0_285 = arith.constant 0 : index
    %c0_286 = arith.constant 0 : index
    %c3_287 = arith.constant 3 : index
    %c0_288 = arith.constant 0 : index
    %c0_289 = arith.constant 0 : index
    %334 = vector.load %arg3[%c0_285, %c0_286, %c3_287, %c0_288, %c0_289] : memref<1x4x4x16x16xf32, #tpu.memory_space<vmem>>, vector<1x1x1x16x16xf32>
    %335 = vector.shape_cast %334 : vector<1x1x1x16x16xf32> to vector<16x16xf32>
    %c0_290 = arith.constant 0 : index
    %c0_291 = arith.constant 0 : index
    %c3_292 = arith.constant 3 : index
    %c0_293 = arith.constant 0 : index
    %c0_294 = arith.constant 0 : index
    %336 = vector.load %arg4[%c0_290, %c0_291, %c3_292, %c0_293, %c0_294] : memref<1x4x4x16x16xf32, #tpu.memory_space<vmem>>, vector<1x1x1x16x16xf32>
    %337 = vector.shape_cast %336 : vector<1x1x1x16x16xf32> to vector<16x16xf32>
    %338 = arith.mulf %337, %332 : vector<16x16xf32>
    %339 = arith.mulf %335, %333 : vector<16x16xf32>
    %340 = arith.subf %338, %339 : vector<16x16xf32>
    %341 = math.absf %340 : vector<16x16xf32>
    %c0_295 = arith.constant 0 : index
    %c1_296 = arith.constant 1 : index
    %c3_297 = arith.constant 3 : index
    %c0_298 = arith.constant 0 : index
    %c0_299 = arith.constant 0 : index
    %342 = vector.load %arg3[%c0_295, %c1_296, %c3_297, %c0_298, %c0_299] : memref<1x4x4x16x16xf32, #tpu.memory_space<vmem>>, vector<1x1x1x16x16xf32>
    %343 = vector.shape_cast %342 : vector<1x1x1x16x16xf32> to vector<16x16xf32>
    %c0_300 = arith.constant 0 : index
    %c1_301 = arith.constant 1 : index
    %c3_302 = arith.constant 3 : index
    %c0_303 = arith.constant 0 : index
    %c0_304 = arith.constant 0 : index
    %344 = vector.load %arg4[%c0_300, %c1_301, %c3_302, %c0_303, %c0_304] : memref<1x4x4x16x16xf32, #tpu.memory_space<vmem>>, vector<1x1x1x16x16xf32>
    %345 = vector.shape_cast %344 : vector<1x1x1x16x16xf32> to vector<16x16xf32>
    %346 = arith.mulf %345, %332 : vector<16x16xf32>
    %347 = arith.mulf %343, %333 : vector<16x16xf32>
    %348 = arith.subf %346, %347 : vector<16x16xf32>
    %349 = math.absf %348 : vector<16x16xf32>
    %350 = arith.addf %341, %349 : vector<16x16xf32>
    %c0_305 = arith.constant 0 : index
    %c2_306 = arith.constant 2 : index
    %c3_307 = arith.constant 3 : index
    %c0_308 = arith.constant 0 : index
    %c0_309 = arith.constant 0 : index
    %351 = vector.load %arg3[%c0_305, %c2_306, %c3_307, %c0_308, %c0_309] : memref<1x4x4x16x16xf32, #tpu.memory_space<vmem>>, vector<1x1x1x16x16xf32>
    %352 = vector.shape_cast %351 : vector<1x1x1x16x16xf32> to vector<16x16xf32>
    %c0_310 = arith.constant 0 : index
    %c2_311 = arith.constant 2 : index
    %c3_312 = arith.constant 3 : index
    %c0_313 = arith.constant 0 : index
    %c0_314 = arith.constant 0 : index
    %353 = vector.load %arg4[%c0_310, %c2_311, %c3_312, %c0_313, %c0_314] : memref<1x4x4x16x16xf32, #tpu.memory_space<vmem>>, vector<1x1x1x16x16xf32>
    %354 = vector.shape_cast %353 : vector<1x1x1x16x16xf32> to vector<16x16xf32>
    %355 = arith.mulf %354, %332 : vector<16x16xf32>
    %356 = arith.mulf %352, %333 : vector<16x16xf32>
    %357 = arith.subf %355, %356 : vector<16x16xf32>
    %358 = math.absf %357 : vector<16x16xf32>
    %359 = arith.addf %350, %358 : vector<16x16xf32>
    %c0_315 = arith.constant 0 : index
    %c3_316 = arith.constant 3 : index
    %c3_317 = arith.constant 3 : index
    %c0_318 = arith.constant 0 : index
    %c0_319 = arith.constant 0 : index
    %360 = vector.load %arg3[%c0_315, %c3_316, %c3_317, %c0_318, %c0_319] : memref<1x4x4x16x16xf32, #tpu.memory_space<vmem>>, vector<1x1x1x16x16xf32>
    %361 = vector.shape_cast %360 : vector<1x1x1x16x16xf32> to vector<16x16xf32>
    %c0_320 = arith.constant 0 : index
    %c3_321 = arith.constant 3 : index
    %c3_322 = arith.constant 3 : index
    %c0_323 = arith.constant 0 : index
    %c0_324 = arith.constant 0 : index
    %362 = vector.load %arg4[%c0_320, %c3_321, %c3_322, %c0_323, %c0_324] : memref<1x4x4x16x16xf32, #tpu.memory_space<vmem>>, vector<1x1x1x16x16xf32>
    %363 = vector.shape_cast %362 : vector<1x1x1x16x16xf32> to vector<16x16xf32>
    %364 = arith.mulf %363, %332 : vector<16x16xf32>
    %365 = arith.mulf %361, %333 : vector<16x16xf32>
    %366 = arith.subf %364, %365 : vector<16x16xf32>
    %367 = math.absf %366 : vector<16x16xf32>
    %368 = arith.addf %359, %367 : vector<16x16xf32>
    %369 = arith.mulf %327, %331 : vector<16x16xf32>
    %370 = arith.subf %369, %368 : vector<16x16xf32>
    %371 = arith.index_cast %arg0 : i32 to index
    %c3_325 = arith.constant 3 : index
    %372 = memref.load %arg2[%371, %c3_325] : memref<4x4xf32, #tpu.memory_space<smem>>
    %373 = vector.broadcast %372 : f32 to vector<16x16xf32>
    %374 = arith.subf %370, %373 : vector<16x16xf32>
    %cst_326 = arith.constant 0.000000e+00 : f32
    %375 = vector.broadcast %cst_326 : f32 to vector<16x16xf32>
    %376 = arith.maximumf %374, %375 : vector<16x16xf32>
    %377 = arith.addf %282, %376 : vector<16x16xf32>
    %cst_327 = arith.constant 9.99999993E-9 : f32
    %378 = vector.broadcast %cst_327 : f32 to vector<16x16xf32>
    %379 = arith.addf %322, %378 : vector<16x16xf32>
    %380 = tpu.reciprocal %379 {approx = true} : vector<16x16xf32> -> vector<16x16xf32>
    %381 = arith.mulf %377, %380 : vector<16x16xf32>
    %c0_328 = arith.constant 0 : index
    %c0_329 = arith.constant 0 : index
    %c0_330 = arith.constant 0 : index
    %382 = vector.load %arg5[%c0_328, %c0_329, %c0_330] : memref<1x16x16xf32, #tpu.memory_space<vmem>>, vector<1x16x16xf32>
    %383 = vector.shape_cast %382 : vector<1x16x16xf32> to vector<16x16xf32>
    %384 = vector.shape_cast %381 : vector<16x16xf32> to vector<1x16x16xf32>
    tpu.vector_store %arg5[%c0_328, %c0_329, %c0_330], %384 {strides = array<i32>} : memref<1x16x16xf32, #tpu.memory_space<vmem>>, vector<1x16x16xf32>,
    return
  }
  func.func @transform_0(%arg0: i32, %arg1: i32, %arg2: memref<4x4xf32, #tpu.memory_space<smem>>) -> (i32, i32, i32, i32, i32) {
    %c0_i32 = arith.constant 0 : i32
    %c0_i32_0 = arith.constant 0 : i32
    %c0_i32_1 = arith.constant 0 : i32
    %c0_i32_2 = arith.constant 0 : i32
    return %arg0, %c0_i32, %c0_i32_0, %arg1, %c0_i32_1 : i32, i32, i32, i32, i32
  }
  func.func @transform_1(%arg0: i32, %arg1: i32, %arg2: memref<4x4xf32, #tpu.memory_space<smem>>) -> (i32, i32, i32, i32, i32) {
    %c0_i32 = arith.constant 0 : i32
    %c0_i32_0 = arith.constant 0 : i32
    %c0_i32_1 = arith.constant 0 : i32
    %c0_i32_2 = arith.constant 0 : i32
    return %arg0, %c0_i32, %c0_i32_0, %arg1, %c0_i32_1 : i32, i32, i32, i32, i32
  }
  func.func @transform_2(%arg0: i32, %arg1: i32, %arg2: memref<4x4xf32, #tpu.memory_space<smem>>) -> (i32, i32, i32) {
    %c0_i32 = arith.constant 0 : i32
    %c0_i32_0 = arith.constant 0 : i32
    return %arg0, %arg1, %c0_i32 : i32, i32, i32
  }
}

module attributes {stable_mosaic.version = 11 : i64} {
  func.func @fsim_kernel(%arg0: i32, %arg1: i32, %arg2: memref<1x3x16x16xf32, #tpu.memory_space<vmem>>, %arg3: memref<1x3x16x16xf32, #tpu.memory_space<vmem>>, %arg4: memref<1x1x8x16xf32, #tpu.memory_space<vmem>>, %arg5: memref<1x16x16xf32, #tpu.memory_space<vmem>>, %arg6: memref<1x16x16xf32, #tpu.memory_space<vmem>>, %arg7: memref<1x1x8x128xf32, #tpu.memory_space<vmem>>, %arg8: memref<1x1x8x128xf32, #tpu.memory_space<vmem>>) attributes {dimension_semantics = [#tpu.dimension_semantics<parallel>, #tpu.dimension_semantics<parallel>], iteration_bounds = array<i64: 2, 1>, scalar_prefetch = 0 : i64, scratch_operands = 0 : i64, tpu.core_type = #tpu.core_type<tc>, window_params = [{transform_indices = @transform_0, window_bounds = array<i64: 1, 3, 16, 16>}, {transform_indices = @transform_1, window_bounds = array<i64: 1, 3, 16, 16>}, {transform_indices = @transform_2, window_bounds = array<i64: 1, 1, 8, 16>}, {transform_indices = @transform_3, window_bounds = array<i64: 1, 16, 16>}, {transform_indices = @transform_4, window_bounds = array<i64: 1, 16, 16>}, {transform_indices = @transform_5, window_bounds = array<i64: 1, 1, 8, 128>}, {transform_indices = @transform_6, window_bounds = array<i64: 1, 1, 8, 128>}]} {
    %0 = tpu.iota {dimensions = array<i32: 0>} : vector<16x16xi32>
    %1 = tpu.iota {dimensions = array<i32: 1>} : vector<16x16xi32>
    %c16_i32 = arith.constant 16 : i32
    %2 = arith.muli %arg1, %c16_i32 : i32
    %3 = vector.broadcast %2 : i32 to vector<16x16xi32>
    %4 = arith.addi %0, %3 : vector<16x16xi32>
    %c16_i32_0 = arith.constant 16 : i32
    %5 = vector.broadcast %c16_i32_0 : i32 to vector<16x16xi32>
    %6 = arith.cmpi slt, %4, %5 : vector<16x16xi32>
    %c0_i32 = arith.constant 0 : i32
    %7 = vector.broadcast %c0_i32 : i32 to vector<16x16xi32>
    %8 = arith.cmpi sgt, %4, %7 : vector<16x16xi32>
    %c15_i32 = arith.constant 15 : i32
    %9 = vector.broadcast %c15_i32 : i32 to vector<16x16xi32>
    %10 = arith.cmpi slt, %4, %9 : vector<16x16xi32>
    %c0_i32_1 = arith.constant 0 : i32
    %11 = vector.broadcast %c0_i32_1 : i32 to vector<16x16xi32>
    %12 = arith.cmpi sgt, %1, %11 : vector<16x16xi32>
    %c15_i32_2 = arith.constant 15 : i32
    %13 = vector.broadcast %c15_i32_2 : i32 to vector<16x16xi32>
    %14 = arith.cmpi slt, %1, %13 : vector<16x16xi32>
    %c0 = arith.constant 0 : index
    %c0_3 = arith.constant 0 : index
    %c0_4 = arith.constant 0 : index
    %c0_5 = arith.constant 0 : index
    %15 = vector.load %arg4[%c0, %c0_3, %c0_4, %c0_5] : memref<1x1x8x16xf32, #tpu.memory_space<vmem>>, vector<1x1x8x16xf32>
    %16 = vector.shape_cast %15 : vector<1x1x8x16xf32> to vector<8x16xf32>
    %c0_6 = arith.constant 0 : index
    %c0_7 = arith.constant 0 : index
    %c0_8 = arith.constant 0 : index
    %c0_9 = arith.constant 0 : index
    %17 = vector.load %arg2[%c0_6, %c0_7, %c0_8, %c0_9] : memref<1x3x16x16xf32, #tpu.memory_space<vmem>>, vector<1x1x16x16xf32>
    %18 = vector.shape_cast %17 : vector<1x1x16x16xf32> to vector<16x16xf32>
    %19 = vector.extract_strided_slice %16 {offsets = [0, 0], sizes = [1, 16], strides = [1, 1]} : vector<8x16xf32> to vector<1x16xf32>
    %20 = vector.extract_strided_slice %16 {offsets = [1, 0], sizes = [1, 16], strides = [1, 1]} : vector<8x16xf32> to vector<1x16xf32>
    %21 = vector.extract_strided_slice %16 {offsets = [4, 0], sizes = [1, 16], strides = [1, 1]} : vector<8x16xf32> to vector<1x16xf32>
    %22 = vector.extract_strided_slice %16 {offsets = [5, 0], sizes = [1, 16], strides = [1, 1]} : vector<8x16xf32> to vector<1x16xf32>
    %c1_i32 = arith.constant 1 : i32
    %23 = tpu.dynamic_rotate %18 by %c1_i32 dim 0 : vector<16x16xf32>, i32 -> vector<16x16xf32>
    %c0_i32_10 = arith.constant 0 : i32
    %24 = vector.broadcast %c0_i32_10 : i32 to vector<16x16xi32>
    %25 = arith.cmpi eq, %0, %24 : vector<16x16xi32>
    %26 = vector.shape_cast %19 : vector<1x16xf32> to vector<1x16xf32>
    %27 = vector.broadcast %26 : vector<1x16xf32> to vector<16x16xf32>
    %28 = arith.select %25, %27, %23 : vector<16x16xi1>, vector<16x16xf32>
    %cst = arith.constant 0.000000e+00 : f32
    %29 = vector.broadcast %cst : f32 to vector<16x16xf32>
    %30 = arith.select %8, %28, %29 : vector<16x16xi1>, vector<16x16xf32>
    %c15_i32_11 = arith.constant 15 : i32
    %31 = tpu.dynamic_rotate %18 by %c15_i32_11 dim 0 : vector<16x16xf32>, i32 -> vector<16x16xf32>
    %c15_i32_12 = arith.constant 15 : i32
    %32 = vector.broadcast %c15_i32_12 : i32 to vector<16x16xi32>
    %33 = arith.cmpi eq, %0, %32 : vector<16x16xi32>
    %34 = vector.shape_cast %20 : vector<1x16xf32> to vector<1x16xf32>
    %35 = vector.broadcast %34 : vector<1x16xf32> to vector<16x16xf32>
    %36 = arith.select %33, %35, %31 : vector<16x16xi1>, vector<16x16xf32>
    %cst_13 = arith.constant 0.000000e+00 : f32
    %37 = vector.broadcast %cst_13 : f32 to vector<16x16xf32>
    %38 = arith.select %10, %36, %37 : vector<16x16xi1>, vector<16x16xf32>
    %39 = arith.addf %30, %38 : vector<16x16xf32>
    %cst_14 = arith.constant 1.875000e-01 : f32
    %40 = vector.broadcast %cst_14 : f32 to vector<16x16xf32>
    %41 = arith.mulf %40, %39 : vector<16x16xf32>
    %cst_15 = arith.constant 6.250000e-01 : f32
    %42 = vector.broadcast %cst_15 : f32 to vector<16x16xf32>
    %43 = arith.mulf %42, %18 : vector<16x16xf32>
    %44 = arith.addf %41, %43 : vector<16x16xf32>
    %c15_i32_16 = arith.constant 15 : i32
    %45 = tpu.dynamic_rotate %44 by %c15_i32_16 dim 1 : vector<16x16xf32>, i32 -> vector<16x16xf32>
    %cst_17 = arith.constant 0.000000e+00 : f32
    %46 = vector.broadcast %cst_17 : f32 to vector<16x16xf32>
    %47 = arith.select %14, %45, %46 : vector<16x16xi1>, vector<16x16xf32>
    %c1_i32_18 = arith.constant 1 : i32
    %48 = tpu.dynamic_rotate %44 by %c1_i32_18 dim 1 : vector<16x16xf32>, i32 -> vector<16x16xf32>
    %cst_19 = arith.constant 0.000000e+00 : f32
    %49 = vector.broadcast %cst_19 : f32 to vector<16x16xf32>
    %50 = arith.select %12, %48, %49 : vector<16x16xi1>, vector<16x16xf32>
    %51 = arith.subf %47, %50 : vector<16x16xf32>
    %c1_i32_20 = arith.constant 1 : i32
    %52 = tpu.dynamic_rotate %18 by %c1_i32_20 dim 1 : vector<16x16xf32>, i32 -> vector<16x16xf32>
    %cst_21 = arith.constant 0.000000e+00 : f32
    %53 = vector.broadcast %cst_21 : f32 to vector<16x16xf32>
    %54 = arith.select %12, %52, %53 : vector<16x16xi1>, vector<16x16xf32>
    %c15_i32_22 = arith.constant 15 : i32
    %55 = tpu.dynamic_rotate %18 by %c15_i32_22 dim 1 : vector<16x16xf32>, i32 -> vector<16x16xf32>
    %cst_23 = arith.constant 0.000000e+00 : f32
    %56 = vector.broadcast %cst_23 : f32 to vector<16x16xf32>
    %57 = arith.select %14, %55, %56 : vector<16x16xi1>, vector<16x16xf32>
    %58 = arith.addf %54, %57 : vector<16x16xf32>
    %cst_24 = arith.constant 1.875000e-01 : f32
    %59 = vector.broadcast %cst_24 : f32 to vector<16x16xf32>
    %60 = arith.mulf %59, %58 : vector<16x16xf32>
    %cst_25 = arith.constant 6.250000e-01 : f32
    %61 = vector.broadcast %cst_25 : f32 to vector<16x16xf32>
    %62 = arith.mulf %61, %18 : vector<16x16xf32>
    %63 = arith.addf %60, %62 : vector<16x16xf32>
    %c15_i32_26 = arith.constant 15 : i32
    %64 = tpu.dynamic_rotate %63 by %c15_i32_26 dim 0 : vector<16x16xf32>, i32 -> vector<16x16xf32>
    %c15_i32_27 = arith.constant 15 : i32
    %65 = vector.broadcast %c15_i32_27 : i32 to vector<16x16xi32>
    %66 = arith.cmpi eq, %0, %65 : vector<16x16xi32>
    %67 = vector.shape_cast %22 : vector<1x16xf32> to vector<1x16xf32>
    %68 = vector.broadcast %67 : vector<1x16xf32> to vector<16x16xf32>
    %69 = arith.select %66, %68, %64 : vector<16x16xi1>, vector<16x16xf32>
    %cst_28 = arith.constant 0.000000e+00 : f32
    %70 = vector.broadcast %cst_28 : f32 to vector<16x16xf32>
    %71 = arith.select %10, %69, %70 : vector<16x16xi1>, vector<16x16xf32>
    %c1_i32_29 = arith.constant 1 : i32
    %72 = tpu.dynamic_rotate %63 by %c1_i32_29 dim 0 : vector<16x16xf32>, i32 -> vector<16x16xf32>
    %c0_i32_30 = arith.constant 0 : i32
    %73 = vector.broadcast %c0_i32_30 : i32 to vector<16x16xi32>
    %74 = arith.cmpi eq, %0, %73 : vector<16x16xi32>
    %75 = vector.shape_cast %21 : vector<1x16xf32> to vector<1x16xf32>
    %76 = vector.broadcast %75 : vector<1x16xf32> to vector<16x16xf32>
    %77 = arith.select %74, %76, %72 : vector<16x16xi1>, vector<16x16xf32>
    %cst_31 = arith.constant 0.000000e+00 : f32
    %78 = vector.broadcast %cst_31 : f32 to vector<16x16xf32>
    %79 = arith.select %8, %77, %78 : vector<16x16xi1>, vector<16x16xf32>
    %80 = arith.subf %71, %79 : vector<16x16xf32>
    %81 = arith.mulf %51, %51 : vector<16x16xf32>
    %82 = arith.mulf %80, %80 : vector<16x16xf32>
    %83 = arith.addf %81, %82 : vector<16x16xf32>
    %84 = math.sqrt %83 : vector<16x16xf32>
    %c0_32 = arith.constant 0 : index
    %c0_33 = arith.constant 0 : index
    %c0_34 = arith.constant 0 : index
    %c0_35 = arith.constant 0 : index
    %85 = vector.load %arg3[%c0_32, %c0_33, %c0_34, %c0_35] : memref<1x3x16x16xf32, #tpu.memory_space<vmem>>, vector<1x1x16x16xf32>
    %86 = vector.shape_cast %85 : vector<1x1x16x16xf32> to vector<16x16xf32>
    %87 = vector.extract_strided_slice %16 {offsets = [2, 0], sizes = [1, 16], strides = [1, 1]} : vector<8x16xf32> to vector<1x16xf32>
    %88 = vector.extract_strided_slice %16 {offsets = [3, 0], sizes = [1, 16], strides = [1, 1]} : vector<8x16xf32> to vector<1x16xf32>
    %89 = vector.extract_strided_slice %16 {offsets = [6, 0], sizes = [1, 16], strides = [1, 1]} : vector<8x16xf32> to vector<1x16xf32>
    %90 = vector.extract_strided_slice %16 {offsets = [7, 0], sizes = [1, 16], strides = [1, 1]} : vector<8x16xf32> to vector<1x16xf32>
    %c1_i32_36 = arith.constant 1 : i32
    %91 = tpu.dynamic_rotate %86 by %c1_i32_36 dim 0 : vector<16x16xf32>, i32 -> vector<16x16xf32>
    %c0_i32_37 = arith.constant 0 : i32
    %92 = vector.broadcast %c0_i32_37 : i32 to vector<16x16xi32>
    %93 = arith.cmpi eq, %0, %92 : vector<16x16xi32>
    %94 = vector.shape_cast %87 : vector<1x16xf32> to vector<1x16xf32>
    %95 = vector.broadcast %94 : vector<1x16xf32> to vector<16x16xf32>
    %96 = arith.select %93, %95, %91 : vector<16x16xi1>, vector<16x16xf32>
    %cst_38 = arith.constant 0.000000e+00 : f32
    %97 = vector.broadcast %cst_38 : f32 to vector<16x16xf32>
    %98 = arith.select %8, %96, %97 : vector<16x16xi1>, vector<16x16xf32>
    %c15_i32_39 = arith.constant 15 : i32
    %99 = tpu.dynamic_rotate %86 by %c15_i32_39 dim 0 : vector<16x16xf32>, i32 -> vector<16x16xf32>
    %c15_i32_40 = arith.constant 15 : i32
    %100 = vector.broadcast %c15_i32_40 : i32 to vector<16x16xi32>
    %101 = arith.cmpi eq, %0, %100 : vector<16x16xi32>
    %102 = vector.shape_cast %88 : vector<1x16xf32> to vector<1x16xf32>
    %103 = vector.broadcast %102 : vector<1x16xf32> to vector<16x16xf32>
    %104 = arith.select %101, %103, %99 : vector<16x16xi1>, vector<16x16xf32>
    %cst_41 = arith.constant 0.000000e+00 : f32
    %105 = vector.broadcast %cst_41 : f32 to vector<16x16xf32>
    %106 = arith.select %10, %104, %105 : vector<16x16xi1>, vector<16x16xf32>
    %107 = arith.addf %98, %106 : vector<16x16xf32>
    %cst_42 = arith.constant 1.875000e-01 : f32
    %108 = vector.broadcast %cst_42 : f32 to vector<16x16xf32>
    %109 = arith.mulf %108, %107 : vector<16x16xf32>
    %cst_43 = arith.constant 6.250000e-01 : f32
    %110 = vector.broadcast %cst_43 : f32 to vector<16x16xf32>
    %111 = arith.mulf %110, %86 : vector<16x16xf32>
    %112 = arith.addf %109, %111 : vector<16x16xf32>
    %c15_i32_44 = arith.constant 15 : i32
    %113 = tpu.dynamic_rotate %112 by %c15_i32_44 dim 1 : vector<16x16xf32>, i32 -> vector<16x16xf32>
    %cst_45 = arith.constant 0.000000e+00 : f32
    %114 = vector.broadcast %cst_45 : f32 to vector<16x16xf32>
    %115 = arith.select %14, %113, %114 : vector<16x16xi1>, vector<16x16xf32>
    %c1_i32_46 = arith.constant 1 : i32
    %116 = tpu.dynamic_rotate %112 by %c1_i32_46 dim 1 : vector<16x16xf32>, i32 -> vector<16x16xf32>
    %cst_47 = arith.constant 0.000000e+00 : f32
    %117 = vector.broadcast %cst_47 : f32 to vector<16x16xf32>
    %118 = arith.select %12, %116, %117 : vector<16x16xi1>, vector<16x16xf32>
    %119 = arith.subf %115, %118 : vector<16x16xf32>
    %c1_i32_48 = arith.constant 1 : i32
    %120 = tpu.dynamic_rotate %86 by %c1_i32_48 dim 1 : vector<16x16xf32>, i32 -> vector<16x16xf32>
    %cst_49 = arith.constant 0.000000e+00 : f32
    %121 = vector.broadcast %cst_49 : f32 to vector<16x16xf32>
    %122 = arith.select %12, %120, %121 : vector<16x16xi1>, vector<16x16xf32>
    %c15_i32_50 = arith.constant 15 : i32
    %123 = tpu.dynamic_rotate %86 by %c15_i32_50 dim 1 : vector<16x16xf32>, i32 -> vector<16x16xf32>
    %cst_51 = arith.constant 0.000000e+00 : f32
    %124 = vector.broadcast %cst_51 : f32 to vector<16x16xf32>
    %125 = arith.select %14, %123, %124 : vector<16x16xi1>, vector<16x16xf32>
    %126 = arith.addf %122, %125 : vector<16x16xf32>
    %cst_52 = arith.constant 1.875000e-01 : f32
    %127 = vector.broadcast %cst_52 : f32 to vector<16x16xf32>
    %128 = arith.mulf %127, %126 : vector<16x16xf32>
    %cst_53 = arith.constant 6.250000e-01 : f32
    %129 = vector.broadcast %cst_53 : f32 to vector<16x16xf32>
    %130 = arith.mulf %129, %86 : vector<16x16xf32>
    %131 = arith.addf %128, %130 : vector<16x16xf32>
    %c15_i32_54 = arith.constant 15 : i32
    %132 = tpu.dynamic_rotate %131 by %c15_i32_54 dim 0 : vector<16x16xf32>, i32 -> vector<16x16xf32>
    %c15_i32_55 = arith.constant 15 : i32
    %133 = vector.broadcast %c15_i32_55 : i32 to vector<16x16xi32>
    %134 = arith.cmpi eq, %0, %133 : vector<16x16xi32>
    %135 = vector.shape_cast %90 : vector<1x16xf32> to vector<1x16xf32>
    %136 = vector.broadcast %135 : vector<1x16xf32> to vector<16x16xf32>
    %137 = arith.select %134, %136, %132 : vector<16x16xi1>, vector<16x16xf32>
    %cst_56 = arith.constant 0.000000e+00 : f32
    %138 = vector.broadcast %cst_56 : f32 to vector<16x16xf32>
    %139 = arith.select %10, %137, %138 : vector<16x16xi1>, vector<16x16xf32>
    %c1_i32_57 = arith.constant 1 : i32
    %140 = tpu.dynamic_rotate %131 by %c1_i32_57 dim 0 : vector<16x16xf32>, i32 -> vector<16x16xf32>
    %c0_i32_58 = arith.constant 0 : i32
    %141 = vector.broadcast %c0_i32_58 : i32 to vector<16x16xi32>
    %142 = arith.cmpi eq, %0, %141 : vector<16x16xi32>
    %143 = vector.shape_cast %89 : vector<1x16xf32> to vector<1x16xf32>
    %144 = vector.broadcast %143 : vector<1x16xf32> to vector<16x16xf32>
    %145 = arith.select %142, %144, %140 : vector<16x16xi1>, vector<16x16xf32>
    %cst_59 = arith.constant 0.000000e+00 : f32
    %146 = vector.broadcast %cst_59 : f32 to vector<16x16xf32>
    %147 = arith.select %8, %145, %146 : vector<16x16xi1>, vector<16x16xf32>
    %148 = arith.subf %139, %147 : vector<16x16xf32>
    %149 = arith.mulf %119, %119 : vector<16x16xf32>
    %150 = arith.mulf %148, %148 : vector<16x16xf32>
    %151 = arith.addf %149, %150 : vector<16x16xf32>
    %152 = math.sqrt %151 : vector<16x16xf32>
    %c0_60 = arith.constant 0 : index
    %c0_61 = arith.constant 0 : index
    %c0_62 = arith.constant 0 : index
    %153 = vector.load %arg5[%c0_60, %c0_61, %c0_62] : memref<1x16x16xf32, #tpu.memory_space<vmem>>, vector<1x16x16xf32>
    %154 = vector.shape_cast %153 : vector<1x16x16xf32> to vector<16x16xf32>
    %c0_63 = arith.constant 0 : index
    %c0_64 = arith.constant 0 : index
    %c0_65 = arith.constant 0 : index
    %155 = vector.load %arg6[%c0_63, %c0_64, %c0_65] : memref<1x16x16xf32, #tpu.memory_space<vmem>>, vector<1x16x16xf32>
    %156 = vector.shape_cast %155 : vector<1x16x16xf32> to vector<16x16xf32>
    %157 = arith.maximumf %154, %156 : vector<16x16xf32>
    %cst_66 = arith.constant 2.000000e+00 : f32
    %158 = vector.broadcast %cst_66 : f32 to vector<16x16xf32>
    %159 = arith.mulf %158, %154 : vector<16x16xf32>
    %160 = arith.mulf %159, %156 : vector<16x16xf32>
    %cst_67 = arith.constant 8.500000e-01 : f32
    %161 = vector.broadcast %cst_67 : f32 to vector<16x16xf32>
    %162 = arith.addf %160, %161 : vector<16x16xf32>
    %cst_68 = arith.constant 2.000000e+00 : f32
    %163 = vector.broadcast %cst_68 : f32 to vector<16x16xf32>
    %164 = arith.mulf %163, %84 : vector<16x16xf32>
    %165 = arith.mulf %164, %152 : vector<16x16xf32>
    %cst_69 = arith.constant 0.00246059219 : f32
    %166 = vector.broadcast %cst_69 : f32 to vector<16x16xf32>
    %167 = arith.addf %165, %166 : vector<16x16xf32>
    %168 = arith.mulf %162, %167 : vector<16x16xf32>
    %169 = arith.mulf %154, %154 : vector<16x16xf32>
    %170 = arith.mulf %156, %156 : vector<16x16xf32>
    %171 = arith.addf %169, %170 : vector<16x16xf32>
    %cst_70 = arith.constant 8.500000e-01 : f32
    %172 = vector.broadcast %cst_70 : f32 to vector<16x16xf32>
    %173 = arith.addf %171, %172 : vector<16x16xf32>
    %174 = arith.mulf %84, %84 : vector<16x16xf32>
    %175 = arith.mulf %152, %152 : vector<16x16xf32>
    %176 = arith.addf %174, %175 : vector<16x16xf32>
    %cst_71 = arith.constant 0.00246059219 : f32
    %177 = vector.broadcast %cst_71 : f32 to vector<16x16xf32>
    %178 = arith.addf %176, %177 : vector<16x16xf32>
    %179 = arith.mulf %173, %178 : vector<16x16xf32>
    %180 = arith.divf %168, %179 : vector<16x16xf32>
    %c0_72 = arith.constant 0 : index
    %c1 = arith.constant 1 : index
    %c0_73 = arith.constant 0 : index
    %c0_74 = arith.constant 0 : index
    %181 = vector.load %arg2[%c0_72, %c1, %c0_73, %c0_74] : memref<1x3x16x16xf32, #tpu.memory_space<vmem>>, vector<1x1x16x16xf32>
    %182 = vector.shape_cast %181 : vector<1x1x16x16xf32> to vector<16x16xf32>
    %c0_75 = arith.constant 0 : index
    %c2 = arith.constant 2 : index
    %c0_76 = arith.constant 0 : index
    %c0_77 = arith.constant 0 : index
    %183 = vector.load %arg2[%c0_75, %c2, %c0_76, %c0_77] : memref<1x3x16x16xf32, #tpu.memory_space<vmem>>, vector<1x1x16x16xf32>
    %184 = vector.shape_cast %183 : vector<1x1x16x16xf32> to vector<16x16xf32>
    %c0_78 = arith.constant 0 : index
    %c1_79 = arith.constant 1 : index
    %c0_80 = arith.constant 0 : index
    %c0_81 = arith.constant 0 : index
    %185 = vector.load %arg3[%c0_78, %c1_79, %c0_80, %c0_81] : memref<1x3x16x16xf32, #tpu.memory_space<vmem>>, vector<1x1x16x16xf32>
    %186 = vector.shape_cast %185 : vector<1x1x16x16xf32> to vector<16x16xf32>
    %c0_82 = arith.constant 0 : index
    %c2_83 = arith.constant 2 : index
    %c0_84 = arith.constant 0 : index
    %c0_85 = arith.constant 0 : index
    %187 = vector.load %arg3[%c0_82, %c2_83, %c0_84, %c0_85] : memref<1x3x16x16xf32, #tpu.memory_space<vmem>>, vector<1x1x16x16xf32>
    %188 = vector.shape_cast %187 : vector<1x1x16x16xf32> to vector<16x16xf32>
    %cst_86 = arith.constant 2.000000e+00 : f32
    %189 = vector.broadcast %cst_86 : f32 to vector<16x16xf32>
    %190 = arith.mulf %189, %182 : vector<16x16xf32>
    %191 = arith.mulf %190, %186 : vector<16x16xf32>
    %cst_87 = arith.constant 3.075740e-03 : f32
    %192 = vector.broadcast %cst_87 : f32 to vector<16x16xf32>
    %193 = arith.addf %191, %192 : vector<16x16xf32>
    %cst_88 = arith.constant 2.000000e+00 : f32
    %194 = vector.broadcast %cst_88 : f32 to vector<16x16xf32>
    %195 = arith.mulf %194, %184 : vector<16x16xf32>
    %196 = arith.mulf %195, %188 : vector<16x16xf32>
    %cst_89 = arith.constant 3.075740e-03 : f32
    %197 = vector.broadcast %cst_89 : f32 to vector<16x16xf32>
    %198 = arith.addf %196, %197 : vector<16x16xf32>
    %199 = arith.mulf %193, %198 : vector<16x16xf32>
    %200 = arith.mulf %182, %182 : vector<16x16xf32>
    %201 = arith.mulf %186, %186 : vector<16x16xf32>
    %202 = arith.addf %200, %201 : vector<16x16xf32>
    %cst_90 = arith.constant 3.075740e-03 : f32
    %203 = vector.broadcast %cst_90 : f32 to vector<16x16xf32>
    %204 = arith.addf %202, %203 : vector<16x16xf32>
    %205 = arith.mulf %184, %184 : vector<16x16xf32>
    %206 = arith.mulf %188, %188 : vector<16x16xf32>
    %207 = arith.addf %205, %206 : vector<16x16xf32>
    %cst_91 = arith.constant 3.075740e-03 : f32
    %208 = vector.broadcast %cst_91 : f32 to vector<16x16xf32>
    %209 = arith.addf %207, %208 : vector<16x16xf32>
    %210 = arith.mulf %204, %209 : vector<16x16xf32>
    %211 = arith.divf %199, %210 : vector<16x16xf32>
    %212 = math.absf %211 : vector<16x16xf32>
    %cst_92 = arith.constant 1.000000e-30 : f32
    %213 = vector.broadcast %cst_92 : f32 to vector<16x16xf32>
    %214 = arith.maximumf %212, %213 : vector<16x16xf32>
    %215 = math.log %214 : vector<16x16xf32>
    %cst_93 = arith.constant 3.000000e-02 : f32
    %216 = vector.broadcast %cst_93 : f32 to vector<16x16xf32>
    %217 = arith.mulf %216, %215 : vector<16x16xf32>
    %218 = math.exp %217 : vector<16x16xf32>
    %219 = arith.mulf %180, %218 : vector<16x16xf32>
    %cst_94 = arith.constant 0.000000e+00 : f32
    %220 = vector.broadcast %cst_94 : f32 to vector<16x16xf32>
    %221 = arith.cmpf olt, %211, %220 : vector<16x16xf32>
    %cst_95 = arith.constant 0.995561957 : f32
    %cst_96 = arith.constant 1.000000e+00 : f32
    %222 = vector.broadcast %cst_95 : f32 to vector<16x16xf32>
    %223 = vector.broadcast %cst_96 : f32 to vector<16x16xf32>
    %224 = arith.select %221, %222, %223 : vector<16x16xi1>, vector<16x16xf32>
    %225 = arith.mulf %219, %224 : vector<16x16xf32>
    %226 = arith.mulf %225, %157 : vector<16x16xf32>
    %cst_97 = arith.constant 0.000000e+00 : f32
    %227 = vector.broadcast %cst_97 : f32 to vector<16x16xf32>
    %228 = arith.select %6, %226, %227 : vector<16x16xi1>, vector<16x16xf32>
    %229 = vector.shape_cast %228 : vector<16x16xf32> to vector<1x16x16xf32>
    %cst_98 = arith.constant dense<0.000000e+00> : vector<1xf32>
    %230 = vector.multi_reduction <add>, %229, %cst_98 [1, 2] : vector<1x16x16xf32> to vector<1xf32>
    %231 = vector.shape_cast %230 : vector<1xf32> to vector<1x1x1xf32>
    %232 = vector.extract %231[0, 0, 0] : f32 from vector<1x1x1xf32>
    %cst_99 = arith.constant 0.000000e+00 : f32
    %233 = vector.broadcast %cst_99 : f32 to vector<16x16xf32>
    %234 = arith.select %6, %157, %233 : vector<16x16xi1>, vector<16x16xf32>
    %235 = vector.shape_cast %234 : vector<16x16xf32> to vector<1x16x16xf32>
    %cst_100 = arith.constant dense<0.000000e+00> : vector<1xf32>
    %236 = vector.multi_reduction <add>, %235, %cst_100 [1, 2] : vector<1x16x16xf32> to vector<1xf32>
    %237 = vector.shape_cast %236 : vector<1xf32> to vector<1x1x1xf32>
    %238 = vector.extract %237[0, 0, 0] : f32 from vector<1x1x1xf32>
    %239 = vector.broadcast %232 : f32 to vector<1x1x8x128xf32>
    %c0_101 = arith.constant 0 : index
    %c0_102 = arith.constant 0 : index
    %c0_103 = arith.constant 0 : index
    %c0_104 = arith.constant 0 : index
    %240 = vector.load %arg7[%c0_101, %c0_102, %c0_103, %c0_104] : memref<1x1x8x128xf32, #tpu.memory_space<vmem>>, vector<1x1x8x128xf32>
    tpu.vector_store %arg7[%c0_101, %c0_102, %c0_103, %c0_104], %239 {strides = array<i32>} : memref<1x1x8x128xf32, #tpu.memory_space<vmem>>, vector<1x1x8x128xf32>,
    %241 = vector.broadcast %238 : f32 to vector<1x1x8x128xf32>
    %c0_105 = arith.constant 0 : index
    %c0_106 = arith.constant 0 : index
    %c0_107 = arith.constant 0 : index
    %c0_108 = arith.constant 0 : index
    %242 = vector.load %arg8[%c0_105, %c0_106, %c0_107, %c0_108] : memref<1x1x8x128xf32, #tpu.memory_space<vmem>>, vector<1x1x8x128xf32>
    tpu.vector_store %arg8[%c0_105, %c0_106, %c0_107, %c0_108], %241 {strides = array<i32>} : memref<1x1x8x128xf32, #tpu.memory_space<vmem>>, vector<1x1x8x128xf32>,
    return
  }
  func.func @transform_0(%arg0: i32, %arg1: i32) -> (i32, i32, i32, i32) {
    %c0_i32 = arith.constant 0 : i32
    %c0_i32_0 = arith.constant 0 : i32
    %c0_i32_1 = arith.constant 0 : i32
    return %arg0, %c0_i32, %arg1, %c0_i32_0 : i32, i32, i32, i32
  }
  func.func @transform_1(%arg0: i32, %arg1: i32) -> (i32, i32, i32, i32) {
    %c0_i32 = arith.constant 0 : i32
    %c0_i32_0 = arith.constant 0 : i32
    %c0_i32_1 = arith.constant 0 : i32
    return %arg0, %c0_i32, %arg1, %c0_i32_0 : i32, i32, i32, i32
  }
  func.func @transform_2(%arg0: i32, %arg1: i32) -> (i32, i32, i32, i32) {
    %c0_i32 = arith.constant 0 : i32
    %c0_i32_0 = arith.constant 0 : i32
    %c0_i32_1 = arith.constant 0 : i32
    return %arg0, %arg1, %c0_i32, %c0_i32_0 : i32, i32, i32, i32
  }
  func.func @transform_3(%arg0: i32, %arg1: i32) -> (i32, i32, i32) {
    %c0_i32 = arith.constant 0 : i32
    %c0_i32_0 = arith.constant 0 : i32
    return %arg0, %arg1, %c0_i32 : i32, i32, i32
  }
  func.func @transform_4(%arg0: i32, %arg1: i32) -> (i32, i32, i32) {
    %c0_i32 = arith.constant 0 : i32
    %c0_i32_0 = arith.constant 0 : i32
    return %arg0, %arg1, %c0_i32 : i32, i32, i32
  }
  func.func @transform_5(%arg0: i32, %arg1: i32) -> (i32, i32, i32, i32) {
    %c0_i32 = arith.constant 0 : i32
    %c0_i32_0 = arith.constant 0 : i32
    %c0_i32_1 = arith.constant 0 : i32
    return %arg0, %arg1, %c0_i32, %c0_i32_0 : i32, i32, i32, i32
  }
  func.func @transform_6(%arg0: i32, %arg1: i32) -> (i32, i32, i32, i32) {
    %c0_i32 = arith.constant 0 : i32
    %c0_i32_0 = arith.constant 0 : i32
    %c0_i32_1 = arith.constant 0 : i32
    return %arg0, %arg1, %c0_i32, %c0_i32_0 : i32, i32, i32, i32
  }
}

</mosaic_0001>

<llo_original>
// kernel: fsim_forward.2
$region0: #{fsim_forward.2}
  #allocation0 [shape = 'u32[]', space=smem, size = 0x4, offset = 0x4, fixed_abs, tag = 'smem constant byte address 0x4 - core index']
  #allocation1 [shape = 'u32[144,128]{1,0:T(1,128)}', space=vmem, size = 0x12000, scoped, tag = 'internal scratch']
  #allocation2 [shape = 's32[1]{0}', space=sflag, size = 0x4, scoped, tag = 'scoped memory for fsim_forward.2']
  #allocation3 [shape = 'u8[2048]{0}', space=smem, size = 0x800, scoped, tag = 'prefetched SMEM operand 0']
  %s0 = inlined_call_operand.vmem [shape: f32[4,4], index: 0, kind: input, shape index: {}]
  %s1 = inlined_call_operand.vmem [shape: f32[4,4,4,16,16], index: 1, kind: input, shape index: {}]
  %s2 = inlined_call_operand.vmem [shape: f32[4,4,4,16,16], index: 2, kind: input, shape index: {}]
  %s3 = inlined_call_operand.vmem [shape: f32[4,16,16], index: 3, kind: output, shape index: {}]
  %s4 = sld [smem:[#allocation0]]
  $region41: #{fsim_forward.2} parent=0
    _
  %s6 = ssub.s32 1, %s4
  %s7 = scalar_select 0, %s6, %s4
  %s8 = sshll.u32 %s0, 4
  %s9 = int_to_ptr.vmem [resolvable:$true] %s8
  %11 = dma.vmem_to_smem %s9, 64, [#allocation3], [#allocation2]
  %12 = dma.done [#allocation2], 64
  %13 = sfence
  loop: start=0, step=1, limit=6
  $region2: #{fsim_forward.2} parent=0 // loop_pre_header
    _
  $region3: #{fsim_forward.2} parent=0 // loop_header
    %s15 = sphi 0, %s19
    %p16 = scmp.ge.s32.totalorder %s15, 6
    %s22 = sphi 0, %s34
    %s23 = sphi 0, %s30
    %s24 = sphi 0, %s22
    %s25 = sphi 0, %s23
    %s26 = sphi 0, %s24
    %s27 = sphi 0, %s25
    %s39 = sphi 0, %s41
    %s42 = sphi 0, %s39
    %s43 = sphi 0, %s42
    %s59 = sphi 0, %s43
    %s67 = sphi 0, %s69
    %s70 = sphi 0, %s67
    %s71 = sphi 0, %s70
    %s87 = sphi 0, %s71
    %s95 = sphi 0, %s97
    %s98 = sphi 0, %s95
    %s99 = sphi 0, %s98
    %s115 = sphi 0, %s99
  $region4: #{fsim_forward.2} parent=0 // loop_header_branch
    %18 = sbr.rel (%p16) target = $region8
  $region5: #{fsim_forward.2} parent=0 // loop_body
    %s20 = ssub.s32 %s15, 1
    %s21 = ssub.s32 %s15, 2
    %s28 = sadd.s32 1, %s23
    %p29 = scmp.ge.s32.totalorder %s28, 1
    %s30 = scalar_select %p29, 0, %s28
    %s31 = sadd.s32 1, %s22
    %s32 = scalar_select %p29, %s31, %s22
    %p33 = scmp.ge.s32.totalorder %s32, 4
    %s34 = scalar_select %p33, 0, %s32
    %s35 = ssub.s32 %s22, %s34
    %s36 = ssub.s32 %s23, %s30
    %s37 = sor.u32 %s35, %s36
    %p38 = scmp.eq.s32.totalorder %s37, 0
    %s40 = sadd.s32 %s39, 1
    %s41 = scalar_select %p38, %s39, %s40
    %p44 = pneg %p38
    %p45 = scmp.eq.s32.totalorder %s15, 3
    %p46 = por %p44, %p45
    %p47 = scmp.ne.s32.totalorder %s39, %s42
    %p48 = scmp.eq.s32.totalorder %s15, 0
    %p49 = por %p47, %p48
    %p50 = scmp.ne.s32.totalorder %s39, %s42
    %p51 = scmp.eq.s32.totalorder %s20, 3
    %p52 = por %p50, %p51
    %p53 = scmp.ne.s32.totalorder %s42, %s43
    %p54 = scmp.eq.s32.totalorder %s20, 0
    %p55 = por %p53, %p54
    %p56 = scmp.ne.s32.totalorder %s42, %s43
    %p57 = scmp.eq.s32.totalorder %s21, 3
    %p58 = por %p56, %p57
    %p60 = scmp.ne.s32.totalorder %s43, %s59
    %p61 = scmp.eq.s32.totalorder %s21, 0
    %p62 = por %p60, %p61
    %s63 = ssub.s32 %s22, %s34
    %s64 = ssub.s32 %s23, %s30
    %s65 = sor.u32 %s63, %s64
    %p66 = scmp.eq.s32.totalorder %s65, 0
    %s68 = sadd.s32 %s67, 1
    %s69 = scalar_select %p66, %s67, %s68
    %p72 = pneg %p66
    %p73 = scmp.eq.s32.totalorder %s15, 3
    %p74 = por %p72, %p73
    %p75 = scmp.ne.s32.totalorder %s67, %s70
    %p76 = scmp.eq.s32.totalorder %s15, 0
    %p77 = por %p75, %p76
    %p78 = scmp.ne.s32.totalorder %s67, %s70
    %p79 = scmp.eq.s32.totalorder %s20, 3
    %p80 = por %p78, %p79
    %p81 = scmp.ne.s32.totalorder %s70, %s71
    %p82 = scmp.eq.s32.totalorder %s20, 0
    %p83 = por %p81, %p82
    %p84 = scmp.ne.s32.totalorder %s70, %s71
    %p85 = scmp.eq.s32.totalorder %s21, 3
    %p86 = por %p84, %p85
    %p88 = scmp.ne.s32.totalorder %s71, %s87
    %p89 = scmp.eq.s32.totalorder %s21, 0
    %p90 = por %p88, %p89
    %s91 = ssub.s32 %s22, %s34
    %s92 = ssub.s32 %s23, %s30
    %s93 = sor.u32 %s91, %s92
    %p94 = scmp.eq.s32.totalorder %s93, 0
    %s96 = sadd.s32 %s95, 1
    %s97 = scalar_select %p94, %s95, %s96
    %p100 = pneg %p94
    %p101 = scmp.eq.s32.totalorder %s15, 3
    %p102 = por %p100, %p101
    %p103 = scmp.ne.s32.totalorder %s95, %s98
    %p104 = scmp.eq.s32.totalorder %s15, 0
    %p105 = por %p103, %p104
    %p106 = scmp.ne.s32.totalorder %s95, %s98
    %p107 = scmp.eq.s32.totalorder %s20, 3
    %p108 = por %p106, %p107
    %p109 = scmp.ne.s32.totalorder %s98, %s99
    %p110 = scmp.eq.s32.totalorder %s20, 0
    %p111 = por %p109, %p110
    %p112 = scmp.ne.s32.totalorder %s98, %s99
    %p113 = scmp.eq.s32.totalorder %s21, 3
    %p114 = por %p112, %p113
    %p116 = scmp.ne.s32.totalorder %s99, %s115
    %p117 = scmp.eq.s32.totalorder %s21, 0
    %p118 = por %p116, %p117
    %p119 = scmp.le.s32.totalorder 1, %s15
    %p120 = scmp.lt.s32.totalorder %s15, 5
    %p121 = pnand %p119, %p120
    %p122 = pneg %p121
    // Predicated region
    $region9: #{fsim_forward.2} parent=5 // pred_check
      _
    $region10: #{fsim_forward.2} parent=5 // pred_check_branch
      %124 = sbr.rel (%p121) target = $region12
    $region11: #{fsim_forward.2} parent=5 // pred_region
      %s125 = ssub.s32 %s15, 1
    $region12: #{fsim_forward.2} parent=5 // pred_fallthru
      _
    %p126 = scmp.lt.s32.totalorder %s15, 4
    // Predicated region
    $region13: #{fsim_forward.2} parent=5 // pred_check
      %p127 = pneg %p126
    $region14: #{fsim_forward.2} parent=5 // pred_check_branch
      %129 = sbr.rel (%p127) target = $region16
    $region15: #{fsim_forward.2} parent=5 // pred_region
      // Predicated region
      $region17: #{fsim_forward.2} parent=15 // pred_check
        %p130 = pneg %p49
      $region18: #{fsim_forward.2} parent=15 // pred_check_branch
        %132 = sbr.rel (%p130) target = $region20
      $region19: #{fsim_forward.2} parent=15 // pred_region
        %s133 = smul.u32 2, %s23
        %p134 = scmp.lt.s32.totalorder %s22, 3
        %s135 = scalar_select %p134, %s22, 3
        %p136 = scmp.lt.s32.totalorder %s133, 1
        %s137 = scalar_select %p136, %s133, 1
        %s138 = smul.addr %s135, 32
        %s139 = sadd.s32 %s137, %s138
        %s140 = smul.addr %s139, 8
        %s141 = scalar_lea.vmem %s1, %s140
        %s142 = smul.u32 2, %s23
      $region20: #{fsim_forward.2} parent=15 // pred_fallthru
        _
      // Predicated region
      $region21: #{fsim_forward.2} parent=15 // pred_check
        %p143 = pneg %p77
      $region22: #{fsim_forward.2} parent=15 // pred_check_branch
        %145 = sbr.rel (%p143) target = $region24
      $region23: #{fsim_forward.2} parent=15 // pred_region
        %s146 = smul.u32 2, %s23
        %p147 = scmp.lt.s32.totalorder %s22, 3
        %s148 = scalar_select %p147, %s22, 3
        %p149 = scmp.lt.s32.totalorder %s146, 1
        %s150 = scalar_select %p149, %s146, 1
        %s151 = smul.addr %s148, 32
        %s152 = sadd.s32 %s150, %s151
        %s153 = smul.addr %s152, 8
        %s154 = scalar_lea.vmem %s2, %s153
        %s155 = smul.u32 2, %s23
      $region24: #{fsim_forward.2} parent=15 // pred_fallthru
        _
    $region16: #{fsim_forward.2} parent=5 // pred_fallthru
      _
    %p156 = scmp.le.s32.totalorder 1, %s15
    %p157 = scmp.lt.s32.totalorder %s15, 5
    %p158 = pnand %p156, %p157
    %p159 = pneg %p158
    // Predicated region
    $region25: #{fsim_forward.2} parent=5 // pred_check
      _
    $region26: #{fsim_forward.2} parent=5 // pred_check_branch
      %161 = sbr.rel (%p158) target = $region28
    $region27: #{fsim_forward.2} parent=5 // pred_region
      %s162 = ssub.s32 %s15, 1
      %s163 = smul.u32 2, %s25
      %p164 = scmp.lt.s32.totalorder %s24, 3
      %s165 = scalar_select %p164, %s24, 3
      %p166 = scmp.lt.s32.totalorder %s163, 1
      %s167 = scalar_select %p166, %s163, 1
      %s168 = smul.addr %s165, 32
      %s169 = sadd.s32 %s167, %s168
      %s170 = smul.addr %s169, 8
      %s171 = scalar_lea.vmem %s1, %s170
      %p172 = pneg %p55
      %p173 = pneg %p52
      %s174 = smul.u32 2, %s25
      %p175 = scmp.lt.s32.totalorder %s24, 3
      %s176 = scalar_select %p175, %s24, 3
      %p177 = scmp.lt.s32.totalorder %s174, 1
      %s178 = scalar_select %p177, %s174, 1
      %s179 = smul.addr %s176, 32
      %s180 = sadd.s32 %s178, %s179
      %s181 = smul.addr %s180, 8
      %s182 = scalar_lea.vmem %s2, %s181
      %p183 = pneg %p83
      %p184 = pneg %p80
      %p185 = pneg %p111
      %p186 = pneg %p108
      %s187 = smul.u32 2, %s25
      %p188 = scmp.lt.s32.totalorder %s24, 3
      %s189 = scalar_select %p188, %s24, 3
      %p190 = scmp.lt.s32.totalorder %s187, 1
      %s191 = scalar_select %p190, %s187, 1
      %s192 = smul.addr %s189, 2
      %s193 = sadd.s32 %s191, %s192
      %s194 = smul.addr %s193, 8
      %s195 = scalar_lea.vmem %s3, %s194
      %s196 = smul.u32 2, %s25
      %p197 = scmp.lt.s32.totalorder %s24, 3
      %s198 = scalar_select %p197, %s24, 3
      %p199 = scmp.lt.s32.totalorder %s196, 1
      %s200 = scalar_select %p199, %s196, 1
      %s201 = smul.addr %s198, 32
      %s202 = sadd.s32 %s200, %s201
      %s203 = smul.addr %s202, 8
      %s204 = scalar_lea.vmem %s1, %s203
      %s205 = smul.u32 2, %s25
      %s206 = smul.u32 2, %s25
      %p207 = scmp.lt.s32.totalorder %s24, 3
      %s208 = scalar_select %p207, %s24, 3
      %p209 = scmp.lt.s32.totalorder %s206, 1
      %s210 = scalar_select %p209, %s206, 1
      %s211 = smul.addr %s208, 32
      %s212 = sadd.s32 %s210, %s211
      %s213 = smul.addr %s212, 8
      %s214 = scalar_lea.vmem %s2, %s213
      %s215 = smul.u32 2, %s25
      %s216 = smul.u32 2, %s25
      %p217 = scmp.lt.s32.totalorder %s24, 3
      %s218 = scalar_select %p217, %s24, 3
      %p219 = scmp.lt.s32.totalorder %s216, 1
      %s220 = scalar_select %p219, %s216, 1
      %s221 = smul.addr %s218, 2
      %s222 = sadd.s32 %s220, %s221
      %s223 = smul.addr %s222, 8
      %s224 = scalar_lea.vmem %s3, %s223
      %s225 = smul.u32 2, %s25
      %v226 = vld [vmem:[%s204] sm:$0xff]
      %v227 = vld [vmem:[%s204 + $0x8] sm:$0xff]
      %v228 = vld [vmem:[%s214] sm:$0xff]
      %v229 = vld [vmem:[%s214 + $0x8] sm:$0xff]
      %v230 = vmul.f32 %v226, %v226
      %v231 = vmul.f32 %v227, %v227
      %v232 = vmul.f32 %v228, %v228
      %v233 = vmul.f32 %v229, %v229
      %v234 = vadd.f32 %v230, %v232
      %v235 = vadd.f32 %v231, %v233
      %v236 = vrsqrt.pop %v234
      %v237 = vmul.f32 %v234, %v236
      %vm238 = vcmp.eq.f32.partialorder %v234, inf
      %v239 = vsel %vm238, %v234, %v237
      %vm240 = vcmp.eq.f32.partialorder %v234, 0.0
      %v241 = vand.u32 %v234, 2147483648
      %v242 = vsel %vm240, %v241, %v239
      %v243 = vrsqrt.pop %v235
      %v244 = vmul.f32 %v235, %v243
      %vm245 = vcmp.eq.f32.partialorder %v235, inf
      %v246 = vsel %vm245, %v235, %v244
      %vm247 = vcmp.eq.f32.partialorder %v235, 0.0
      %v248 = vand.u32 %v235, 2147483648
      %v249 = vsel %vm247, %v248, %v246
      %s250 = scalar_lea.vmem %s204, 64
      %v251 = vld [vmem:[%s250] sm:$0xff]
      %v252 = vld [vmem:[%s250 + $0x8] sm:$0xff]
      %s253 = scalar_lea.vmem %s214, 64
      %v254 = vld [vmem:[%s253] sm:$0xff]
      %v255 = vld [vmem:[%s253 + $0x8] sm:$0xff]
      %v256 = vmul.f32 %v251, %v251
      %v257 = vmul.f32 %v252, %v252
      %v258 = vmul.f32 %v254, %v254
      %v259 = vmul.f32 %v255, %v255
      %v260 = vadd.f32 %v256, %v258
      %v261 = vadd.f32 %v257, %v259
      %v262 = vrsqrt.pop %v260
      %v263 = vmul.f32 %v260, %v262
      %vm264 = vcmp.eq.f32.partialorder %v260, inf
      %v265 = vsel %vm264, %v260, %v263
      %vm266 = vcmp.eq.f32.partialorder %v260, 0.0
      %v267 = vand.u32 %v260, 2147483648
      %v268 = vsel %vm266, %v267, %v265
      %v269 = vrsqrt.pop %v261
      %v270 = vmul.f32 %v261, %v269
      %vm271 = vcmp.eq.f32.partialorder %v261, inf
      %v272 = vsel %vm271, %v261, %v270
      %vm273 = vcmp.eq.f32.partialorder %v261, 0.0
      %v274 = vand.u32 %v261, 2147483648
      %v275 = vsel %vm273, %v274, %v272
      %v276 = vadd.f32 %v242, %v268
      %v277 = vadd.f32 %v249, %v275
      %v278 = vadd.f32 %v226, %v251
      %v279 = vadd.f32 %v227, %v252
      %v280 = vadd.f32 %v228, %v254
      %v281 = vadd.f32 %v229, %v255
      %s282 = scalar_lea.vmem %s204, 128
      %v283 = vld [vmem:[%s282] sm:$0xff]
      %v284 = vld [vmem:[%s282 + $0x8] sm:$0xff]
      %s285 = scalar_lea.vmem %s214, 128
      %v286 = vld [vmem:[%s285] sm:$0xff]
      %v287 = vld [vmem:[%s285 + $0x8] sm:$0xff]
      %v288 = vmul.f32 %v283, %v283
      %v289 = vmul.f32 %v284, %v284
      %v290 = vmul.f32 %v286, %v286
      %v291 = vmul.f32 %v287, %v287
      %v292 = vadd.f32 %v288, %v290
      %v293 = vadd.f32 %v289, %v291
      %v294 = vrsqrt.pop %v292
      %v295 = vmul.f32 %v292, %v294
      %vm296 = vcmp.eq.f32.partialorder %v292, inf
      %v297 = vsel %vm296, %v292, %v295
      %vm298 = vcmp.eq.f32.partialorder %v292, 0.0
      %v299 = vand.u32 %v292, 2147483648
      %v300 = vsel %vm298, %v299, %v297
      %v301 = vrsqrt.pop %v293
      %v302 = vmul.f32 %v293, %v301
      %vm303 = vcmp.eq.f32.partialorder %v293, inf
      %v304 = vsel %vm303, %v293, %v302
      %vm305 = vcmp.eq.f32.partialorder %v293, 0.0
      %v306 = vand.u32 %v293, 2147483648
      %v307 = vsel %vm305, %v306, %v304
      %v308 = vadd.f32 %v276, %v300
      %v309 = vadd.f32 %v277, %v307
      %v310 = vadd.f32 %v278, %v283
      %v311 = vadd.f32 %v279, %v284
      %v312 = vadd.f32 %v280, %v286
      %v313 = vadd.f32 %v281, %v287
      %s314 = scalar_lea.vmem %s204, 192
      %v315 = vld [vmem:[%s314] sm:$0xff]
      %v316 = vld [vmem:[%s314 + $0x8] sm:$0xff]
      %s317 = scalar_lea.vmem %s214, 192
      %v318 = vld [vmem:[%s317] sm:$0xff]
      %v319 = vld [vmem:[%s317 + $0x8] sm:$0xff]
      %v320 = vmul.f32 %v315, %v315
      %v321 = vmul.f32 %v316, %v316
      %v322 = vmul.f32 %v318, %v318
      %v323 = vmul.f32 %v319, %v319
      %v324 = vadd.f32 %v320, %v322
      %v325 = vadd.f32 %v321, %v323
      %v326 = vrsqrt.pop %v324
      %v327 = vmul.f32 %v324, %v326
      %vm328 = vcmp.eq.f32.partialorder %v324, inf
      %v329 = vsel %vm328, %v324, %v327
      %vm330 = vcmp.eq.f32.partialorder %v324, 0.0
      %v331 = vand.u32 %v324, 2147483648
      %v332 = vsel %vm330, %v331, %v329
      %v333 = vrsqrt.pop %v325
      %v334 = vmul.f32 %v325, %v333
      %vm335 = vcmp.eq.f32.partialorder %v325, inf
      %v336 = vsel %vm335, %v325, %v334
      %vm337 = vcmp.eq.f32.partialorder %v325, 0.0
      %v338 = vand.u32 %v325, 2147483648
      %v339 = vsel %vm337, %v338, %v336
      %v340 = vadd.f32 %v308, %v332
      %v341 = vadd.f32 %v309, %v339
      %v342 = vadd.f32 %v310, %v315
      %v343 = vadd.f32 %v311, %v316
      %v344 = vadd.f32 %v312, %v318
      %v345 = vadd.f32 %v313, %v319
      %v346 = vmul.f32 %v342, %v342
      %v347 = vmul.f32 %v343, %v343
      %v348 = vmul.f32 %v344, %v344
      %v349 = vmul.f32 %v345, %v345
      %v350 = vadd.f32 %v346, %v348
      %v351 = vadd.f32 %v347, %v349
      %v352 = vrsqrt.pop %v350
      %v353 = vmul.f32 %v350, %v352
      %vm354 = vcmp.eq.f32.partialorder %v350, inf
      %v355 = vsel %vm354, %v350, %v353
      %vm356 = vcmp.eq.f32.partialorder %v350, 0.0
      %v357 = vand.u32 %v350, 2147483648
      %v358 = vsel %vm356, %v357, %v355
      %v359 = vrsqrt.pop %v351
      %v360 = vmul.f32 %v351, %v359
      %vm361 = vcmp.eq.f32.partialorder %v351, inf
      %v362 = vsel %vm361, %v351, %v360
      %vm363 = vcmp.eq.f32.partialorder %v351, 0.0
      %v364 = vand.u32 %v351, 2147483648
      %v365 = vsel %vm363, %v364, %v362
      %v366 = vadd.f32 %v358, 1e-08
      %v367 = vadd.f32 %v365, 1e-08
      %v368 = vrcp.pop %v366
      %v369 = vrcp.pop %v367
      %v370 = vmul.f32 %v342, %v368
      %v371 = vmul.f32 %v343, %v369
      %v372 = vmul.f32 %v344, %v368
      %v373 = vmul.f32 %v345, %v369
      %v374 = vmul.f32 %v228, %v370
      %v375 = vmul.f32 %v229, %v371
      %v376 = vmul.f32 %v226, %v372
      %v377 = vmul.f32 %v227, %v373
      %v378 = vsub.f32 %v374, %v376
      %v379 = vsub.f32 %v375, %v377
      %v380 = vand.u32 2147483647, %v378
      %v381 = vand.u32 2147483647, %v379
      %v382 = vmul.f32 %v254, %v370
      %v383 = vmul.f32 %v255, %v371
      %v384 = vmul.f32 %v251, %v372
      %v385 = vmul.f32 %v252, %v373
      %v386 = vsub.f32 %v382, %v384
      %v387 = vsub.f32 %v383, %v385
      %v388 = vand.u32 2147483647, %v386
      %v389 = vand.u32 2147483647, %v387
      %v390 = vadd.f32 %v380, %v388
      %v391 = vadd.f32 %v381, %v389
      %v392 = vmul.f32 %v286, %v370
      %v393 = vmul.f32 %v287, %v371
      %v394 = vmul.f32 %v283, %v372
      %v395 = vmul.f32 %v284, %v373
      %v396 = vsub.f32 %v392, %v394
      %v397 = vsub.f32 %v393, %v395
      %v398 = vand.u32 2147483647, %v396
      %v399 = vand.u32 2147483647, %v397
      %v400 = vadd.f32 %v390, %v398
      %v401 = vadd.f32 %v391, %v399
      %v402 = vmul.f32 %v318, %v370
      %v403 = vmul.f32 %v319, %v371
      %v404 = vmul.f32 %v315, %v372
      %v405 = vmul.f32 %v316, %v373
      %v406 = vsub.f32 %v402, %v404
      %v407 = vsub.f32 %v403, %v405
      %v408 = vand.u32 2147483647, %v406
      %v409 = vand.u32 2147483647, %v407
      %v410 = vadd.f32 %v400, %v408
      %v411 = vadd.f32 %v401, %v409
      %v412 = vmul.f32 %v350, %v368
      %v413 = vmul.f32 %v351, %v369
      %v414 = vsub.f32 %v412, %v410
      %v415 = vsub.f32 %v413, %v411
      %s416 = smul.u32 %s24, 128
      %s417 = sld [smem:[#allocation3 + %s416]]
      %v418 = vstv %s417
      %v419 = vsub.f32 %v414, %v418
      %v420 = vsub.f32 %v415, %v418
      %v421 = vmax.f32 %v419, 0.0
      %v422 = vmax.f32 %v420, 0.0
      %s423 = scalar_lea.vmem %s204, 16
      %v424 = vld [vmem:[%s423] sm:$0xff]
      %v425 = vld [vmem:[%s423 + $0x8] sm:$0xff]
      %s426 = scalar_lea.vmem %s214, 16
      %v427 = vld [vmem:[%s426] sm:$0xff]
      %v428 = vld [vmem:[%s426 + $0x8] sm:$0xff]
      %v429 = vmul.f32 %v424, %v424
      %v430 = vmul.f32 %v425, %v425
      %v431 = vmul.f32 %v427, %v427
      %v432 = vmul.f32 %v428, %v428
      %v433 = vadd.f32 %v429, %v431
      %v434 = vadd.f32 %v430, %v432
      %v435 = vrsqrt.pop %v433
      %v436 = vmul.f32 %v433, %v435
      %vm437 = vcmp.eq.f32.partialorder %v433, inf
      %v438 = vsel %vm437, %v433, %v436
      %vm439 = vcmp.eq.f32.partialorder %v433, 0.0
      %v440 = vand.u32 %v433, 2147483648
      %v441 = vsel %vm439, %v440, %v438
      %v442 = vrsqrt.pop %v434
      %v443 = vmul.f32 %v434, %v442
      %vm444 = vcmp.eq.f32.partialorder %v434, inf
      %v445 = vsel %vm444, %v434, %v443
      %vm446 = vcmp.eq.f32.partialorder %v434, 0.0
      %v447 = vand.u32 %v434, 2147483648
      %v448 = vsel %vm446, %v447, %v445
      %v449 = vadd.f32 %v340, %v441
      %v450 = vadd.f32 %v341, %v448
      %s451 = scalar_lea.vmem %s204, 80
      %v452 = vld [vmem:[%s451] sm:$0xff]
      %v453 = vld [vmem:[%s451 + $0x8] sm:$0xff]
      %s454 = scalar_lea.vmem %s214, 80
      %v455 = vld [vmem:[%s454] sm:$0xff]
      %v456 = vld [vmem:[%s454 + $0x8] sm:$0xff]
      %v457 = vmul.f32 %v452, %v452
      %v458 = vmul.f32 %v453, %v453
      %v459 = vmul.f32 %v455, %v455
      %v460 = vmul.f32 %v456, %v456
      %v461 = vadd.f32 %v457, %v459
      %v462 = vadd.f32 %v458, %v460
      %v463 = vrsqrt.pop %v461
      %v464 = vmul.f32 %v461, %v463
      %vm465 = vcmp.eq.f32.partialorder %v461, inf
      %v466 = vsel %vm465, %v461, %v464
      %vm467 = vcmp.eq.f32.partialorder %v461, 0.0
      %v468 = vand.u32 %v461, 2147483648
      %v469 = vsel %vm467, %v468, %v466
      %v470 = vrsqrt.pop %v462
      %v471 = vmul.f32 %v462, %v470
      %vm472 = vcmp.eq.f32.partialorder %v462, inf
      %v473 = vsel %vm472, %v462, %v471
      %vm474 = vcmp.eq.f32.partialorder %v462, 0.0
      %v475 = vand.u32 %v462, 2147483648
      %v476 = vsel %vm474, %v475, %v473
      %v477 = vadd.f32 %v449, %v469
      %v478 = vadd.f32 %v450, %v476
      %v479 = vadd.f32 %v424, %v452
      %v480 = vadd.f32 %v425, %v453
      %v481 = vadd.f32 %v427, %v455
      %v482 = vadd.f32 %v428, %v456
      %s483 = scalar_lea.vmem %s204, 144
      %v484 = vld [vmem:[%s483] sm:$0xff]
      %v485 = vld [vmem:[%s483 + $0x8] sm:$0xff]
      %s486 = scalar_lea.vmem %s214, 144
      %v487 = vld [vmem:[%s486] sm:$0xff]
      %v488 = vld [vmem:[%s486 + $0x8] sm:$0xff]
      %v489 = vmul.f32 %v484, %v484
      %v490 = vmul.f32 %v485, %v485
      %v491 = vmul.f32 %v487, %v487
      %v492 = vmul.f32 %v488, %v488
      %v493 = vadd.f32 %v489, %v491
      %v494 = vadd.f32 %v490, %v492
      %v495 = vrsqrt.pop %v493
      %v496 = vmul.f32 %v493, %v495
      %vm497 = vcmp.eq.f32.partialorder %v493, inf
      %v498 = vsel %vm497, %v493, %v496
      %vm499 = vcmp.eq.f32.partialorder %v493, 0.0
      %v500 = vand.u32 %v493, 2147483648
      %v501 = vsel %vm499, %v500, %v498
      %v502 = vrsqrt.pop %v494
      %v503 = vmul.f32 %v494, %v502
      %vm504 = vcmp.eq.f32.partialorder %v494, inf
      %v505 = vsel %vm504, %v494, %v503
      %vm506 = vcmp.eq.f32.partialorder %v494, 0.0
      %v507 = vand.u32 %v494, 2147483648
      %v508 = vsel %vm506, %v507, %v505
      %v509 = vadd.f32 %v477, %v501
      %v510 = vadd.f32 %v478, %v508
      %v511 = vadd.f32 %v479, %v484
      %v512 = vadd.f32 %v480, %v485
      %v513 = vadd.f32 %v481, %v487
      %v514 = vadd.f32 %v482, %v488
      %s515 = scalar_lea.vmem %s204, 208
      %v516 = vld [vmem:[%s515] sm:$0xff]
      %v517 = vld [vmem:[%s515 + $0x8] sm:$0xff]
      %s518 = scalar_lea.vmem %s214, 208
      %v519 = vld [vmem:[%s518] sm:$0xff]
      %v520 = vld [vmem:[%s518 + $0x8] sm:$0xff]
      %v521 = vmul.f32 %v516, %v516
      %v522 = vmul.f32 %v517, %v517
      %v523 = vmul.f32 %v519, %v519
      %v524 = vmul.f32 %v520, %v520
      %v525 = vadd.f32 %v521, %v523
      %v526 = vadd.f32 %v522, %v524
      %v527 = vrsqrt.pop %v525
      %v528 = vmul.f32 %v525, %v527
      %vm529 = vcmp.eq.f32.partialorder %v525, inf
      %v530 = vsel %vm529, %v525, %v528
      %vm531 = vcmp.eq.f32.partialorder %v525, 0.0
      %v532 = vand.u32 %v525, 2147483648
      %v533 = vsel %vm531, %v532, %v530
      %v534 = vrsqrt.pop %v526
      %v535 = vmul.f32 %v526, %v534
      %vm536 = vcmp.eq.f32.partialorder %v526, inf
      %v537 = vsel %vm536, %v526, %v535
      %vm538 = vcmp.eq.f32.partialorder %v526, 0.0
      %v539 = vand.u32 %v526, 2147483648
      %v540 = vsel %vm538, %v539, %v537
      %v541 = vadd.f32 %v509, %v533
      %v542 = vadd.f32 %v510, %v540
      %v543 = vadd.f32 %v511, %v516
      %v544 = vadd.f32 %v512, %v517
      %v545 = vadd.f32 %v513, %v519
      %v546 = vadd.f32 %v514, %v520
      %v547 = vmul.f32 %v543, %v543
      %v548 = vmul.f32 %v544, %v544
      %v549 = vmul.f32 %v545, %v545
      %v550 = vmul.f32 %v546, %v546
      %v551 = vadd.f32 %v547, %v549
      %v552 = vadd.f32 %v548, %v550
      %v553 = vrsqrt.pop %v551
      %v554 = vmul.f32 %v551, %v553
      %vm555 = vcmp.eq.f32.partialorder %v551, inf
      %v556 = vsel %vm555, %v551, %v554
      %vm557 = vcmp.eq.f32.partialorder %v551, 0.0
      %v558 = vand.u32 %v551, 2147483648
      %v559 = vsel %vm557, %v558, %v556
      %v560 = vrsqrt.pop %v552
      %v561 = vmul.f32 %v552, %v560
      %vm562 = vcmp.eq.f32.partialorder %v552, inf
      %v563 = vsel %vm562, %v552, %v561
      %vm564 = vcmp.eq.f32.partialorder %v552, 0.0
      %v565 = vand.u32 %v552, 2147483648
      %v566 = vsel %vm564, %v565, %v563
      %v567 = vadd.f32 %v559, 1e-08
      %v568 = vadd.f32 %v566, 1e-08
      %v569 = vrcp.pop %v567
      %v570 = vrcp.pop %v568
      %v571 = vmul.f32 %v543, %v569
      %v572 = vmul.f32 %v544, %v570
      %v573 = vmul.f32 %v545, %v569
      %v574 = vmul.f32 %v546, %v570
      %v575 = vmul.f32 %v427, %v571
      %v576 = vmul.f32 %v428, %v572
      %v577 = vmul.f32 %v424, %v573
      %v578 = vmul.f32 %v425, %v574
      %v579 = vsub.f32 %v575, %v577
      %v580 = vsub.f32 %v576, %v578
      %v581 = vand.u32 2147483647, %v579
      %v582 = vand.u32 2147483647, %v580
      %v583 = vmul.f32 %v455, %v571
      %v584 = vmul.f32 %v456, %v572
      %v585 = vmul.f32 %v452, %v573
      %v586 = vmul.f32 %v453, %v574
      %v587 = vsub.f32 %v583, %v585
      %v588 = vsub.f32 %v584, %v586
      %v589 = vand.u32 2147483647, %v587
      %v590 = vand.u32 2147483647, %v588
      %v591 = vadd.f32 %v581, %v589
      %v592 = vadd.f32 %v582, %v590
      %v593 = vmul.f32 %v487, %v571
      %v594 = vmul.f32 %v488, %v572
      %v595 = vmul.f32 %v484, %v573
      %v596 = vmul.f32 %v485, %v574
      %v597 = vsub.f32 %v593, %v595
      %v598 = vsub.f32 %v594, %v596
      %v599 = vand.u32 2147483647, %v597
      %v600 = vand.u32 2147483647, %v598
      %v601 = vadd.f32 %v591, %v599
      %v602 = vadd.f32 %v592, %v600
      %v603 = vmul.f32 %v519, %v571
      %v604 = vmul.f32 %v520, %v572
      %v605 = vmul.f32 %v516, %v573
      %v606 = vmul.f32 %v517, %v574
      %v607 = vsub.f32 %v603, %v605
      %v608 = vsub.f32 %v604, %v606
      %v609 = vand.u32 2147483647, %v607
      %v610 = vand.u32 2147483647, %v608
      %v611 = vadd.f32 %v601, %v609
      %v612 = vadd.f32 %v602, %v610
      %v613 = vmul.f32 %v551, %v569
      %v614 = vmul.f32 %v552, %v570
      %v615 = vsub.f32 %v613, %v611
      %v616 = vsub.f32 %v614, %v612
      %s617 = sadd.s32 %s416, 1
      %s618 = sld [smem:[#allocation3 + %s617]]
      %v619 = vstv %s618
      %v620 = vsub.f32 %v615, %v619
      %v621 = vsub.f32 %v616, %v619
      %v622 = vmax.f32 %v620, 0.0
      %v623 = vmax.f32 %v621, 0.0
      %v624 = vadd.f32 %v421, %v622
      %v625 = vadd.f32 %v422, %v623
      %s626 = scalar_lea.vmem %s204, 32
      %v627 = vld [vmem:[%s626] sm:$0xff]
      %v628 = vld [vmem:[%s626 + $0x8] sm:$0xff]
      %s629 = scalar_lea.vmem %s214, 32
      %v630 = vld [vmem:[%s629] sm:$0xff]
      %v631 = vld [vmem:[%s629 + $0x8] sm:$0xff]
      %v632 = vmul.f32 %v627, %v627
      %v633 = vmul.f32 %v628, %v628
      %v634 = vmul.f32 %v630, %v630
      %v635 = vmul.f32 %v631, %v631
      %v636 = vadd.f32 %v632, %v634
      %v637 = vadd.f32 %v633, %v635
      %v638 = vrsqrt.pop %v636
      %v639 = vmul.f32 %v636, %v638
      %vm640 = vcmp.eq.f32.partialorder %v636, inf
      %v641 = vsel %vm640, %v636, %v639
      %vm642 = vcmp.eq.f32.partialorder %v636, 0.0
      %v643 = vand.u32 %v636, 2147483648
      %v644 = vsel %vm642, %v643, %v641
      %v645 = vrsqrt.pop %v637
      %v646 = vmul.f32 %v637, %v645
      %vm647 = vcmp.eq.f32.partialorder %v637, inf
      %v648 = vsel %vm647, %v637, %v646
      %vm649 = vcmp.eq.f32.partialorder %v637, 0.0
      %v650 = vand.u32 %v637, 2147483648
      %v651 = vsel %vm649, %v650, %v648
      %v652 = vadd.f32 %v541, %v644
      %v653 = vadd.f32 %v542, %v651
      %s654 = scalar_lea.vmem %s204, 96
      %v655 = vld [vmem:[%s654] sm:$0xff]
      %v656 = vld [vmem:[%s654 + $0x8] sm:$0xff]
      %s657 = scalar_lea.vmem %s214, 96
      %v658 = vld [vmem:[%s657] sm:$0xff]
      %v659 = vld [vmem:[%s657 + $0x8] sm:$0xff]
      %v660 = vmul.f32 %v655, %v655
      %v661 = vmul.f32 %v656, %v656
      %v662 = vmul.f32 %v658, %v658
      %v663 = vmul.f32 %v659, %v659
      %v664 = vadd.f32 %v660, %v662
      %v665 = vadd.f32 %v661, %v663
      %v666 = vrsqrt.pop %v664
      %v667 = vmul.f32 %v664, %v666
      %vm668 = vcmp.eq.f32.partialorder %v664, inf
      %v669 = vsel %vm668, %v664, %v667
      %vm670 = vcmp.eq.f32.partialorder %v664, 0.0
      %v671 = vand.u32 %v664, 2147483648
      %v672 = vsel %vm670, %v671, %v669
      %v673 = vrsqrt.pop %v665
      %v674 = vmul.f32 %v665, %v673
      %vm675 = vcmp.eq.f32.partialorder %v665, inf
      %v676 = vsel %vm675, %v665, %v674
      %vm677 = vcmp.eq.f32.partialorder %v665, 0.0
      %v678 = vand.u32 %v665, 2147483648
      %v679 = vsel %vm677, %v678, %v676
      %v680 = vadd.f32 %v652, %v672
      %v681 = vadd.f32 %v653, %v679
      %v682 = vadd.f32 %v627, %v655
      %v683 = vadd.f32 %v628, %v656
      %v684 = vadd.f32 %v630, %v658
      %v685 = vadd.f32 %v631, %v659
      %s686 = scalar_lea.vmem %s204, 160
      %v687 = vld [vmem:[%s686] sm:$0xff]
      %v688 = vld [vmem:[%s686 + $0x8] sm:$0xff]
      %s689 = scalar_lea.vmem %s214, 160
      %v690 = vld [vmem:[%s689] sm:$0xff]
      %v691 = vld [vmem:[%s689 + $0x8] sm:$0xff]
      %v692 = vmul.f32 %v687, %v687
      %v693 = vmul.f32 %v688, %v688
      %v694 = vmul.f32 %v690, %v690
      %v695 = vmul.f32 %v691, %v691
      %v696 = vadd.f32 %v692, %v694
      %v697 = vadd.f32 %v693, %v695
      %v698 = vrsqrt.pop %v696
      %v699 = vmul.f32 %v696, %v698
      %vm700 = vcmp.eq.f32.partialorder %v696, inf
      %v701 = vsel %vm700, %v696, %v699
      %vm702 = vcmp.eq.f32.partialorder %v696, 0.0
      %v703 = vand.u32 %v696, 2147483648
      %v704 = vsel %vm702, %v703, %v701
      %v705 = vrsqrt.pop %v697
      %v706 = vmul.f32 %v697, %v705
      %vm707 = vcmp.eq.f32.partialorder %v697, inf
      %v708 = vsel %vm707, %v697, %v706
      %vm709 = vcmp.eq.f32.partialorder %v697, 0.0
      %v710 = vand.u32 %v697, 2147483648
      %v711 = vsel %vm709, %v710, %v708
      %v712 = vadd.f32 %v680, %v704
      %v713 = vadd.f32 %v681, %v711
      %v714 = vadd.f32 %v682, %v687
      %v715 = vadd.f32 %v683, %v688
      %v716 = vadd.f32 %v684, %v690
      %v717 = vadd.f32 %v685, %v691
      %s718 = scalar_lea.vmem %s204, 224
      %v719 = vld [vmem:[%s718] sm:$0xff]
      %v720 = vld [vmem:[%s718 + $0x8] sm:$0xff]
      %s721 = scalar_lea.vmem %s214, 224
      %v722 = vld [vmem:[%s721] sm:$0xff]
      %v723 = vld [vmem:[%s721 + $0x8] sm:$0xff]
      %v724 = vmul.f32 %v719, %v719
      %v725 = vmul.f32 %v720, %v720
      %v726 = vmul.f32 %v722, %v722
      %v727 = vmul.f32 %v723, %v723
      %v728 = vadd.f32 %v724, %v726
      %v729 = vadd.f32 %v725, %v727
      %v730 = vrsqrt.pop %v728
      %v731 = vmul.f32 %v728, %v730
      %vm732 = vcmp.eq.f32.partialorder %v728, inf
      %v733 = vsel %vm732, %v728, %v731
      %vm734 = vcmp.eq.f32.partialorder %v728, 0.0
      %v735 = vand.u32 %v728, 2147483648
      %v736 = vsel %vm734, %v735, %v733
      %v737 = vrsqrt.pop %v729
      %v738 = vmul.f32 %v729, %v737
      %vm739 = vcmp.eq.f32.partialorder %v729, inf
      %v740 = vsel %vm739, %v729, %v738
      %vm741 = vcmp.eq.f32.partialorder %v729, 0.0
      %v742 = vand.u32 %v729, 2147483648
      %v743 = vsel %vm741, %v742, %v740
      %v744 = vadd.f32 %v712, %v736
      %v745 = vadd.f32 %v713, %v743
      %v746 = vadd.f32 %v714, %v719
      %v747 = vadd.f32 %v715, %v720
      %v748 = vadd.f32 %v716, %v722
      %v749 = vadd.f32 %v717, %v723
      %v750 = vmul.f32 %v746, %v746
      %v751 = vmul.f32 %v747, %v747
      %v752 = vmul.f32 %v748, %v748
      %v753 = vmul.f32 %v749, %v749
      %v754 = vadd.f32 %v750, %v752
      %v755 = vadd.f32 %v751, %v753
      %v756 = vrsqrt.pop %v754
      %v757 = vmul.f32 %v754, %v756
      %vm758 = vcmp.eq.f32.partialorder %v754, inf
      %v759 = vsel %vm758, %v754, %v757
      %vm760 = vcmp.eq.f32.partialorder %v754, 0.0
      %v761 = vand.u32 %v754, 2147483648
      %v762 = vsel %vm760, %v761, %v759
      %v763 = vrsqrt.pop %v755
      %v764 = vmul.f32 %v755, %v763
      %vm765 = vcmp.eq.f32.partialorder %v755, inf
      %v766 = vsel %vm765, %v755, %v764
      %vm767 = vcmp.eq.f32.partialorder %v755, 0.0
      %v768 = vand.u32 %v755, 2147483648
      %v769 = vsel %vm767, %v768, %v766
      %v770 = vadd.f32 %v762, 1e-08
      %v771 = vadd.f32 %v769, 1e-08
      %v772 = vrcp.pop %v770
      %v773 = vrcp.pop %v771
      %v774 = vmul.f32 %v746, %v772
      %v775 = vmul.f32 %v747, %v773
      %v776 = vmul.f32 %v748, %v772
      %v777 = vmul.f32 %v749, %v773
      %v778 = vmul.f32 %v630, %v774
      %v779 = vmul.f32 %v631, %v775
      %v780 = vmul.f32 %v627, %v776
      %v781 = vmul.f32 %v628, %v777
      %v782 = vsub.f32 %v778, %v780
      %v783 = vsub.f32 %v779, %v781
      %v784 = vand.u32 2147483647, %v782
      %v785 = vand.u32 2147483647, %v783
      %v786 = vmul.f32 %v658, %v774
      %v787 = vmul.f32 %v659, %v775
      %v788 = vmul.f32 %v655, %v776
      %v789 = vmul.f32 %v656, %v777
      %v790 = vsub.f32 %v786, %v788
      %v791 = vsub.f32 %v787, %v789
      %v792 = vand.u32 2147483647, %v790
      %v793 = vand.u32 2147483647, %v791
      %v794 = vadd.f32 %v784, %v792
      %v795 = vadd.f32 %v785, %v793
      %v796 = vmul.f32 %v690, %v774
      %v797 = vmul.f32 %v691, %v775
      %v798 = vmul.f32 %v687, %v776
      %v799 = vmul.f32 %v688, %v777
      %v800 = vsub.f32 %v796, %v798
      %v801 = vsub.f32 %v797, %v799
      %v802 = vand.u32 2147483647, %v800
      %v803 = vand.u32 2147483647, %v801
      %v804 = vadd.f32 %v794, %v802
      %v805 = vadd.f32 %v795, %v803
      %v806 = vmul.f32 %v722, %v774
      %v807 = vmul.f32 %v723, %v775
      %v808 = vmul.f32 %v719, %v776
      %v809 = vmul.f32 %v720, %v777
      %v810 = vsub.f32 %v806, %v808
      %v811 = vsub.f32 %v807, %v809
      %v812 = vand.u32 2147483647, %v810
      %v813 = vand.u32 2147483647, %v811
      %v814 = vadd.f32 %v804, %v812
      %v815 = vadd.f32 %v805, %v813
      %v816 = vmul.f32 %v754, %v772
      %v817 = vmul.f32 %v755, %v773
      %v818 = vsub.f32 %v816, %v814
      %v819 = vsub.f32 %v817, %v815
      %s820 = sadd.s32 %s416, 2
      %s821 = sld [smem:[#allocation3 + %s820]]
      %v822 = vstv %s821
      %v823 = vsub.f32 %v818, %v822
      %v824 = vsub.f32 %v819, %v822
      %v825 = vmax.f32 %v823, 0.0
      %v826 = vmax.f32 %v824, 0.0
      %v827 = vadd.f32 %v624, %v825
      %v828 = vadd.f32 %v625, %v826
      %s829 = scalar_lea.vmem %s204, 48
      %v830 = vld [vmem:[%s829] sm:$0xff]
      %v831 = vld [vmem:[%s829 + $0x8] sm:$0xff]
      %s832 = scalar_lea.vmem %s214, 48
      %v833 = vld [vmem:[%s832] sm:$0xff]
      %v834 = vld [vmem:[%s832 + $0x8] sm:$0xff]
      %v835 = vmul.f32 %v830, %v830
      %v836 = vmul.f32 %v831, %v831
      %v837 = vmul.f32 %v833, %v833
      %v838 = vmul.f32 %v834, %v834
      %v839 = vadd.f32 %v835, %v837
      %v840 = vadd.f32 %v836, %v838
      %v841 = vrsqrt.pop %v839
      %v842 = vmul.f32 %v839, %v841
      %vm843 = vcmp.eq.f32.partialorder %v839, inf
      %v844 = vsel %vm843, %v839, %v842
      %vm845 = vcmp.eq.f32.partialorder %v839, 0.0
      %v846 = vand.u32 %v839, 2147483648
      %v847 = vsel %vm845, %v846, %v844
      %v848 = vrsqrt.pop %v840
      %v849 = vmul.f32 %v840, %v848
      %vm850 = vcmp.eq.f32.partialorder %v840, inf
      %v851 = vsel %vm850, %v840, %v849
      %vm852 = vcmp.eq.f32.partialorder %v840, 0.0
      %v853 = vand.u32 %v840, 2147483648
      %v854 = vsel %vm852, %v853, %v851
      %v855 = vadd.f32 %v744, %v847
      %v856 = vadd.f32 %v745, %v854
      %s857 = scalar_lea.vmem %s204, 112
      %v858 = vld [vmem:[%s857] sm:$0xff]
      %v859 = vld [vmem:[%s857 + $0x8] sm:$0xff]
      %s860 = scalar_lea.vmem %s214, 112
      %v861 = vld [vmem:[%s860] sm:$0xff]
      %v862 = vld [vmem:[%s860 + $0x8] sm:$0xff]
      %v863 = vmul.f32 %v858, %v858
      %v864 = vmul.f32 %v859, %v859
      %v865 = vmul.f32 %v861, %v861
      %v866 = vmul.f32 %v862, %v862
      %v867 = vadd.f32 %v863, %v865
      %v868 = vadd.f32 %v864, %v866
      %v869 = vrsqrt.pop %v867
      %v870 = vmul.f32 %v867, %v869
      %vm871 = vcmp.eq.f32.partialorder %v867, inf
      %v872 = vsel %vm871, %v867, %v870
      %vm873 = vcmp.eq.f32.partialorder %v867, 0.0
      %v874 = vand.u32 %v867, 2147483648
      %v875 = vsel %vm873, %v874, %v872
      %v876 = vrsqrt.pop %v868
      %v877 = vmul.f32 %v868, %v876
      %vm878 = vcmp.eq.f32.partialorder %v868, inf
      %v879 = vsel %vm878, %v868, %v877
      %vm880 = vcmp.eq.f32.partialorder %v868, 0.0
      %v881 = vand.u32 %v868, 2147483648
      %v882 = vsel %vm880, %v881, %v879
      %v883 = vadd.f32 %v855, %v875
      %v884 = vadd.f32 %v856, %v882
      %v885 = vadd.f32 %v830, %v858
      %v886 = vadd.f32 %v831, %v859
      %v887 = vadd.f32 %v833, %v861
      %v888 = vadd.f32 %v834, %v862
      %s889 = scalar_lea.vmem %s204, 176
      %v890 = vld [vmem:[%s889] sm:$0xff]
      %v891 = vld [vmem:[%s889 + $0x8] sm:$0xff]
      %s892 = scalar_lea.vmem %s214, 176
      %v893 = vld [vmem:[%s892] sm:$0xff]
      %v894 = vld [vmem:[%s892 + $0x8] sm:$0xff]
      %v895 = vmul.f32 %v890, %v890
      %v896 = vmul.f32 %v891, %v891
      %v897 = vmul.f32 %v893, %v893
      %v898 = vmul.f32 %v894, %v894
      %v899 = vadd.f32 %v895, %v897
      %v900 = vadd.f32 %v896, %v898
      %v901 = vrsqrt.pop %v899
      %v902 = vmul.f32 %v899, %v901
      %vm903 = vcmp.eq.f32.partialorder %v899, inf
      %v904 = vsel %vm903, %v899, %v902
      %vm905 = vcmp.eq.f32.partialorder %v899, 0.0
      %v906 = vand.u32 %v899, 2147483648
      %v907 = vsel %vm905, %v906, %v904
      %v908 = vrsqrt.pop %v900
      %v909 = vmul.f32 %v900, %v908
      %vm910 = vcmp.eq.f32.partialorder %v900, inf
      %v911 = vsel %vm910, %v900, %v909
      %vm912 = vcmp.eq.f32.partialorder %v900, 0.0
      %v913 = vand.u32 %v900, 2147483648
      %v914 = vsel %vm912, %v913, %v911
      %v915 = vadd.f32 %v883, %v907
      %v916 = vadd.f32 %v884, %v914
      %v917 = vadd.f32 %v885, %v890
      %v918 = vadd.f32 %v886, %v891
      %v919 = vadd.f32 %v887, %v893
      %v920 = vadd.f32 %v888, %v894
      %s921 = scalar_lea.vmem %s204, 240
      %v922 = vld [vmem:[%s921] sm:$0xff]
      %v923 = vld [vmem:[%s921 + $0x8] sm:$0xff]
      %s924 = scalar_lea.vmem %s214, 240
      %v925 = vld [vmem:[%s924] sm:$0xff]
      %v926 = vld [vmem:[%s924 + $0x8] sm:$0xff]
      %v927 = vmul.f32 %v922, %v922
      %v928 = vmul.f32 %v923, %v923
      %v929 = vmul.f32 %v925, %v925
      %v930 = vmul.f32 %v926, %v926
      %v931 = vadd.f32 %v927, %v929
      %v932 = vadd.f32 %v928, %v930
      %v933 = vrsqrt.pop %v931
      %v934 = vmul.f32 %v931, %v933
      %vm935 = vcmp.eq.f32.partialorder %v931, inf
      %v936 = vsel %vm935, %v931, %v934
      %vm937 = vcmp.eq.f32.partialorder %v931, 0.0
      %v938 = vand.u32 %v931, 2147483648
      %v939 = vsel %vm937, %v938, %v936
      %v940 = vrsqrt.pop %v932
      %v941 = vmul.f32 %v932, %v940
      %vm942 = vcmp.eq.f32.partialorder %v932, inf
      %v943 = vsel %vm942, %v932, %v941
      %vm944 = vcmp.eq.f32.partialorder %v932, 0.0
      %v945 = vand.u32 %v932, 2147483648
      %v946 = vsel %vm944, %v945, %v943
      %v947 = vadd.f32 %v915, %v939
      %v948 = vadd.f32 %v916, %v946
      %v949 = vadd.f32 %v917, %v922
      %v950 = vadd.f32 %v918, %v923
      %v951 = vadd.f32 %v919, %v925
      %v952 = vadd.f32 %v920, %v926
      %v953 = vmul.f32 %v949, %v949
      %v954 = vmul.f32 %v950, %v950
      %v955 = vmul.f32 %v951, %v951
      %v956 = vmul.f32 %v952, %v952
      %v957 = vadd.f32 %v953, %v955
      %v958 = vadd.f32 %v954, %v956
      %v959 = vrsqrt.pop %v957
      %v960 = vmul.f32 %v957, %v959
      %vm961 = vcmp.eq.f32.partialorder %v957, inf
      %v962 = vsel %vm961, %v957, %v960
      %vm963 = vcmp.eq.f32.partialorder %v957, 0.0
      %v964 = vand.u32 %v957, 2147483648
      %v965 = vsel %vm963, %v964, %v962
      %v966 = vrsqrt.pop %v958
      %v967 = vmul.f32 %v958, %v966
      %vm968 = vcmp.eq.f32.partialorder %v958, inf
      %v969 = vsel %vm968, %v958, %v967
      %vm970 = vcmp.eq.f32.partialorder %v958, 0.0
      %v971 = vand.u32 %v958, 2147483648
      %v972 = vsel %vm970, %v971, %v969
      %v973 = vadd.f32 %v965, 1e-08
      %v974 = vadd.f32 %v972, 1e-08
      %v975 = vrcp.pop %v973
      %v976 = vrcp.pop %v974
      %v977 = vmul.f32 %v949, %v975
      %v978 = vmul.f32 %v950, %v976
      %v979 = vmul.f32 %v951, %v975
      %v980 = vmul.f32 %v952, %v976
      %v981 = vmul.f32 %v833, %v977
      %v982 = vmul.f32 %v834, %v978
      %v983 = vmul.f32 %v830, %v979
      %v984 = vmul.f32 %v831, %v980
      %v985 = vsub.f32 %v981, %v983
      %v986 = vsub.f32 %v982, %v984
      %v987 = vand.u32 2147483647, %v985
      %v988 = vand.u32 2147483647, %v986
      %v989 = vmul.f32 %v861, %v977
      %v990 = vmul.f32 %v862, %v978
      %v991 = vmul.f32 %v858, %v979
      %v992 = vmul.f32 %v859, %v980
      %v993 = vsub.f32 %v989, %v991
      %v994 = vsub.f32 %v990, %v992
      %v995 = vand.u32 2147483647, %v993
      %v996 = vand.u32 2147483647, %v994
      %v997 = vadd.f32 %v987, %v995
      %v998 = vadd.f32 %v988, %v996
      %v999 = vmul.f32 %v893, %v977
      %v1000 = vmul.f32 %v894, %v978
      %v1001 = vmul.f32 %v890, %v979
      %v1002 = vmul.f32 %v891, %v980
      %v1003 = vsub.f32 %v999, %v1001
      %v1004 = vsub.f32 %v1000, %v1002
      %v1005 = vand.u32 2147483647, %v1003
      %v1006 = vand.u32 2147483647, %v1004
      %v1007 = vadd.f32 %v997, %v1005
      %v1008 = vadd.f32 %v998, %v1006
      %v1009 = vmul.f32 %v925, %v977
      %v1010 = vmul.f32 %v926, %v978
      %v1011 = vmul.f32 %v922, %v979
      %v1012 = vmul.f32 %v923, %v980
      %v1013 = vsub.f32 %v1009, %v1011
      %v1014 = vsub.f32 %v1010, %v1012
      %v1015 = vand.u32 2147483647, %v1013
      %v1016 = vand.u32 2147483647, %v1014
      %v1017 = vadd.f32 %v1007, %v1015
      %v1018 = vadd.f32 %v1008, %v1016
      %v1019 = vmul.f32 %v957, %v975
      %v1020 = vmul.f32 %v958, %v976
      %v1021 = vsub.f32 %v1019, %v1017
      %v1022 = vsub.f32 %v1020, %v1018
      %s1023 = sadd.s32 %s416, 3
      %s1024 = sld [smem:[#allocation3 + %s1023]]
      %v1025 = vstv %s1024
      %v1026 = vsub.f32 %v1021, %v1025
      %v1027 = vsub.f32 %v1022, %v1025
      %v1028 = vmax.f32 %v1026, 0.0
      %v1029 = vmax.f32 %v1027, 0.0
      %v1030 = vadd.f32 %v827, %v1028
      %v1031 = vadd.f32 %v828, %v1029
      %v1032 = vadd.f32 %v947, 1e-08
      %v1033 = vadd.f32 %v948, 1e-08
      %v1034 = vrcp.pop %v1032
      %v1035 = vrcp.pop %v1033
      %v1036 = vmul.f32 %v1030, %v1034
      %v1037 = vmul.f32 %v1031, %v1035
      %vm1038 = vcmask 130048
      %1039 = vst.msk [vmem:[%s224] sm:$0xff] %vm1038, %v1036
      %1040 = vst.msk [vmem:[%s224 + $0x8] sm:$0xff] %vm1038, %v1037
      %s1041 = smul.u32 2, %s25
      %p1042 = scmp.lt.s32.totalorder %s24, 3
      %s1043 = scalar_select %p1042, %s24, 3
      %p1044 = scmp.lt.s32.totalorder %s1041, 1
      %s1045 = scalar_select %p1044, %s1041, 1
      %s1046 = smul.addr %s1043, 2
      %s1047 = sadd.s32 %s1045, %s1046
      %s1048 = smul.addr %s1047, 8
      %s1049 = scalar_lea.vmem %s3, %s1048
      // Predicated region
      $region29: #{fsim_forward.2} parent=27 // pred_check
        %p1050 = pneg %p108
      $region30: #{fsim_forward.2} parent=27 // pred_check_branch
        %1052 = sbr.rel (%p1050) target = $region32
      $region31: #{fsim_forward.2} parent=27 // pred_region
        %s1053 = smul.u32 2, %s25
      $region32: #{fsim_forward.2} parent=27 // pred_fallthru
        _
    $region28: #{fsim_forward.2} parent=5 // pred_fallthru
      _
    %p1054 = scmp.le.s32.totalorder 2, %s15
    // Predicated region
    $region33: #{fsim_forward.2} parent=5 // pred_check
      %p1055 = pneg %p1054
    $region34: #{fsim_forward.2} parent=5 // pred_check_branch
      %1057 = sbr.rel (%p1055) target = $region36
    $region35: #{fsim_forward.2} parent=5 // pred_region
      %s1058 = ssub.s32 %s15, 2
      // Predicated region
      $region37: #{fsim_forward.2} parent=35 // pred_check
        %p1059 = pneg %p114
      $region38: #{fsim_forward.2} parent=35 // pred_check_branch
        %1061 = sbr.rel (%p1059) target = $region40
      $region39: #{fsim_forward.2} parent=35 // pred_region
        %s1062 = smul.u32 2, %s27
        %p1063 = scmp.lt.s32.totalorder %s26, 3
        %s1064 = scalar_select %p1063, %s26, 3
        %p1065 = scmp.lt.s32.totalorder %s1062, 1
        %s1066 = scalar_select %p1065, %s1062, 1
        %s1067 = smul.addr %s1064, 2
        %s1068 = sadd.s32 %s1066, %s1067
        %s1069 = smul.addr %s1068, 8
        %s1070 = scalar_lea.vmem %s3, %s1069
      $region40: #{fsim_forward.2} parent=35 // pred_fallthru
        _
    $region36: #{fsim_forward.2} parent=5 // pred_fallthru
      _
  $region6: #{fsim_forward.2} parent=0 // loop_footer
    %s19 = sadd.s32 1, %s15
  $region7: #{fsim_forward.2} parent=0 // loop_footer_branch
    %14 = sbr.rel target = $region3
  $region8: #{fsim_forward.2} parent=0 // loop_exit
    _

// kernel: fsim_forward.3
$region0: #{fsim_forward.3}
  #allocation0 [shape = 'u32[]', space=smem, size = 0x4, offset = 0x4, fixed_abs, tag = 'smem constant byte address 0x4 - core index']
  #allocation1 [shape = 'u32[144,128]{1,0:T(1,128)}', space=vmem, size = 0x12000, scoped, tag = 'internal scratch']
  %s0 = inlined_call_operand.vmem [shape: f32[2,3,16,16], index: 0, kind: input, shape index: {}]
  %s1 = inlined_call_operand.vmem [shape: f32[2,3,16,16], index: 1, kind: input, shape index: {}]
  %s2 = inlined_call_operand.vmem [shape: f32[2,1,8,16], index: 2, kind: input, shape index: {}]
  %s3 = inlined_call_operand.vmem [shape: f32[2,16,16], index: 3, kind: input, shape index: {}]
  %s4 = inlined_call_operand.vmem [shape: f32[2,16,16], index: 4, kind: input, shape index: {}]
  %s5 = inlined_call_operand.vmem [shape: f32[2,1,8,128], index: 5, kind: output, shape index: {0}]
  %s6 = inlined_call_operand.vmem [shape: f32[2,1,8,128], index: 6, kind: output, shape index: {1}]
  %7 = xla_tuple %s5, %s6
  %s8 = sld [smem:[#allocation0]]
  $region61: #{fsim_forward.3} parent=0
    _
  %s10 = ssub.s32 1, %s8
  %s11 = scalar_select 0, %s10, %s8
  loop: start=0, step=1, limit=4
  $region2: #{fsim_forward.3} parent=0 // loop_pre_header
    _
  $region3: #{fsim_forward.3} parent=0 // loop_header
    %s13 = sphi 0, %s17
    %p14 = scmp.ge.s32.totalorder %s13, 4
    %s20 = sphi 0, %s32
    %s21 = sphi 0, %s28
    %s22 = sphi 0, %s20
    %s23 = sphi 0, %s21
    %s24 = sphi 0, %s22
    %s25 = sphi 0, %s23
    %s37 = sphi 0, %s39
    %s40 = sphi 0, %s37
    %s41 = sphi 0, %s40
    %s57 = sphi 0, %s41
    %s65 = sphi 0, %s67
    %s68 = sphi 0, %s65
    %s69 = sphi 0, %s68
    %s85 = sphi 0, %s69
    %s93 = sphi 0, %s95
    %s96 = sphi 0, %s93
    %s97 = sphi 0, %s96
    %s113 = sphi 0, %s97
    %s121 = sphi 0, %s123
    %s124 = sphi 0, %s121
    %s125 = sphi 0, %s124
    %s141 = sphi 0, %s125
    %s149 = sphi 0, %s151
    %s152 = sphi 0, %s149
    %s153 = sphi 0, %s152
    %s169 = sphi 0, %s153
    %s177 = sphi 0, %s179
    %s180 = sphi 0, %s177
    %s181 = sphi 0, %s180
    %s197 = sphi 0, %s181
    %s205 = sphi 0, %s207
    %s208 = sphi 0, %s205
    %s209 = sphi 0, %s208
    %s225 = sphi 0, %s209
  $region4: #{fsim_forward.3} parent=0 // loop_header_branch
    %16 = sbr.rel (%p14) target = $region8
  $region5: #{fsim_forward.3} parent=0 // loop_body
    %s18 = ssub.s32 %s13, 1
    %s19 = ssub.s32 %s13, 2
    %s26 = sadd.s32 1, %s21
    %p27 = scmp.ge.s32.totalorder %s26, 1
    %s28 = scalar_select %p27, 0, %s26
    %s29 = sadd.s32 1, %s20
    %s30 = scalar_select %p27, %s29, %s20
    %p31 = scmp.ge.s32.totalorder %s30, 2
    %s32 = scalar_select %p31, 0, %s30
    %s33 = ssub.s32 %s20, %s32
    %s34 = ssub.s32 %s21, %s28
    %s35 = sor.u32 %s33, %s34
    %p36 = scmp.eq.s32.totalorder %s35, 0
    %s38 = sadd.s32 %s37, 1
    %s39 = scalar_select %p36, %s37, %s38
    %p42 = pneg %p36
    %p43 = scmp.eq.s32.totalorder %s13, 1
    %p44 = por %p42, %p43
    %p45 = scmp.ne.s32.totalorder %s37, %s40
    %p46 = scmp.eq.s32.totalorder %s13, 0
    %p47 = por %p45, %p46
    %p48 = scmp.ne.s32.totalorder %s37, %s40
    %p49 = scmp.eq.s32.totalorder %s18, 1
    %p50 = por %p48, %p49
    %p51 = scmp.ne.s32.totalorder %s40, %s41
    %p52 = scmp.eq.s32.totalorder %s18, 0
    %p53 = por %p51, %p52
    %p54 = scmp.ne.s32.totalorder %s40, %s41
    %p55 = scmp.eq.s32.totalorder %s19, 1
    %p56 = por %p54, %p55
    %p58 = scmp.ne.s32.totalorder %s41, %s57
    %p59 = scmp.eq.s32.totalorder %s19, 0
    %p60 = por %p58, %p59
    %s61 = ssub.s32 %s20, %s32
    %s62 = ssub.s32 %s21, %s28
    %s63 = sor.u32 %s61, %s62
    %p64 = scmp.eq.s32.totalorder %s63, 0
    %s66 = sadd.s32 %s65, 1
    %s67 = scalar_select %p64, %s65, %s66
    %p70 = pneg %p64
    %p71 = scmp.eq.s32.totalorder %s13, 1
    %p72 = por %p70, %p71
    %p73 = scmp.ne.s32.totalorder %s65, %s68
    %p74 = scmp.eq.s32.totalorder %s13, 0
    %p75 = por %p73, %p74
    %p76 = scmp.ne.s32.totalorder %s65, %s68
    %p77 = scmp.eq.s32.totalorder %s18, 1
    %p78 = por %p76, %p77
    %p79 = scmp.ne.s32.totalorder %s68, %s69
    %p80 = scmp.eq.s32.totalorder %s18, 0
    %p81 = por %p79, %p80
    %p82 = scmp.ne.s32.totalorder %s68, %s69
    %p83 = scmp.eq.s32.totalorder %s19, 1
    %p84 = por %p82, %p83
    %p86 = scmp.ne.s32.totalorder %s69, %s85
    %p87 = scmp.eq.s32.totalorder %s19, 0
    %p88 = por %p86, %p87
    %s89 = ssub.s32 %s20, %s32
    %s90 = ssub.s32 %s21, %s28
    %s91 = sor.u32 %s89, %s90
    %p92 = scmp.eq.s32.totalorder %s91, 0
    %s94 = sadd.s32 %s93, 1
    %s95 = scalar_select %p92, %s93, %s94
    %p98 = pneg %p92
    %p99 = scmp.eq.s32.totalorder %s13, 1
    %p100 = por %p98, %p99
    %p101 = scmp.ne.s32.totalorder %s93, %s96
    %p102 = scmp.eq.s32.totalorder %s13, 0
    %p103 = por %p101, %p102
    %p104 = scmp.ne.s32.totalorder %s93, %s96
    %p105 = scmp.eq.s32.totalorder %s18, 1
    %p106 = por %p104, %p105
    %p107 = scmp.ne.s32.totalorder %s96, %s97
    %p108 = scmp.eq.s32.totalorder %s18, 0
    %p109 = por %p107, %p108
    %p110 = scmp.ne.s32.totalorder %s96, %s97
    %p111 = scmp.eq.s32.totalorder %s19, 1
    %p112 = por %p110, %p111
    %p114 = scmp.ne.s32.totalorder %s97, %s113
    %p115 = scmp.eq.s32.totalorder %s19, 0
    %p116 = por %p114, %p115
    %s117 = ssub.s32 %s20, %s32
    %s118 = ssub.s32 %s21, %s28
    %s119 = sor.u32 %s117, %s118
    %p120 = scmp.eq.s32.totalorder %s119, 0
    %s122 = sadd.s32 %s121, 1
    %s123 = scalar_select %p120, %s121, %s122
    %p126 = pneg %p120
    %p127 = scmp.eq.s32.totalorder %s13, 1
    %p128 = por %p126, %p127
    %p129 = scmp.ne.s32.totalorder %s121, %s124
    %p130 = scmp.eq.s32.totalorder %s13, 0
    %p131 = por %p129, %p130
    %p132 = scmp.ne.s32.totalorder %s121, %s124
    %p133 = scmp.eq.s32.totalorder %s18, 1
    %p134 = por %p132, %p133
    %p135 = scmp.ne.s32.totalorder %s124, %s125
    %p136 = scmp.eq.s32.totalorder %s18, 0
    %p137 = por %p135, %p136
    %p138 = scmp.ne.s32.totalorder %s124, %s125
    %p139 = scmp.eq.s32.totalorder %s19, 1
    %p140 = por %p138, %p139
    %p142 = scmp.ne.s32.totalorder %s125, %s141
    %p143 = scmp.eq.s32.totalorder %s19, 0
    %p144 = por %p142, %p143
    %s145 = ssub.s32 %s20, %s32
    %s146 = ssub.s32 %s21, %s28
    %s147 = sor.u32 %s145, %s146
    %p148 = scmp.eq.s32.totalorder %s147, 0
    %s150 = sadd.s32 %s149, 1
    %s151 = scalar_select %p148, %s149, %s150
    %p154 = pneg %p148
    %p155 = scmp.eq.s32.totalorder %s13, 1
    %p156 = por %p154, %p155
    %p157 = scmp.ne.s32.totalorder %s149, %s152
    %p158 = scmp.eq.s32.totalorder %s13, 0
    %p159 = por %p157, %p158
    %p160 = scmp.ne.s32.totalorder %s149, %s152
    %p161 = scmp.eq.s32.totalorder %s18, 1
    %p162 = por %p160, %p161
    %p163 = scmp.ne.s32.totalorder %s152, %s153
    %p164 = scmp.eq.s32.totalorder %s18, 0
    %p165 = por %p163, %p164
    %p166 = scmp.ne.s32.totalorder %s152, %s153
    %p167 = scmp.eq.s32.totalorder %s19, 1
    %p168 = por %p166, %p167
    %p170 = scmp.ne.s32.totalorder %s153, %s169
    %p171 = scmp.eq.s32.totalorder %s19, 0
    %p172 = por %p170, %p171
    %s173 = ssub.s32 %s20, %s32
    %s174 = ssub.s32 %s21, %s28
    %s175 = sor.u32 %s173, %s174
    %p176 = scmp.eq.s32.totalorder %s175, 0
    %s178 = sadd.s32 %s177, 1
    %s179 = scalar_select %p176, %s177, %s178
    %p182 = pneg %p176
    %p183 = scmp.eq.s32.totalorder %s13, 1
    %p184 = por %p182, %p183
    %p185 = scmp.ne.s32.totalorder %s177, %s180
    %p186 = scmp.eq.s32.totalorder %s13, 0
    %p187 = por %p185, %p186
    %p188 = scmp.ne.s32.totalorder %s177, %s180
    %p189 = scmp.eq.s32.totalorder %s18, 1
    %p190 = por %p188, %p189
    %p191 = scmp.ne.s32.totalorder %s180, %s181
    %p192 = scmp.eq.s32.totalorder %s18, 0
    %p193 = por %p191, %p192
    %p194 = scmp.ne.s32.totalorder %s180, %s181
    %p195 = scmp.eq.s32.totalorder %s19, 1
    %p196 = por %p194, %p195
    %p198 = scmp.ne.s32.totalorder %s181, %s197
    %p199 = scmp.eq.s32.totalorder %s19, 0
    %p200 = por %p198, %p199
    %s201 = ssub.s32 %s20, %s32
    %s202 = ssub.s32 %s21, %s28
    %s203 = sor.u32 %s201, %s202
    %p204 = scmp.eq.s32.totalorder %s203, 0
    %s206 = sadd.s32 %s205, 1
    %s207 = scalar_select %p204, %s205, %s206
    %p210 = pneg %p204
    %p211 = scmp.eq.s32.totalorder %s13, 1
    %p212 = por %p210, %p211
    %p213 = scmp.ne.s32.totalorder %s205, %s208
    %p214 = scmp.eq.s32.totalorder %s13, 0
    %p215 = por %p213, %p214
    %p216 = scmp.ne.s32.totalorder %s205, %s208
    %p217 = scmp.eq.s32.totalorder %s18, 1
    %p218 = por %p216, %p217
    %p219 = scmp.ne.s32.totalorder %s208, %s209
    %p220 = scmp.eq.s32.totalorder %s18, 0
    %p221 = por %p219, %p220
    %p222 = scmp.ne.s32.totalorder %s208, %s209
    %p223 = scmp.eq.s32.totalorder %s19, 1
    %p224 = por %p222, %p223
    %p226 = scmp.ne.s32.totalorder %s209, %s225
    %p227 = scmp.eq.s32.totalorder %s19, 0
    %p228 = por %p226, %p227
    %p229 = scmp.le.s32.totalorder 1, %s13
    %p230 = scmp.lt.s32.totalorder %s13, 3
    %p231 = pnand %p229, %p230
    %p232 = pneg %p231
    // Predicated region
    $region9: #{fsim_forward.3} parent=5 // pred_check
      _
    $region10: #{fsim_forward.3} parent=5 // pred_check_branch
      %234 = sbr.rel (%p231) target = $region12
    $region11: #{fsim_forward.3} parent=5 // pred_region
      %s235 = ssub.s32 %s13, 1
    $region12: #{fsim_forward.3} parent=5 // pred_fallthru
      _
    %p236 = scmp.lt.s32.totalorder %s13, 2
    // Predicated region
    $region13: #{fsim_forward.3} parent=5 // pred_check
      %p237 = pneg %p236
    $region14: #{fsim_forward.3} parent=5 // pred_check_branch
      %239 = sbr.rel (%p237) target = $region16
    $region15: #{fsim_forward.3} parent=5 // pred_region
      // Predicated region
      $region17: #{fsim_forward.3} parent=15 // pred_check
        %p240 = pneg %p47
      $region18: #{fsim_forward.3} parent=15 // pred_check_branch
        %242 = sbr.rel (%p240) target = $region20
      $region19: #{fsim_forward.3} parent=15 // pred_region
        %s243 = smul.u32 2, %s21
        %p244 = scmp.lt.s32.totalorder %s20, 1
        %s245 = scalar_select %p244, %s20, 1
        %p246 = scmp.lt.s32.totalorder %s243, 1
        %s247 = scalar_select %p246, %s243, 1
        %s248 = smul.addr %s245, 6
        %s249 = sadd.s32 %s247, %s248
        %s250 = smul.addr %s249, 8
        %s251 = scalar_lea.vmem %s0, %s250
        %s252 = smul.u32 2, %s21
      $region20: #{fsim_forward.3} parent=15 // pred_fallthru
        _
      // Predicated region
      $region21: #{fsim_forward.3} parent=15 // pred_check
        %p253 = pneg %p75
      $region22: #{fsim_forward.3} parent=15 // pred_check_branch
        %255 = sbr.rel (%p253) target = $region24
      $region23: #{fsim_forward.3} parent=15 // pred_region
        %s256 = smul.u32 2, %s21
        %p257 = scmp.lt.s32.totalorder %s20, 1
        %s258 = scalar_select %p257, %s20, 1
        %p259 = scmp.lt.s32.totalorder %s256, 1
        %s260 = scalar_select %p259, %s256, 1
        %s261 = smul.addr %s258, 6
        %s262 = sadd.s32 %s260, %s261
        %s263 = smul.addr %s262, 8
        %s264 = scalar_lea.vmem %s1, %s263
        %s265 = smul.u32 2, %s21
      $region24: #{fsim_forward.3} parent=15 // pred_fallthru
        _
      // Predicated region
      $region25: #{fsim_forward.3} parent=15 // pred_check
        %p266 = pneg %p103
      $region26: #{fsim_forward.3} parent=15 // pred_check_branch
        %268 = sbr.rel (%p266) target = $region28
      $region27: #{fsim_forward.3} parent=15 // pred_region
        %p269 = scmp.lt.s32.totalorder %s20, 1
        %s270 = scalar_select %p269, %s20, 1
        %p271 = scmp.lt.s32.totalorder %s21, 0
        %s272 = scalar_select %p271, %s21, 0
        %s273 = sadd.s32 %s272, %s270
        %s274 = smul.addr %s273, 8
        %s275 = scalar_lea.vmem %s2, %s274
      $region28: #{fsim_forward.3} parent=15 // pred_fallthru
        _
      // Predicated region
      $region29: #{fsim_forward.3} parent=15 // pred_check
        %p276 = pneg %p131
      $region30: #{fsim_forward.3} parent=15 // pred_check_branch
        %278 = sbr.rel (%p276) target = $region32
      $region31: #{fsim_forward.3} parent=15 // pred_region
        %s279 = smul.u32 2, %s21
        %p280 = scmp.lt.s32.totalorder %s20, 1
        %s281 = scalar_select %p280, %s20, 1
        %p282 = scmp.lt.s32.totalorder %s279, 1
        %s283 = scalar_select %p282, %s279, 1
        %s284 = smul.addr %s281, 2
        %s285 = sadd.s32 %s283, %s284
        %s286 = smul.addr %s285, 8
        %s287 = scalar_lea.vmem %s3, %s286
        %s288 = smul.u32 2, %s21
      $region32: #{fsim_forward.3} parent=15 // pred_fallthru
        _
      // Predicated region
      $region33: #{fsim_forward.3} parent=15 // pred_check
        %p289 = pneg %p159
      $region34: #{fsim_forward.3} parent=15 // pred_check_branch
        %291 = sbr.rel (%p289) target = $region36
      $region35: #{fsim_forward.3} parent=15 // pred_region
        %s292 = smul.u32 2, %s21
        %p293 = scmp.lt.s32.totalorder %s20, 1
        %s294 = scalar_select %p293, %s20, 1
        %p295 = scmp.lt.s32.totalorder %s292, 1
        %s296 = scalar_select %p295, %s292, 1
        %s297 = smul.addr %s294, 2
        %s298 = sadd.s32 %s296, %s297
        %s299 = smul.addr %s298, 8
        %s300 = scalar_lea.vmem %s4, %s299
        %s301 = smul.u32 2, %s21
      $region36: #{fsim_forward.3} parent=15 // pred_fallthru
        _
    $region16: #{fsim_forward.3} parent=5 // pred_fallthru
      _
    %p302 = scmp.le.s32.totalorder 1, %s13
    %p303 = scmp.lt.s32.totalorder %s13, 3
    %p304 = pnand %p302, %p303
    %p305 = pneg %p304
    // Predicated region
    $region37: #{fsim_forward.3} parent=5 // pred_check
      _
    $region38: #{fsim_forward.3} parent=5 // pred_check_branch
      %307 = sbr.rel (%p304) target = $region40
    $region39: #{fsim_forward.3} parent=5 // pred_region
      %s308 = ssub.s32 %s13, 1
      %s309 = smul.u32 2, %s23
      %p310 = scmp.lt.s32.totalorder %s22, 1
      %s311 = scalar_select %p310, %s22, 1
      %p312 = scmp.lt.s32.totalorder %s309, 1
      %s313 = scalar_select %p312, %s309, 1
      %s314 = smul.addr %s311, 6
      %s315 = sadd.s32 %s313, %s314
      %s316 = smul.addr %s315, 8
      %s317 = scalar_lea.vmem %s0, %s316
      %p318 = pneg %p53
      %p319 = pneg %p50
      %s320 = smul.u32 2, %s23
      %p321 = scmp.lt.s32.totalorder %s22, 1
      %s322 = scalar_select %p321, %s22, 1
      %p323 = scmp.lt.s32.totalorder %s320, 1
      %s324 = scalar_select %p323, %s320, 1
      %s325 = smul.addr %s322, 6
      %s326 = sadd.s32 %s324, %s325
      %s327 = smul.addr %s326, 8
      %s328 = scalar_lea.vmem %s1, %s327
      %p329 = pneg %p81
      %p330 = pneg %p78
      %p331 = scmp.lt.s32.totalorder %s22, 1
      %s332 = scalar_select %p331, %s22, 1
      %p333 = scmp.lt.s32.totalorder %s23, 0
      %s334 = scalar_select %p333, %s23, 0
      %s335 = sadd.s32 %s334, %s332
      %s336 = smul.addr %s335, 8
      %s337 = scalar_lea.vmem %s2, %s336
      %p338 = pneg %p109
      %p339 = pneg %p106
      %s340 = smul.u32 2, %s23
      %p341 = scmp.lt.s32.totalorder %s22, 1
      %s342 = scalar_select %p341, %s22, 1
      %p343 = scmp.lt.s32.totalorder %s340, 1
      %s344 = scalar_select %p343, %s340, 1
      %s345 = smul.addr %s342, 2
      %s346 = sadd.s32 %s344, %s345
      %s347 = smul.addr %s346, 8
      %s348 = scalar_lea.vmem %s3, %s347
      %p349 = pneg %p137
      %p350 = pneg %p134
      %s351 = smul.u32 2, %s23
      %p352 = scmp.lt.s32.totalorder %s22, 1
      %s353 = scalar_select %p352, %s22, 1
      %p354 = scmp.lt.s32.totalorder %s351, 1
      %s355 = scalar_select %p354, %s351, 1
      %s356 = smul.addr %s353, 2
      %s357 = sadd.s32 %s355, %s356
      %s358 = smul.addr %s357, 8
      %s359 = scalar_lea.vmem %s4, %s358
      %p360 = pneg %p165
      %p361 = pneg %p162
      %p362 = pneg %p193
      %p363 = pneg %p190
      %p364 = scmp.lt.s32.totalorder %s22, 1
      %s365 = scalar_select %p364, %s22, 1
      %p366 = scmp.lt.s32.totalorder %s23, 0
      %s367 = scalar_select %p366, %s23, 0
      %s368 = sadd.s32 %s367, %s365
      %s369 = smul.addr %s368, 8
      %s370 = scalar_lea.vmem %s5, %s369
      %p371 = pneg %p221
      %p372 = pneg %p218
      %p373 = scmp.lt.s32.totalorder %s22, 1
      %s374 = scalar_select %p373, %s22, 1
      %p375 = scmp.lt.s32.totalorder %s23, 0
      %s376 = scalar_select %p375, %s23, 0
      %s377 = sadd.s32 %s376, %s374
      %s378 = smul.addr %s377, 8
      %s379 = scalar_lea.vmem %s6, %s378
      %s380 = smul.u32 2, %s23
      %p381 = scmp.lt.s32.totalorder %s22, 1
      %s382 = scalar_select %p381, %s22, 1
      %p383 = scmp.lt.s32.totalorder %s380, 1
      %s384 = scalar_select %p383, %s380, 1
      %s385 = smul.addr %s382, 6
      %s386 = sadd.s32 %s384, %s385
      %s387 = smul.addr %s386, 8
      %s388 = scalar_lea.vmem %s0, %s387
      %s389 = smul.u32 2, %s23
      %s390 = smul.u32 2, %s23
      %p391 = scmp.lt.s32.totalorder %s22, 1
      %s392 = scalar_select %p391, %s22, 1
      %p393 = scmp.lt.s32.totalorder %s390, 1
      %s394 = scalar_select %p393, %s390, 1
      %s395 = smul.addr %s392, 6
      %s396 = sadd.s32 %s394, %s395
      %s397 = smul.addr %s396, 8
      %s398 = scalar_lea.vmem %s1, %s397
      %s399 = smul.u32 2, %s23
      %p400 = scmp.lt.s32.totalorder %s22, 1
      %s401 = scalar_select %p400, %s22, 1
      %p402 = scmp.lt.s32.totalorder %s23, 0
      %s403 = scalar_select %p402, %s23, 0
      %s404 = sadd.s32 %s403, %s401
      %s405 = smul.addr %s404, 8
      %s406 = scalar_lea.vmem %s2, %s405
      %s407 = smul.u32 2, %s23
      %p408 = scmp.lt.s32.totalorder %s22, 1
      %s409 = scalar_select %p408, %s22, 1
      %p410 = scmp.lt.s32.totalorder %s407, 1
      %s411 = scalar_select %p410, %s407, 1
      %s412 = smul.addr %s409, 2
      %s413 = sadd.s32 %s411, %s412
      %s414 = smul.addr %s413, 8
      %s415 = scalar_lea.vmem %s3, %s414
      %s416 = smul.u32 2, %s23
      %s417 = smul.u32 2, %s23
      %p418 = scmp.lt.s32.totalorder %s22, 1
      %s419 = scalar_select %p418, %s22, 1
      %p420 = scmp.lt.s32.totalorder %s417, 1
      %s421 = scalar_select %p420, %s417, 1
      %s422 = smul.addr %s419, 2
      %s423 = sadd.s32 %s421, %s422
      %s424 = smul.addr %s423, 8
      %s425 = scalar_lea.vmem %s4, %s424
      %s426 = smul.u32 2, %s23
      %p427 = scmp.lt.s32.totalorder %s22, 1
      %s428 = scalar_select %p427, %s22, 1
      %p429 = scmp.lt.s32.totalorder %s23, 0
      %s430 = scalar_select %p429, %s23, 0
      %s431 = sadd.s32 %s430, %s428
      %s432 = smul.addr %s431, 8
      %s433 = scalar_lea.vmem %s5, %s432
      %p434 = scmp.lt.s32.totalorder %s22, 1
      %s435 = scalar_select %p434, %s22, 1
      %p436 = scmp.lt.s32.totalorder %s23, 0
      %s437 = scalar_select %p436, %s23, 0
      %s438 = sadd.s32 %s437, %s435
      %s439 = smul.addr %s438, 8
      %s440 = scalar_lea.vmem %s6, %s439
      %v441 = vlaneseq
      %v442 = vshrl.u32 %v441, 7
      %v443 = vadd.s32 %v442, 8
      %v444 = vlaneseq
      %v445 = vand.u32 %v444, 127
      %s446 = smul.u32 %s23, 16
      %v447 = vstv %s446
      %v448 = vadd.s32 %v442, %v447
      %v449 = vadd.s32 %v443, %v447
      %vm450 = vcmp.lt.s32.totalorder %v448, 16
      %vm451 = vcmp.lt.s32.totalorder %v449, 16
      %vm452 = vcmp.gt.s32.totalorder %v448, 0
      %vm453 = vcmp.gt.s32.totalorder %v449, 0
      %vm454 = vcmp.lt.s32.totalorder %v448, 15
      %vm455 = vcmp.lt.s32.totalorder %v449, 15
      %vm456 = vcmp.gt.s32.totalorder %v445, 0
      %vm457 = vcmp.lt.s32.totalorder %v445, 15
      %v458 = vld [vmem:[%s406] sm:$0xff]
      %v459 = vld [vmem:[%s388] sm:$0xff]
      %v460 = vld [vmem:[%s388 + $0x8] sm:$0xff]
      %v461 = vrot.slane %v459, 7
      %v462 = vrot.slane %v460, 7
      %vm463 = vcmp.lt.s32.totalorder %v442, 1
      %v464 = vsel %vm463, %v461, %v462
      %v465 = vsel %vm463, %v462, %v461
      %vm466 = vcmp.eq.s32.totalorder %v442, 0
      %vm467 = vcmp.eq.s32.totalorder %v443, 0
      %v468 = vlaneseq
      %v469 = vshrl.u32 %v468, 7
      %v470 = vsub.s32 0, %v469
      %v471 = vrot.slane %v458, %v470
      %v472 = vsel %vm466, %v471, %v465
      %v473 = vsel %vm467, %v471, %v464
      %v474 = vsel %vm452, %v472, 0.0
      %v475 = vsel %vm453, %v473, 0.0
      %v476 = vrot.slane %v459, 1
      %v477 = vrot.slane %v460, 1
      %vm478 = vcmp.lt.s32.totalorder %v442, 7
      %v479 = vsel %vm478, %v476, %v477
      %v480 = vsel %vm478, %v477, %v476
      %vm481 = vcmp.eq.s32.totalorder %v442, 15
      %vm482 = vcmp.eq.s32.totalorder %v443, 15
      %v483 = vlaneseq
      %v484 = vshrl.u32 %v483, 7
      %v485 = vsub.s32 1, %v484
      %v486 = vrot.slane %v458, %v485
      %v487 = vsel %vm481, %v486, %v479
      %v488 = vsel %vm482, %v486, %v480
      %v489 = vsel %vm454, %v487, 0.0
      %v490 = vsel %vm455, %v488, 0.0
      %v491 = vadd.f32 %v474, %v489
      %v492 = vadd.f32 %v475, %v490
      %v493 = vmul.f32 %v491, 0.1875
      %v494 = vmul.f32 %v492, 0.1875
      %v495 = vmul.f32 %v459, 0.625
      %v496 = vmul.f32 %v460, 0.625
      %v497 = vadd.f32 %v493, %v495
      %v498 = vadd.f32 %v494, %v496
      %vm499 = vcmask 1047680
      %500 = vrot.lane.b32.xlu0 %v497, 16
      %v501 = vpop.permute.xlu0 %500
      %v502 = vsel %vm499, %v501, %v497
      %503 = vrot.lane.b32.xlu0 %v498, 16
      %v504 = vpop.permute.xlu0 %503
      %v505 = vsel %vm499, %v504, %v498
      %506 = vrot.lane.b32.xlu0 %v502, 16
      %v507 = vpop.permute.xlu0 %506
      %508 = vrot.lane.b32.xlu0 %v505, 16
      %v509 = vpop.permute.xlu0 %508
      %v510 = vsel %vm499, %v507, %v497
      %v511 = vsel %vm499, %v509, %v498
      %514 = vrot.lane.b32.xlu0 %v510, 127
      %v515 = vpop.permute.xlu0 %514
      %516 = vrot.lane.b32.xlu0 %v511, 127
      %v517 = vpop.permute.xlu0 %516
      %v520 = vsel %vm457, %v515, 0.0
      %v521 = vsel %vm457, %v517, 0.0
      %522 = vrot.lane.b32.xlu0 %v510, 113
      %v523 = vpop.permute.xlu0 %522
      %524 = vrot.lane.b32.xlu0 %v511, 113
      %v525 = vpop.permute.xlu0 %524
      %v528 = vsel %vm456, %v523, 0.0
      %v529 = vsel %vm456, %v525, 0.0
      %v530 = vsub.f32 %v520, %v528
      %v531 = vsub.f32 %v521, %v529
      %532 = vrot.lane.b32.xlu0 %v459, 16
      %v533 = vpop.permute.xlu0 %532
      %v534 = vsel %vm499, %v533, %v459
      %535 = vrot.lane.b32.xlu0 %v460, 16
      %v536 = vpop.permute.xlu0 %535
      %v537 = vsel %vm499, %v536, %v460
      %538 = vrot.lane.b32.xlu0 %v534, 16
      %v539 = vpop.permute.xlu0 %538
      %540 = vrot.lane.b32.xlu0 %v537, 16
      %v541 = vpop.permute.xlu0 %540
      %v542 = vsel %vm499, %v539, %v459
      %v543 = vsel %vm499, %v541, %v460
      %546 = vrot.lane.b32.xlu0 %v542, 113
      %v547 = vpop.permute.xlu0 %546
      %548 = vrot.lane.b32.xlu0 %v543, 113
      %v549 = vpop.permute.xlu0 %548
      %v552 = vsel %vm456, %v547, 0.0
      %v553 = vsel %vm456, %v549, 0.0
      %554 = vrot.lane.b32.xlu0 %v542, 127
      %v555 = vpop.permute.xlu0 %554
      %556 = vrot.lane.b32.xlu0 %v543, 127
      %v557 = vpop.permute.xlu0 %556
      %v560 = vsel %vm457, %v555, 0.0
      %v561 = vsel %vm457, %v557, 0.0
      %v562 = vadd.f32 %v552, %v560
      %v563 = vadd.f32 %v553, %v561
      %v564 = vmul.f32 %v562, 0.1875
      %v565 = vmul.f32 %v563, 0.1875
      %v566 = vadd.f32 %v564, %v495
      %v567 = vadd.f32 %v565, %v496
      %v568 = vrot.slane %v566, 1
      %v569 = vrot.slane %v567, 1
      %v570 = vsel %vm478, %v568, %v569
      %v571 = vsel %vm478, %v569, %v568
      %v572 = vlaneseq
      %v573 = vshrl.u32 %v572, 7
      %v574 = vsub.s32 5, %v573
      %v575 = vrot.slane %v458, %v574
      %v576 = vsel %vm481, %v575, %v570
      %v577 = vsel %vm482, %v575, %v571
      %v578 = vsel %vm454, %v576, 0.0
      %v579 = vsel %vm455, %v577, 0.0
      %v580 = vrot.slane %v566, 7
      %v581 = vrot.slane %v567, 7
      %v582 = vsel %vm463, %v580, %v581
      %v583 = vsel %vm463, %v581, %v580
      %v584 = vlaneseq
      %v585 = vshrl.u32 %v584, 7
      %v586 = vsub.s32 4, %v585
      %v587 = vrot.slane %v458, %v586
      %v588 = vsel %vm466, %v587, %v583
      %v589 = vsel %vm467, %v587, %v582
      %v590 = vsel %vm452, %v588, 0.0
      %v591 = vsel %vm453, %v589, 0.0
      %v592 = vsub.f32 %v578, %v590
      %v593 = vsub.f32 %v579, %v591
      %v594 = vmul.f32 %v530, %v530
      %v595 = vmul.f32 %v531, %v531
      %v596 = vmul.f32 %v592, %v592
      %v597 = vmul.f32 %v593, %v593
      %v598 = vadd.f32 %v594, %v596
      %v599 = vadd.f32 %v595, %v597
      %v600 = vrsqrt.pop %v598
      %v601 = vmul.f32 %v598, %v600
      %vm602 = vcmp.eq.f32.partialorder %v598, inf
      %v603 = vsel %vm602, %v598, %v601
      %vm604 = vcmp.eq.f32.partialorder %v598, 0.0
      %v605 = vand.u32 %v598, 2147483648
      %v606 = vsel %vm604, %v605, %v603
      %v607 = vrsqrt.pop %v599
      %v608 = vmul.f32 %v599, %v607
      %vm609 = vcmp.eq.f32.partialorder %v599, inf
      %v610 = vsel %vm609, %v599, %v608
      %vm611 = vcmp.eq.f32.partialorder %v599, 0.0
      %v612 = vand.u32 %v599, 2147483648
      %v613 = vsel %vm611, %v612, %v610
      %v614 = vld [vmem:[%s398] sm:$0xff]
      %v615 = vld [vmem:[%s398 + $0x8] sm:$0xff]
      %v616 = vrot.slane %v614, 7
      %v617 = vrot.slane %v615, 7
      %v618 = vsel %vm463, %v616, %v617
      %v619 = vsel %vm463, %v617, %v616
      %v620 = vlaneseq
      %v621 = vshrl.u32 %v620, 7
      %v622 = vsub.s32 2, %v621
      %v623 = vrot.slane %v458, %v622
      %v624 = vsel %vm466, %v623, %v619
      %v625 = vsel %vm467, %v623, %v618
      %v626 = vsel %vm452, %v624, 0.0
      %v627 = vsel %vm453, %v625, 0.0
      %v628 = vrot.slane %v614, 1
      %v629 = vrot.slane %v615, 1
      %v630 = vsel %vm478, %v628, %v629
      %v631 = vsel %vm478, %v629, %v628
      %v632 = vlaneseq
      %v633 = vshrl.u32 %v632, 7
      %v634 = vsub.s32 3, %v633
      %v635 = vrot.slane %v458, %v634
      %v636 = vsel %vm481, %v635, %v630
      %v637 = vsel %vm482, %v635, %v631
      %v638 = vsel %vm454, %v636, 0.0
      %v639 = vsel %vm455, %v637, 0.0
      %v640 = vadd.f32 %v626, %v638
      %v641 = vadd.f32 %v627, %v639
      %v642 = vmul.f32 %v640, 0.1875
      %v643 = vmul.f32 %v641, 0.1875
      %v644 = vmul.f32 %v614, 0.625
      %v645 = vmul.f32 %v615, 0.625
      %v646 = vadd.f32 %v642, %v644
      %v647 = vadd.f32 %v643, %v645
      %648 = vrot.lane.b32.xlu0 %v646, 16
      %v649 = vpop.permute.xlu0 %648
      %v650 = vsel %vm499, %v649, %v646
      %651 = vrot.lane.b32.xlu0 %v647, 16
      %v652 = vpop.permute.xlu0 %651
      %v653 = vsel %vm499, %v652, %v647
      %654 = vrot.lane.b32.xlu0 %v650, 16
      %v655 = vpop.permute.xlu0 %654
      %656 = vrot.lane.b32.xlu0 %v653, 16
      %v657 = vpop.permute.xlu0 %656
      %v658 = vsel %vm499, %v655, %v646
      %v659 = vsel %vm499, %v657, %v647
      %662 = vrot.lane.b32.xlu0 %v658, 127
      %v663 = vpop.permute.xlu0 %662
      %664 = vrot.lane.b32.xlu0 %v659, 127
      %v665 = vpop.permute.xlu0 %664
      %v668 = vsel %vm457, %v663, 0.0
      %v669 = vsel %vm457, %v665, 0.0
      %670 = vrot.lane.b32.xlu0 %v658, 113
      %v671 = vpop.permute.xlu0 %670
      %672 = vrot.lane.b32.xlu0 %v659, 113
      %v673 = vpop.permute.xlu0 %672
      %v676 = vsel %vm456, %v671, 0.0
      %v677 = vsel %vm456, %v673, 0.0
      %v678 = vsub.f32 %v668, %v676
      %v679 = vsub.f32 %v669, %v677
      %680 = vrot.lane.b32.xlu0 %v614, 16
      %v681 = vpop.permute.xlu0 %680
      %v682 = vsel %vm499, %v681, %v614
      %683 = vrot.lane.b32.xlu0 %v615, 16
      %v684 = vpop.permute.xlu0 %683
      %v685 = vsel %vm499, %v684, %v615
      %686 = vrot.lane.b32.xlu0 %v682, 16
      %v687 = vpop.permute.xlu0 %686
      %688 = vrot.lane.b32.xlu0 %v685, 16
      %v689 = vpop.permute.xlu0 %688
      %v690 = vsel %vm499, %v687, %v614
      %v691 = vsel %vm499, %v689, %v615
      %694 = vrot.lane.b32.xlu0 %v690, 113
      %v695 = vpop.permute.xlu0 %694
      %696 = vrot.lane.b32.xlu0 %v691, 113
      %v697 = vpop.permute.xlu0 %696
      %v700 = vsel %vm456, %v695, 0.0
      %v701 = vsel %vm456, %v697, 0.0
      %702 = vrot.lane.b32.xlu0 %v690, 127
      %v703 = vpop.permute.xlu0 %702
      %704 = vrot.lane.b32.xlu0 %v691, 127
      %v705 = vpop.permute.xlu0 %704
      %v708 = vsel %vm457, %v703, 0.0
      %v709 = vsel %vm457, %v705, 0.0
      %v710 = vadd.f32 %v700, %v708
      %v711 = vadd.f32 %v701, %v709
      %v712 = vmul.f32 %v710, 0.1875
      %v713 = vmul.f32 %v711, 0.1875
      %v714 = vadd.f32 %v712, %v644
      %v715 = vadd.f32 %v713, %v645
      %v716 = vrot.slane %v714, 1
      %v717 = vrot.slane %v715, 1
      %v718 = vsel %vm478, %v716, %v717
      %v719 = vsel %vm478, %v717, %v716
      %v720 = vlaneseq
      %v721 = vshrl.u32 %v720, 7
      %v722 = vsub.s32 7, %v721
      %v723 = vrot.slane %v458, %v722
      %v724 = vsel %vm481, %v723, %v718
      %v725 = vsel %vm482, %v723, %v719
      %v726 = vsel %vm454, %v724, 0.0
      %v727 = vsel %vm455, %v725, 0.0
      %v728 = vrot.slane %v714, 7
      %v729 = vrot.slane %v715, 7
      %v730 = vsel %vm463, %v728, %v729
      %v731 = vsel %vm463, %v729, %v728
      %v732 = vlaneseq
      %v733 = vshrl.u32 %v732, 7
      %v734 = vsub.s32 6, %v733
      %v735 = vrot.slane %v458, %v734
      %v736 = vsel %vm466, %v735, %v731
      %v737 = vsel %vm467, %v735, %v730
      %v738 = vsel %vm452, %v736, 0.0
      %v739 = vsel %vm453, %v737, 0.0
      %v740 = vsub.f32 %v726, %v738
      %v741 = vsub.f32 %v727, %v739
      %v742 = vmul.f32 %v678, %v678
      %v743 = vmul.f32 %v679, %v679
      %v744 = vmul.f32 %v740, %v740
      %v745 = vmul.f32 %v741, %v741
      %v746 = vadd.f32 %v742, %v744
      %v747 = vadd.f32 %v743, %v745
      %v748 = vrsqrt.pop %v746
      %v749 = vmul.f32 %v746, %v748
      %vm750 = vcmp.eq.f32.partialorder %v746, inf
      %v751 = vsel %vm750, %v746, %v749
      %vm752 = vcmp.eq.f32.partialorder %v746, 0.0
      %v753 = vand.u32 %v746, 2147483648
      %v754 = vsel %vm752, %v753, %v751
      %v755 = vrsqrt.pop %v747
      %v756 = vmul.f32 %v747, %v755
      %vm757 = vcmp.eq.f32.partialorder %v747, inf
      %v758 = vsel %vm757, %v747, %v756
      %vm759 = vcmp.eq.f32.partialorder %v747, 0.0
      %v760 = vand.u32 %v747, 2147483648
      %v761 = vsel %vm759, %v760, %v758
      %v762 = vld [vmem:[%s415] sm:$0xff]
      %v763 = vld [vmem:[%s415 + $0x8] sm:$0xff]
      %v764 = vld [vmem:[%s425] sm:$0xff]
      %v765 = vld [vmem:[%s425 + $0x8] sm:$0xff]
      %v766 = vmax.f32 %v762, %v764
      %v767 = vmax.f32 %v763, %v765
      %v768 = vmul.f32 %v762, 2.0
      %v769 = vmul.f32 %v763, 2.0
      %v770 = vmul.f32 %v768, %v764
      %v771 = vmul.f32 %v769, %v765
      %v772 = vadd.f32 %v770, 0.85
      %v773 = vadd.f32 %v771, 0.85
      %v774 = vmul.f32 %v606, 2.0
      %v775 = vmul.f32 %v613, 2.0
      %v776 = vmul.f32 %v774, %v754
      %v777 = vmul.f32 %v775, %v761
      %v778 = vadd.f32 %v776, 0.0024605922
      %v779 = vadd.f32 %v777, 0.0024605922
      %v780 = vmul.f32 %v772, %v778
      %v781 = vmul.f32 %v773, %v779
      %v782 = vmul.f32 %v762, %v762
      %v783 = vmul.f32 %v763, %v763
      %v784 = vmul.f32 %v764, %v764
      %v785 = vmul.f32 %v765, %v765
      %v786 = vadd.f32 %v782, %v784
      %v787 = vadd.f32 %v783, %v785
      %v788 = vadd.f32 %v786, 0.85
      %v789 = vadd.f32 %v787, 0.85
      %v790 = vmul.f32 %v606, %v606
      %v791 = vmul.f32 %v613, %v613
      %v792 = vmul.f32 %v754, %v754
      %v793 = vmul.f32 %v761, %v761
      %v794 = vadd.f32 %v790, %v792
      %v795 = vadd.f32 %v791, %v793
      %v796 = vadd.f32 %v794, 0.0024605922
      %v797 = vadd.f32 %v795, 0.0024605922
      %v798 = vmul.f32 %v788, %v796
      %v799 = vmul.f32 %v789, %v797
      %v800 = vrcp.pop %v798
      %v801 = vmul.f32 %v780, %v800
      %v802 = vrcp.pop %v799
      %v803 = vmul.f32 %v781, %v802
      %s804 = scalar_lea.vmem %s388, 16
      %v805 = vld [vmem:[%s804] sm:$0xff]
      %v806 = vld [vmem:[%s804 + $0x8] sm:$0xff]
      %s807 = scalar_lea.vmem %s388, 32
      %v808 = vld [vmem:[%s807] sm:$0xff]
      %v809 = vld [vmem:[%s807 + $0x8] sm:$0xff]
      %s810 = scalar_lea.vmem %s398, 16
      %v811 = vld [vmem:[%s810] sm:$0xff]
      %v812 = vld [vmem:[%s810 + $0x8] sm:$0xff]
      %s813 = scalar_lea.vmem %s398, 32
      %v814 = vld [vmem:[%s813] sm:$0xff]
      %v815 = vld [vmem:[%s813 + $0x8] sm:$0xff]
      %v816 = vmul.f32 %v805, 2.0
      %v817 = vmul.f32 %v806, 2.0
      %v818 = vmul.f32 %v816, %v811
      %v819 = vmul.f32 %v817, %v812
      %v820 = vadd.f32 %v818, 0.00307574
      %v821 = vadd.f32 %v819, 0.00307574
      %v822 = vmul.f32 %v808, 2.0
      %v823 = vmul.f32 %v809, 2.0
      %v824 = vmul.f32 %v822, %v814
      %v825 = vmul.f32 %v823, %v815
      %v826 = vadd.f32 %v824, 0.00307574
      %v827 = vadd.f32 %v825, 0.00307574
      %v828 = vmul.f32 %v820, %v826
      %v829 = vmul.f32 %v821, %v827
      %v830 = vmul.f32 %v805, %v805
      %v831 = vmul.f32 %v806, %v806
      %v832 = vmul.f32 %v811, %v811
      %v833 = vmul.f32 %v812, %v812
      %v834 = vadd.f32 %v830, %v832
      %v835 = vadd.f32 %v831, %v833
      %v836 = vadd.f32 %v834, 0.00307574
      %v837 = vadd.f32 %v835, 0.00307574
      %v838 = vmul.f32 %v808, %v808
      %v839 = vmul.f32 %v809, %v809
      %v840 = vmul.f32 %v814, %v814
      %v841 = vmul.f32 %v815, %v815
      %v842 = vadd.f32 %v838, %v840
      %v843 = vadd.f32 %v839, %v841
      %v844 = vadd.f32 %v842, 0.00307574
      %v845 = vadd.f32 %v843, 0.00307574
      %v846 = vmul.f32 %v836, %v844
      %v847 = vmul.f32 %v837, %v845
      %v848 = vrcp.pop %v846
      %v849 = vmul.f32 %v828, %v848
      %v850 = vrcp.pop %v847
      %v851 = vmul.f32 %v829, %v850
      %v852 = vand.u32 2147483647, %v849
      %v853 = vand.u32 2147483647, %v851
      %v854 = vmax.f32 %v852, 1e-30
      %v855 = vmax.f32 %v853, 1e-30
      %v856 = vlog2.pop %v854
      %v857 = vmul.f32 %v856, 0.6931472
      %v858 = vlog2.pop %v855
      %v859 = vmul.f32 %v858, 0.6931472
      %v860 = vmul.f32 %v857, 0.03
      %v861 = vmul.f32 %v859, 0.03
      %v862 = vmul.f32 %v860, 1.442695
      %v863 = vpow.pop %v862
      %v864 = vmul.f32 %v861, 1.442695
      %v865 = vpow.pop %v864
      %v866 = vmul.f32 %v801, %v863
      %v867 = vmul.f32 %v803, %v865
      %vm868 = vcmp.lt.f32.partialorder %v849, 0.0
      %vm869 = vcmp.lt.f32.partialorder %v851, 0.0
      %v870 = vsel %vm868, 0.99556196, 1.0
      %v871 = vsel %vm869, 0.99556196, 1.0
      %v872 = vmul.f32 %v866, %v870
      %v873 = vmul.f32 %v867, %v871
      %v874 = vmul.f32 %v872, %v766
      %v875 = vmul.f32 %v873, %v767
      %v876 = vsel %vm450, %v874, 0.0
      %v877 = vsel %vm451, %v875, 0.0
      %vm878 = vcmask 130048
      %v879 = vsel %vm878, %v876, 0.0
      %v880 = vsel %vm878, %v877, 0.0
      %v881 = vadd.f32 %v879, %v880
      %882 = vadd.xlane.f32.xlu0 %v881
      %v883 = vpop.xlane.xlu0 %882
      %v884 = vrot.slane %v883, 4
      %v885 = vadd.f32 %v883, %v884
      %v886 = vrot.slane %v885, 2
      %v887 = vadd.f32 %v885, %v886
      %v888 = vrot.slane %v887, 1
      %v889 = vadd.f32 %v887, %v888
      %s890 = vtos %v889
      %v891 = vsel %vm450, %v766, 0.0
      %v892 = vsel %vm451, %v767, 0.0
      %v893 = vsel %vm878, %v891, 0.0
      %v894 = vsel %vm878, %v892, 0.0
      %v895 = vadd.f32 %v893, %v894
      %896 = vadd.xlane.f32.xlu0 %v895
      %v897 = vpop.xlane.xlu0 %896
      %v898 = vrot.slane %v897, 4
      %v899 = vadd.f32 %v897, %v898
      %v900 = vrot.slane %v899, 2
      %v901 = vadd.f32 %v899, %v900
      %v902 = vrot.slane %v901, 1
      %v903 = vadd.f32 %v901, %v902
      %s904 = vtos %v903
      %v905 = vstv %s890
      %906 = vst [vmem:[%s433] sm:$0xff] %v905
      %v907 = vstv %s904
      %908 = vst [vmem:[%s440] sm:$0xff] %v907
      %p909 = scmp.lt.s32.totalorder %s22, 1
      %s910 = scalar_select %p909, %s22, 1
      %p911 = scmp.lt.s32.totalorder %s23, 0
      %s912 = scalar_select %p911, %s23, 0
      %s913 = sadd.s32 %s912, %s910
      %s914 = smul.addr %s913, 8
      %s915 = scalar_lea.vmem %s5, %s914
      %p916 = scmp.lt.s32.totalorder %s22, 1
      %s917 = scalar_select %p916, %s22, 1
      %p918 = scmp.lt.s32.totalorder %s23, 0
      %s919 = scalar_select %p918, %s23, 0
      %s920 = sadd.s32 %s919, %s917
      %s921 = smul.addr %s920, 8
      %s922 = scalar_lea.vmem %s6, %s921
      // Predicated region
      $region41: #{fsim_forward.3} parent=39 // pred_check
        %p923 = pneg %p190
      $region42: #{fsim_forward.3} parent=39 // pred_check_branch
        %925 = sbr.rel (%p923) target = $region44
      $region43: #{fsim_forward.3} parent=39 // pred_region
        _
      $region44: #{fsim_forward.3} parent=39 // pred_fallthru
        _
      // Predicated region
      $region45: #{fsim_forward.3} parent=39 // pred_check
        %p926 = pneg %p218
      $region46: #{fsim_forward.3} parent=39 // pred_check_branch
        %928 = sbr.rel (%p926) target = $region48
      $region47: #{fsim_forward.3} parent=39 // pred_region
        _
      $region48: #{fsim_forward.3} parent=39 // pred_fallthru
        _
    $region40: #{fsim_forward.3} parent=5 // pred_fallthru
      _
    %p929 = scmp.le.s32.totalorder 2, %s13
    // Predicated region
    $region49: #{fsim_forward.3} parent=5 // pred_check
      %p930 = pneg %p929
    $region50: #{fsim_forward.3} parent=5 // pred_check_branch
      %932 = sbr.rel (%p930) target = $region52
    $region51: #{fsim_forward.3} parent=5 // pred_region
      %s933 = ssub.s32 %s13, 2
      // Predicated region
      $region53: #{fsim_forward.3} parent=51 // pred_check
        %p934 = pneg %p196
      $region54: #{fsim_forward.3} parent=51 // pred_check_branch
        %936 = sbr.rel (%p934) target = $region56
      $region55: #{fsim_forward.3} parent=51 // pred_region
        %p937 = scmp.lt.s32.totalorder %s24, 1
        %s938 = scalar_select %p937, %s24, 1
        %p939 = scmp.lt.s32.totalorder %s25, 0
        %s940 = scalar_select %p939, %s25, 0
        %s941 = sadd.s32 %s940, %s938
        %s942 = smul.addr %s941, 8
        %s943 = scalar_lea.vmem %s5, %s942
      $region56: #{fsim_forward.3} parent=51 // pred_fallthru
        _
      // Predicated region
      $region57: #{fsim_forward.3} parent=51 // pred_check
        %p944 = pneg %p224
      $region58: #{fsim_forward.3} parent=51 // pred_check_branch
        %946 = sbr.rel (%p944) target = $region60
      $region59: #{fsim_forward.3} parent=51 // pred_region
        %p947 = scmp.lt.s32.totalorder %s24, 1
        %s948 = scalar_select %p947, %s24, 1
        %p949 = scmp.lt.s32.totalorder %s25, 0
        %s950 = scalar_select %p949, %s25, 0
        %s951 = sadd.s32 %s950, %s948
        %s952 = smul.addr %s951, 8
        %s953 = scalar_lea.vmem %s6, %s952
      $region60: #{fsim_forward.3} parent=51 // pred_fallthru
        _
    $region52: #{fsim_forward.3} parent=5 // pred_fallthru
      _
  $region6: #{fsim_forward.3} parent=0 // loop_footer
    %s17 = sadd.s32 1, %s13
  $region7: #{fsim_forward.3} parent=0 // loop_footer_branch
    %12 = sbr.rel target = $region3
  $region8: #{fsim_forward.3} parent=0 // loop_exit
    _

</llo_original>
